<compile_context>
chip_gen: v7x
topology: tpu7x:2x2x1
jax: 0.10.0
libtpu: 0.0.40
codegen_flags: <defaults>
</compile_context>

<pallas_src>
import functools
import math

import jax
import jax.numpy as jnp
import numpy as np
from jax.experimental import pallas as pl
from jax.experimental.pallas import tpu as pltpu


# ----------------------------------------------------------------------------
# Tiled matmul + bias kernel (hoisted X @ W_ih^T and the final nn.Linear)
# ----------------------------------------------------------------------------
def _matmul_bias_kernel(x_ref, w_ref, b_ref, o_ref, acc_ref):
    k = pl.program_id(2)

    @pl.when(k == 0)
    def _():
        acc_ref[...] = jnp.zeros_like(acc_ref)

    acc_ref[...] += jnp.dot(x_ref[...], w_ref[...],
                            preferred_element_type=jnp.float32)

    @pl.when(k == pl.num_programs(2) - 1)
    def _():
        o_ref[...] = (acc_ref[...] + b_ref[...]).astype(o_ref.dtype)


def _pick_tile(dim, pref, quantum):
    """Largest tile <= pref that is a multiple of `quantum` and divides `dim`,
    else the full dimension (full-extent blocks are always legal)."""
    if dim <= pref or dim % quantum != 0:
        return dim
    t = (pref // quantum) * quantum
    while t >= quantum:
        if dim % t == 0:
            return t
        t -= quantum
    return dim


def matmul_bias(x2d, w_t, b_row, *, tm_pref=256, tn_pref=256, tk_pref=512):
    """x2d: (N, K), w_t: (K, V), b_row: (1, V) -> (N, V) f32."""
    N, K = x2d.shape
    _, V = w_t.shape
    tm = _pick_tile(N, tm_pref, 8)
    tn = _pick_tile(V, tn_pref, 128)
    tk = _pick_tile(K, tk_pref, 128)
    grid = (N // tm, V // tn, K // tk)
    return pl.pallas_call(
        _matmul_bias_kernel,
        out_shape=jax.ShapeDtypeStruct((N, V), jnp.float32),
        grid_spec=pltpu.PrefetchScalarGridSpec(
            num_scalar_prefetch=0,
            grid=grid,
            in_specs=[
                pl.BlockSpec((tm, tk), lambda i, j, k: (i, k)),
                pl.BlockSpec((tk, tn), lambda i, j, k: (k, j)),
                pl.BlockSpec((1, tn), lambda i, j, k: (0, j)),
            ],
            out_specs=pl.BlockSpec((tm, tn), lambda i, j, k: (i, j)),
            scratch_shapes=[pltpu.VMEM((tm, tn), jnp.float32)],
        ),
        compiler_params=pltpu.CompilerParams(
            dimension_semantics=("parallel", "parallel", "arbitrary")),
    )(x2d, w_t, b_row)


# ----------------------------------------------------------------------------
# LSTM recurrence kernel: grid over time-blocks, T_BLK steps per grid step,
# recurrent (h, c) state lives in VMEM scratch.  Input gates G_x already contain
# X @ W_ih^T + (b_ih + b_hh), so the per-step body is a single MXU matmul.
# ----------------------------------------------------------------------------
def _lstm_recur_kernel(gx_ref, whh_ref, h0_ref, c0_ref,
                       out_ref, hf_ref, cf_ref, h_sc, c_sc, *, t_blk, hidden):
    tb = pl.program_id(0)

    @pl.when(tb == 0)
    def _():
        h_sc[...] = h0_ref[...]
        c_sc[...] = c0_ref[...]

    H = hidden
    whh = whh_ref[...]            # (H, 4H): hoisted out of the time loop
    gx_blk = gx_ref[...]          # (B, t_blk, 4H): one slab load per block
    h = h_sc[...]
    c = c_sc[...]

    # Statically unrolled loop over the timesteps of this block.
    for tt in range(t_blk):
        gates = gx_blk[:, tt, :] + jnp.dot(h, whh,
                                           preferred_element_type=jnp.float32)
        # PyTorch gate order [i, f, g, o].  Lane-aligned when H % 128 == 0;
        # at toy H the compiler falls back to lane selects (fine at this scale).
        i_g = jax.nn.sigmoid(gates[:, 0 * H:1 * H])
        f_g = jax.nn.sigmoid(gates[:, 1 * H:2 * H])
        g_g = jnp.tanh(gates[:, 2 * H:3 * H])
        o_g = jax.nn.sigmoid(gates[:, 3 * H:4 * H])
        c = f_g * c + i_g * g_g
        h = o_g * jnp.tanh(c)
        out_ref[:, tt, :] = h     # static-index store into the output slab

    h_sc[...] = h
    c_sc[...] = c

    # Final-state write only on the last grid step (removes redundant stores).
    @pl.when(tb == pl.num_programs(0) - 1)
    def _():
        hf_ref[...] = h
        cf_ref[...] = c


def _pick_time_block(s):
    if s <= 32:
        return s
    for t in (32, 16, 8):
        if s % t == 0:
            return t
    return s


def _round_up(n, q):
    return ((n + q - 1) // q) * q


def _lstm_layer_call(gx_bsd, w_hh_t, h0, c0):
    B, S, G4 = gx_bsd.shape
    H = h0.shape[-1]
    t_blk = _pick_time_block(S)
    n_blk = S // t_blk
    kernel = functools.partial(_lstm_recur_kernel, t_blk=t_blk, hidden=H)
    grid_spec = pltpu.PrefetchScalarGridSpec(
        num_scalar_prefetch=0,
        grid=(n_blk,),
        in_specs=[
            pl.BlockSpec((B, t_blk, G4), lambda t: (0, t, 0)),   # precomputed gates
            pl.BlockSpec((H, G4), lambda t: (0, 0)),             # W_hh^T (resident)
            pl.BlockSpec((B, H), lambda t: (0, 0)),              # h0
            pl.BlockSpec((B, H), lambda t: (0, 0)),              # c0
        ],
        out_specs=(
            pl.BlockSpec((B, t_blk, H), lambda t: (0, t, 0)),    # per-step hidden
            pl.BlockSpec((B, H), lambda t: (0, 0)),              # final h
            pl.BlockSpec((B, H), lambda t: (0, 0)),              # final c
        ),
        scratch_shapes=[
            pltpu.VMEM((B, H), jnp.float32),                     # h state
            pltpu.VMEM((B, H), jnp.float32),                     # c state
        ],
    )
    out_shapes = (
        jax.ShapeDtypeStruct((B, S, H), jnp.float32),
        jax.ShapeDtypeStruct((B, H), jnp.float32),
        jax.ShapeDtypeStruct((B, H), jnp.float32),
    )
    return pl.pallas_call(
        kernel,
        out_shape=out_shapes,
        grid_spec=grid_spec,
        compiler_params=pltpu.CompilerParams(
            dimension_semantics=("arbitrary",)),  # recurrence -> sequential
    )(gx_bsd, w_hh_t, h0, c0)


def lstm_layer(gx_bsd, w_hh_t, h0, c0):
    """One LSTM layer given precomputed input gates gx_bsd (B, S, 4H).
    Returns (out (B, S, H), h_final (B, H), c_final (B, H))."""
    B = gx_bsd.shape[0]
    B_pad = _round_up(B, 8)           # sublane-align the batch for f32
    if B_pad != B:
        pad = B_pad - B
        gx_bsd = jnp.pad(gx_bsd, ((0, pad), (0, 0), (0, 0)))
        h0 = jnp.pad(h0, ((0, pad), (0, 0)))
        c0 = jnp.pad(c0, ((0, pad), (0, 0)))
    out, h_f, c_f = _lstm_layer_call(gx_bsd, w_hh_t, h0, c0)
    if B_pad != B:
        out, h_f, c_f = out[:B], h_f[:B], c_f[:B]
    return out, h_f, c_f


# ----------------------------------------------------------------------------
# Model: params (weights stored pre-transposed) + forward
# ----------------------------------------------------------------------------
def init_params(key, vocab_size, embedding_dim, hidden_dim, num_layers):
    k = 1.0 / math.sqrt(hidden_dim)
    keys = jax.random.split(key, 2 + 4 * num_layers + 2)
    params = {}
    params["embedding"] = jax.random.normal(
        keys[0], (vocab_size, embedding_dim), jnp.float32)
    layers = []
    for l in range(num_layers):
        in_dim = embedding_dim if l == 0 else hidden_dim
        kw = keys[2 + 4 * l: 2 + 4 * (l + 1)]
        w_ih = jax.random.uniform(kw[0], (4 * hidden_dim, in_dim), jnp.float32, -k, k)
        w_hh = jax.random.uniform(kw[1], (4 * hidden_dim, hidden_dim), jnp.float32, -k, k)
        b_ih = jax.random.uniform(kw[2], (4 * hidden_dim,), jnp.float32, -k, k)
        b_hh = jax.random.uniform(kw[3], (4 * hidden_dim,), jnp.float32, -k, k)
        layers.append(dict(
            w_ih_t=w_ih.T,                          # (in_dim, 4H), stored transposed
            w_hh_t=w_hh.T,                          # (H, 4H)
            b=(b_ih + b_hh).reshape(1, -1),         # fused bias (1, 4H)
        ))
    params["lstm"] = layers
    params["fc_w_t"] = jax.random.uniform(
        keys[-2], (vocab_size, hidden_dim), jnp.float32, -k, k).T  # (H, V)
    params["fc_b"] = jax.random.uniform(
        keys[-1], (vocab_size,), jnp.float32, -k, k).reshape(1, -1)
    return params


@jax.jit
def rnn_forward(params, x, hidden=None):
    """x: (batch, seq) int32 token ids. Returns (logits (B,S,V), (h_n, c_n))."""
    B, S = x.shape
    layers = params["lstm"]
    num_layers = len(layers)
    H = layers[0]["w_hh_t"].shape[0]

    # Embedding lookup (XLA gather glue), stays batch-first.
    # TODO(synk): embedding gather kept in XLA; a Pallas DMA-gather adds no value
    # at these sizes.
    cur = jnp.take(params["embedding"], x, axis=0)      # (B, S, E)

    if hidden is None:
        h0_all = jnp.zeros((num_layers, B, H), jnp.float32)
        c0_all = jnp.zeros((num_layers, B, H), jnp.float32)
    else:
        h0_all, c0_all = hidden

    h_finals, c_finals = [], []
    for l, p in enumerate(layers):
        D = cur.shape[-1]
        # Hoisted input projection: one big MXU matmul over all B*S timesteps.
        gx = matmul_bias(cur.reshape(B * S, D), p["w_ih_t"], p["b"])  # (B*S, 4H)
        gx = gx.reshape(B, S, 4 * H)
        cur, h_f, c_f = lstm_layer(gx, p["w_hh_t"], h0_all[l], c0_all[l])
        h_finals.append(h_f)
        c_finals.append(c_f)

    # Final projection (nn.Linear) with the same tiled matmul kernel.
    logits = matmul_bias(cur.reshape(B * S, H), params["fc_w_t"], params["fc_b"])
    logits = logits.reshape(B, S, -1)
    h_n = jnp.stack(h_finals, axis=0)
    c_n = jnp.stack(c_finals, axis=0)
    return logits, (h_n, c_n)


# ----------------------------------------------------------------------------
# Pure-JAX reference (numerical sanity check)
# ----------------------------------------------------------------------------
def rnn_forward_ref(params, x):
    B, S = x.shape
    layers = params["lstm"]
    H = layers[0]["w_hh_t"].shape[0]
    cur = jnp.take(params["embedding"], x, axis=0)  # (B, S, E)
    h_finals, c_finals = [], []
    for p in layers:
        h = jnp.zeros((B, H), jnp.float32)
        c = jnp.zeros((B, H), jnp.float32)
        outs = []
        for t in range(S):
            g = cur[:, t] @ p["w_ih_t"] + h @ p["w_hh_t"] + p["b"][0]
            i_g = jax.nn.sigmoid(g[:, 0 * H:1 * H])
            f_g = jax.nn.sigmoid(g[:, 1 * H:2 * H])
            g_g = jnp.tanh(g[:, 2 * H:3 * H])
            o_g = jax.nn.sigmoid(g[:, 3 * H:4 * H])
            c = f_g * c + i_g * g_g
            h = o_g * jnp.tanh(c)
            outs.append(h)
        cur = jnp.stack(outs, axis=1)
        h_finals.append(h)
        c_finals.append(c)
    logits = cur @ params["fc_w_t"] + params["fc_b"][0]
    return logits, (jnp.stack(h_finals), jnp.stack(c_finals))


if __name__ == "__main__":
    vocab_size, embedding_dim, hidden_dim, num_layers = 32, 16, 32, 2
    batch, seq = 2, 8

    key = jax.random.PRNGKey(0)
    pkey, xkey = jax.random.split(key)
    params = init_params(pkey, vocab_size, embedding_dim, hidden_dim, num_layers)
    x = jax.random.randint(xkey, (batch, seq), 0, vocab_size, dtype=jnp.int32)

    logits, (h_n, c_n) = rnn_forward(params, x)
    jax.block_until_ready((logits, h_n, c_n))

    # Sanity check vs pure-JAX reference.
    ref_logits, (ref_h, ref_c) = rnn_forward_ref(params, x)
    np.testing.assert_allclose(np.asarray(logits), np.asarray(ref_logits),
                               rtol=1e-4, atol=1e-4)
    np.testing.assert_allclose(np.asarray(h_n), np.asarray(ref_h),
                               rtol=1e-4, atol=1e-4)
    np.testing.assert_allclose(np.asarray(c_n), np.asarray(ref_c),
                               rtol=1e-4, atol=1e-4)

    assert logits.shape == (batch, seq, vocab_size)
    assert h_n.shape == (num_layers, batch, hidden_dim)
    assert c_n.shape == (num_layers, batch, hidden_dim)
    print("KERNEL_OK")
</pallas_src>

<mosaic_0001>
module attributes {stable_mosaic.version = 11 : i64} {
  func.func @_matmul_bias_kernel(%arg0: i32, %arg1: i32, %arg2: i32, %arg3: memref<16x16xf32, #tpu.memory_space<vmem>>, %arg4: memref<16x128xf32, #tpu.memory_space<vmem>>, %arg5: memref<1x128xf32, #tpu.memory_space<vmem>>, %arg6: memref<16x128xf32, #tpu.memory_space<vmem>>, %arg7: memref<16x128xf32, #tpu.memory_space<vmem>>) attributes {dimension_semantics = [#tpu.dimension_semantics<parallel>, #tpu.dimension_semantics<parallel>, #tpu.dimension_semantics<arbitrary>], iteration_bounds = array<i64: 1, 1, 1>, scalar_prefetch = 0 : i64, scratch_operands = 1 : i64, tpu.core_type = #tpu.core_type<tc>, window_params = [{transform_indices = @transform_0, window_bounds = array<i64: 16, 16>}, {transform_indices = @transform_1, window_bounds = array<i64: 16, 128>}, {transform_indices = @transform_2, window_bounds = array<i64: 1, 128>}, {transform_indices = @transform_3, window_bounds = array<i64: 16, 128>}]} {
    %c0_i32 = arith.constant 0 : i32
    %0 = arith.cmpi eq, %arg2, %c0_i32 : i32
    %1 = arith.extui %0 : i1 to i32
    %c0_i32_0 = arith.constant 0 : i32
    %2 = arith.cmpi ne, %1, %c0_i32_0 : i32
    scf.if %2 {
      %cst_10 = arith.constant 0.000000e+00 : f32
      %12 = vector.broadcast %cst_10 : f32 to vector<16x128xf32>
      %c0_11 = arith.constant 0 : index
      %c0_12 = arith.constant 0 : index
      %13 = vector.load %arg7[%c0_11, %c0_12] : memref<16x128xf32, #tpu.memory_space<vmem>>, vector<16x128xf32>
      tpu.vector_store %arg7[%c0_11, %c0_12], %12 {strides = array<i32>} : memref<16x128xf32, #tpu.memory_space<vmem>>, vector<16x128xf32>,
    } else {
    }
    %c0 = arith.constant 0 : index
    %c0_1 = arith.constant 0 : index
    %3 = vector.load %arg7[%c0, %c0_1] : memref<16x128xf32, #tpu.memory_space<vmem>>, vector<16x128xf32>
    %c0_2 = arith.constant 0 : index
    %c0_3 = arith.constant 0 : index
    %4 = vector.load %arg3[%c0_2, %c0_3] : memref<16x16xf32, #tpu.memory_space<vmem>>, vector<16x16xf32>
    %c0_4 = arith.constant 0 : index
    %c0_5 = arith.constant 0 : index
    %5 = vector.load %arg4[%c0_4, %c0_5] : memref<16x128xf32, #tpu.memory_space<vmem>>, vector<16x128xf32>
    %cst = arith.constant dense<0.000000e+00> : vector<16x128xf32>
    %6 = tpu.matmul %4, %5, %cst {dimension_numbers = #tpu.dot_dimension_numbers<[1], [0], [0], [1], [0, 0, 1, 1], [], []>} : vector<16x16xf32>, vector<16x128xf32>, vector<16x128xf32> -> vector<16x128xf32>
    %7 = arith.addf %3, %6 : vector<16x128xf32>
    %c0_6 = arith.constant 0 : index
    %c0_7 = arith.constant 0 : index
    %8 = vector.load %arg7[%c0_6, %c0_7] : memref<16x128xf32, #tpu.memory_space<vmem>>, vector<16x128xf32>
    tpu.vector_store %arg7[%c0_6, %c0_7], %7 {strides = array<i32>} : memref<16x128xf32, #tpu.memory_space<vmem>>, vector<16x128xf32>,
    %c0_i32_8 = arith.constant 0 : i32
    %9 = arith.cmpi eq, %arg2, %c0_i32_8 : i32
    %10 = arith.extui %9 : i1 to i32
    %c0_i32_9 = arith.constant 0 : i32
    %11 = arith.cmpi ne, %10, %c0_i32_9 : i32
    scf.if %11 {
      %c0_10 = arith.constant 0 : index
      %c0_11 = arith.constant 0 : index
      %12 = vector.load %arg7[%c0_10, %c0_11] : memref<16x128xf32, #tpu.memory_space<vmem>>, vector<16x128xf32>
      %c0_12 = arith.constant 0 : index
      %c0_13 = arith.constant 0 : index
      %13 = vector.load %arg5[%c0_12, %c0_13] : memref<1x128xf32, #tpu.memory_space<vmem>>, vector<1x128xf32>
      %14 = vector.broadcast %13 : vector<1x128xf32> to vector<16x128xf32>
      %15 = arith.addf %12, %14 : vector<16x128xf32>
      %c0_14 = arith.constant 0 : index
      %c0_15 = arith.constant 0 : index
      %16 = vector.load %arg6[%c0_14, %c0_15] : memref<16x128xf32, #tpu.memory_space<vmem>>, vector<16x128xf32>
      tpu.vector_store %arg6[%c0_14, %c0_15], %15 {strides = array<i32>} : memref<16x128xf32, #tpu.memory_space<vmem>>, vector<16x128xf32>,
    } else {
    }
    return
  }
  func.func @transform_0(%arg0: i32, %arg1: i32, %arg2: i32) -> (i32, i32) {
    %c0_i32 = arith.constant 0 : i32
    return %arg0, %arg2 : i32, i32
  }
  func.func @transform_1(%arg0: i32, %arg1: i32, %arg2: i32) -> (i32, i32) {
    %c0_i32 = arith.constant 0 : i32
    return %arg2, %arg1 : i32, i32
  }
  func.func @transform_2(%arg0: i32, %arg1: i32, %arg2: i32) -> (i32, i32) {
    %c0_i32 = arith.constant 0 : i32
    %c0_i32_0 = arith.constant 0 : i32
    return %c0_i32, %arg1 : i32, i32
  }
  func.func @transform_3(%arg0: i32, %arg1: i32, %arg2: i32) -> (i32, i32) {
    %c0_i32 = arith.constant 0 : i32
    return %arg0, %arg1 : i32, i32
  }
}

module attributes {stable_mosaic.version = 11 : i64} {
  func.func @_matmul_bias_kernel(%arg0: i32, %arg1: i32, %arg2: i32, %arg3: memref<16x32xf32, #tpu.memory_space<vmem>>, %arg4: memref<32x128xf32, #tpu.memory_space<vmem>>, %arg5: memref<1x128xf32, #tpu.memory_space<vmem>>, %arg6: memref<16x128xf32, #tpu.memory_space<vmem>>, %arg7: memref<16x128xf32, #tpu.memory_space<vmem>>) attributes {dimension_semantics = [#tpu.dimension_semantics<parallel>, #tpu.dimension_semantics<parallel>, #tpu.dimension_semantics<arbitrary>], iteration_bounds = array<i64: 1, 1, 1>, scalar_prefetch = 0 : i64, scratch_operands = 1 : i64, tpu.core_type = #tpu.core_type<tc>, window_params = [{transform_indices = @transform_0, window_bounds = array<i64: 16, 32>}, {transform_indices = @transform_1, window_bounds = array<i64: 32, 128>}, {transform_indices = @transform_2, window_bounds = array<i64: 1, 128>}, {transform_indices = @transform_3, window_bounds = array<i64: 16, 128>}]} {
    %c0_i32 = arith.constant 0 : i32
    %0 = arith.cmpi eq, %arg2, %c0_i32 : i32
    %1 = arith.extui %0 : i1 to i32
    %c0_i32_0 = arith.constant 0 : i32
    %2 = arith.cmpi ne, %1, %c0_i32_0 : i32
    scf.if %2 {
      %cst_10 = arith.constant 0.000000e+00 : f32
      %12 = vector.broadcast %cst_10 : f32 to vector<16x128xf32>
      %c0_11 = arith.constant 0 : index
      %c0_12 = arith.constant 0 : index
      %13 = vector.load %arg7[%c0_11, %c0_12] : memref<16x128xf32, #tpu.memory_space<vmem>>, vector<16x128xf32>
      tpu.vector_store %arg7[%c0_11, %c0_12], %12 {strides = array<i32>} : memref<16x128xf32, #tpu.memory_space<vmem>>, vector<16x128xf32>,
    } else {
    }
    %c0 = arith.constant 0 : index
    %c0_1 = arith.constant 0 : index
    %3 = vector.load %arg7[%c0, %c0_1] : memref<16x128xf32, #tpu.memory_space<vmem>>, vector<16x128xf32>
    %c0_2 = arith.constant 0 : index
    %c0_3 = arith.constant 0 : index
    %4 = vector.load %arg3[%c0_2, %c0_3] : memref<16x32xf32, #tpu.memory_space<vmem>>, vector<16x32xf32>
    %c0_4 = arith.constant 0 : index
    %c0_5 = arith.constant 0 : index
    %5 = vector.load %arg4[%c0_4, %c0_5] : memref<32x128xf32, #tpu.memory_space<vmem>>, vector<32x128xf32>
    %cst = arith.constant dense<0.000000e+00> : vector<16x128xf32>
    %6 = tpu.matmul %4, %5, %cst {dimension_numbers = #tpu.dot_dimension_numbers<[1], [0], [0], [1], [0, 0, 1, 1], [], []>} : vector<16x32xf32>, vector<32x128xf32>, vector<16x128xf32> -> vector<16x128xf32>
    %7 = arith.addf %3, %6 : vector<16x128xf32>
    %c0_6 = arith.constant 0 : index
    %c0_7 = arith.constant 0 : index
    %8 = vector.load %arg7[%c0_6, %c0_7] : memref<16x128xf32, #tpu.memory_space<vmem>>, vector<16x128xf32>
    tpu.vector_store %arg7[%c0_6, %c0_7], %7 {strides = array<i32>} : memref<16x128xf32, #tpu.memory_space<vmem>>, vector<16x128xf32>,
    %c0_i32_8 = arith.constant 0 : i32
    %9 = arith.cmpi eq, %arg2, %c0_i32_8 : i32
    %10 = arith.extui %9 : i1 to i32
    %c0_i32_9 = arith.constant 0 : i32
    %11 = arith.cmpi ne, %10, %c0_i32_9 : i32
    scf.if %11 {
      %c0_10 = arith.constant 0 : index
      %c0_11 = arith.constant 0 : index
      %12 = vector.load %arg7[%c0_10, %c0_11] : memref<16x128xf32, #tpu.memory_space<vmem>>, vector<16x128xf32>
      %c0_12 = arith.constant 0 : index
      %c0_13 = arith.constant 0 : index
      %13 = vector.load %arg5[%c0_12, %c0_13] : memref<1x128xf32, #tpu.memory_space<vmem>>, vector<1x128xf32>
      %14 = vector.broadcast %13 : vector<1x128xf32> to vector<16x128xf32>
      %15 = arith.addf %12, %14 : vector<16x128xf32>
      %c0_14 = arith.constant 0 : index
      %c0_15 = arith.constant 0 : index
      %16 = vector.load %arg6[%c0_14, %c0_15] : memref<16x128xf32, #tpu.memory_space<vmem>>, vector<16x128xf32>
      tpu.vector_store %arg6[%c0_14, %c0_15], %15 {strides = array<i32>} : memref<16x128xf32, #tpu.memory_space<vmem>>, vector<16x128xf32>,
    } else {
    }
    return
  }
  func.func @transform_0(%arg0: i32, %arg1: i32, %arg2: i32) -> (i32, i32) {
    %c0_i32 = arith.constant 0 : i32
    return %arg0, %arg2 : i32, i32
  }
  func.func @transform_1(%arg0: i32, %arg1: i32, %arg2: i32) -> (i32, i32) {
    %c0_i32 = arith.constant 0 : i32
    return %arg2, %arg1 : i32, i32
  }
  func.func @transform_2(%arg0: i32, %arg1: i32, %arg2: i32) -> (i32, i32) {
    %c0_i32 = arith.constant 0 : i32
    %c0_i32_0 = arith.constant 0 : i32
    return %c0_i32, %arg1 : i32, i32
  }
  func.func @transform_3(%arg0: i32, %arg1: i32, %arg2: i32) -> (i32, i32) {
    %c0_i32 = arith.constant 0 : i32
    return %arg0, %arg1 : i32, i32
  }
}

module attributes {stable_mosaic.version = 11 : i64} {
  func.func @_lstm_recur_kernel(%arg0: i32, %arg1: memref<8x8x128xf32, #tpu.memory_space<vmem>>, %arg2: memref<32x128xf32, #tpu.memory_space<vmem>>, %arg3: memref<8x32xf32, #tpu.memory_space<vmem>>, %arg4: memref<8x32xf32, #tpu.memory_space<vmem>>, %arg5: memref<8x8x32xf32, #tpu.memory_space<vmem>>, %arg6: memref<8x32xf32, #tpu.memory_space<vmem>>, %arg7: memref<8x32xf32, #tpu.memory_space<vmem>>, %arg8: memref<8x32xf32, #tpu.memory_space<vmem>>, %arg9: memref<8x32xf32, #tpu.memory_space<vmem>>) attributes {dimension_semantics = [#tpu.dimension_semantics<arbitrary>], iteration_bounds = array<i64: 1>, scalar_prefetch = 0 : i64, scratch_operands = 2 : i64, tpu.core_type = #tpu.core_type<tc>, window_params = [{transform_indices = @transform_0, window_bounds = array<i64: 8, 8, 128>}, {pipeline_mode = #tpu.pipeline_mode<synchronous>, transform_indices = @transform_1, window_bounds = array<i64: 32, 128>}, {pipeline_mode = #tpu.pipeline_mode<synchronous>, transform_indices = @transform_2, window_bounds = array<i64: 8, 32>}, {pipeline_mode = #tpu.pipeline_mode<synchronous>, transform_indices = @transform_3, window_bounds = array<i64: 8, 32>}, {transform_indices = @transform_4, window_bounds = array<i64: 8, 8, 32>}, {pipeline_mode = #tpu.pipeline_mode<synchronous>, transform_indices = @transform_5, window_bounds = array<i64: 8, 32>}, {pipeline_mode = #tpu.pipeline_mode<synchronous>, transform_indices = @transform_6, window_bounds = array<i64: 8, 32>}]} {
    %c0_i32 = arith.constant 0 : i32
    %0 = arith.cmpi eq, %arg0, %c0_i32 : i32
    %1 = arith.extui %0 : i1 to i32
    %c0_i32_0 = arith.constant 0 : i32
    %2 = arith.cmpi ne, %1, %c0_i32_0 : i32
    scf.if %2 {
      %c0_63 = arith.constant 0 : index
      %c0_64 = arith.constant 0 : index
      %268 = vector.load %arg3[%c0_63, %c0_64] : memref<8x32xf32, #tpu.memory_space<vmem>>, vector<8x32xf32>
      %c0_65 = arith.constant 0 : index
      %c0_66 = arith.constant 0 : index
      %269 = vector.load %arg8[%c0_65, %c0_66] : memref<8x32xf32, #tpu.memory_space<vmem>>, vector<8x32xf32>
      tpu.vector_store %arg8[%c0_65, %c0_66], %268 {strides = array<i32>} : memref<8x32xf32, #tpu.memory_space<vmem>>, vector<8x32xf32>,
      %c0_67 = arith.constant 0 : index
      %c0_68 = arith.constant 0 : index
      %270 = vector.load %arg4[%c0_67, %c0_68] : memref<8x32xf32, #tpu.memory_space<vmem>>, vector<8x32xf32>
      %c0_69 = arith.constant 0 : index
      %c0_70 = arith.constant 0 : index
      %271 = vector.load %arg9[%c0_69, %c0_70] : memref<8x32xf32, #tpu.memory_space<vmem>>, vector<8x32xf32>
      tpu.vector_store %arg9[%c0_69, %c0_70], %270 {strides = array<i32>} : memref<8x32xf32, #tpu.memory_space<vmem>>, vector<8x32xf32>,
    } else {
    }
    %c0 = arith.constant 0 : index
    %c0_1 = arith.constant 0 : index
    %3 = vector.load %arg2[%c0, %c0_1] : memref<32x128xf32, #tpu.memory_space<vmem>>, vector<32x128xf32>
    %c0_2 = arith.constant 0 : index
    %c0_3 = arith.constant 0 : index
    %c0_4 = arith.constant 0 : index
    %4 = vector.load %arg1[%c0_2, %c0_3, %c0_4] : memref<8x8x128xf32, #tpu.memory_space<vmem>>, vector<8x8x128xf32>
    %c0_5 = arith.constant 0 : index
    %c0_6 = arith.constant 0 : index
    %5 = vector.load %arg8[%c0_5, %c0_6] : memref<8x32xf32, #tpu.memory_space<vmem>>, vector<8x32xf32>
    %c0_7 = arith.constant 0 : index
    %c0_8 = arith.constant 0 : index
    %6 = vector.load %arg9[%c0_7, %c0_8] : memref<8x32xf32, #tpu.memory_space<vmem>>, vector<8x32xf32>
    %7 = vector.extract_strided_slice %4 {offsets = [0, 0, 0], sizes = [8, 1, 128], strides = [1, 1, 1]} : vector<8x8x128xf32> to vector<8x1x128xf32>
    %8 = vector.shape_cast %7 : vector<8x1x128xf32> to vector<8x128xf32>
    %cst = arith.constant dense<0.000000e+00> : vector<8x128xf32>
    %9 = tpu.matmul %5, %3, %cst {dimension_numbers = #tpu.dot_dimension_numbers<[1], [0], [0], [1], [0, 0, 1, 1], [], []>} : vector<8x32xf32>, vector<32x128xf32>, vector<8x128xf32> -> vector<8x128xf32>
    %10 = arith.addf %8, %9 : vector<8x128xf32>
    %11 = vector.extract_strided_slice %10 {offsets = [0, 0], sizes = [8, 32], strides = [1, 1]} : vector<8x128xf32> to vector<8x32xf32>
    %12 = arith.negf %11 : vector<8x32xf32>
    %13 = math.exp %12 : vector<8x32xf32>
    %cst_9 = arith.constant 1.000000e+00 : f32
    %14 = vector.broadcast %cst_9 : f32 to vector<8x32xf32>
    %15 = arith.addf %14, %13 : vector<8x32xf32>
    %16 = arith.divf %14, %15 : vector<8x32xf32>
    %17 = vector.extract_strided_slice %10 {offsets = [0, 32], sizes = [8, 32], strides = [1, 1]} : vector<8x128xf32> to vector<8x32xf32>
    %18 = arith.negf %17 : vector<8x32xf32>
    %19 = math.exp %18 : vector<8x32xf32>
    %cst_10 = arith.constant 1.000000e+00 : f32
    %20 = vector.broadcast %cst_10 : f32 to vector<8x32xf32>
    %21 = arith.addf %20, %19 : vector<8x32xf32>
    %22 = arith.divf %20, %21 : vector<8x32xf32>
    %23 = vector.extract_strided_slice %10 {offsets = [0, 64], sizes = [8, 32], strides = [1, 1]} : vector<8x128xf32> to vector<8x32xf32>
    %24 = math.tanh %23 : vector<8x32xf32>
    %25 = vector.extract_strided_slice %10 {offsets = [0, 96], sizes = [8, 32], strides = [1, 1]} : vector<8x128xf32> to vector<8x32xf32>
    %26 = arith.negf %25 : vector<8x32xf32>
    %27 = math.exp %26 : vector<8x32xf32>
    %cst_11 = arith.constant 1.000000e+00 : f32
    %28 = vector.broadcast %cst_11 : f32 to vector<8x32xf32>
    %29 = arith.addf %28, %27 : vector<8x32xf32>
    %30 = arith.divf %28, %29 : vector<8x32xf32>
    %31 = arith.mulf %22, %6 : vector<8x32xf32>
    %32 = arith.mulf %16, %24 : vector<8x32xf32>
    %33 = arith.addf %31, %32 : vector<8x32xf32>
    %34 = math.tanh %33 : vector<8x32xf32>
    %35 = arith.mulf %30, %34 : vector<8x32xf32>
    %c0_12 = arith.constant 0 : index
    %c0_13 = arith.constant 0 : index
    %c0_14 = arith.constant 0 : index
    %36 = vector.load %arg5[%c0_12, %c0_13, %c0_14] : memref<8x8x32xf32, #tpu.memory_space<vmem>>, vector<8x1x32xf32>
    %37 = vector.shape_cast %36 : vector<8x1x32xf32> to vector<8x32xf32>
    %38 = vector.shape_cast %35 : vector<8x32xf32> to vector<8x1x32xf32>
    tpu.vector_store %arg5[%c0_12, %c0_13, %c0_14], %38 {strides = array<i32>} : memref<8x8x32xf32, #tpu.memory_space<vmem>>, vector<8x1x32xf32>,
    %39 = vector.extract_strided_slice %4 {offsets = [0, 1, 0], sizes = [8, 1, 128], strides = [1, 1, 1]} : vector<8x8x128xf32> to vector<8x1x128xf32>
    %40 = vector.shape_cast %39 : vector<8x1x128xf32> to vector<8x128xf32>
    %cst_15 = arith.constant dense<0.000000e+00> : vector<8x128xf32>
    %41 = tpu.matmul %35, %3, %cst_15 {dimension_numbers = #tpu.dot_dimension_numbers<[1], [0], [0], [1], [0, 0, 1, 1], [], []>} : vector<8x32xf32>, vector<32x128xf32>, vector<8x128xf32> -> vector<8x128xf32>
    %42 = arith.addf %40, %41 : vector<8x128xf32>
    %43 = vector.extract_strided_slice %42 {offsets = [0, 0], sizes = [8, 32], strides = [1, 1]} : vector<8x128xf32> to vector<8x32xf32>
    %44 = arith.negf %43 : vector<8x32xf32>
    %45 = math.exp %44 : vector<8x32xf32>
    %cst_16 = arith.constant 1.000000e+00 : f32
    %46 = vector.broadcast %cst_16 : f32 to vector<8x32xf32>
    %47 = arith.addf %46, %45 : vector<8x32xf32>
    %48 = arith.divf %46, %47 : vector<8x32xf32>
    %49 = vector.extract_strided_slice %42 {offsets = [0, 32], sizes = [8, 32], strides = [1, 1]} : vector<8x128xf32> to vector<8x32xf32>
    %50 = arith.negf %49 : vector<8x32xf32>
    %51 = math.exp %50 : vector<8x32xf32>
    %cst_17 = arith.constant 1.000000e+00 : f32
    %52 = vector.broadcast %cst_17 : f32 to vector<8x32xf32>
    %53 = arith.addf %52, %51 : vector<8x32xf32>
    %54 = arith.divf %52, %53 : vector<8x32xf32>
    %55 = vector.extract_strided_slice %42 {offsets = [0, 64], sizes = [8, 32], strides = [1, 1]} : vector<8x128xf32> to vector<8x32xf32>
    %56 = math.tanh %55 : vector<8x32xf32>
    %57 = vector.extract_strided_slice %42 {offsets = [0, 96], sizes = [8, 32], strides = [1, 1]} : vector<8x128xf32> to vector<8x32xf32>
    %58 = arith.negf %57 : vector<8x32xf32>
    %59 = math.exp %58 : vector<8x32xf32>
    %cst_18 = arith.constant 1.000000e+00 : f32
    %60 = vector.broadcast %cst_18 : f32 to vector<8x32xf32>
    %61 = arith.addf %60, %59 : vector<8x32xf32>
    %62 = arith.divf %60, %61 : vector<8x32xf32>
    %63 = arith.mulf %54, %33 : vector<8x32xf32>
    %64 = arith.mulf %48, %56 : vector<8x32xf32>
    %65 = arith.addf %63, %64 : vector<8x32xf32>
    %66 = math.tanh %65 : vector<8x32xf32>
    %67 = arith.mulf %62, %66 : vector<8x32xf32>
    %c0_19 = arith.constant 0 : index
    %c1 = arith.constant 1 : index
    %c0_20 = arith.constant 0 : index
    %68 = vector.load %arg5[%c0_19, %c1, %c0_20] : memref<8x8x32xf32, #tpu.memory_space<vmem>>, vector<8x1x32xf32>
    %69 = vector.shape_cast %68 : vector<8x1x32xf32> to vector<8x32xf32>
    %70 = vector.shape_cast %67 : vector<8x32xf32> to vector<8x1x32xf32>
    tpu.vector_store %arg5[%c0_19, %c1, %c0_20], %70 {strides = array<i32>} : memref<8x8x32xf32, #tpu.memory_space<vmem>>, vector<8x1x32xf32>,
    %71 = vector.extract_strided_slice %4 {offsets = [0, 2, 0], sizes = [8, 1, 128], strides = [1, 1, 1]} : vector<8x8x128xf32> to vector<8x1x128xf32>
    %72 = vector.shape_cast %71 : vector<8x1x128xf32> to vector<8x128xf32>
    %cst_21 = arith.constant dense<0.000000e+00> : vector<8x128xf32>
    %73 = tpu.matmul %67, %3, %cst_21 {dimension_numbers = #tpu.dot_dimension_numbers<[1], [0], [0], [1], [0, 0, 1, 1], [], []>} : vector<8x32xf32>, vector<32x128xf32>, vector<8x128xf32> -> vector<8x128xf32>
    %74 = arith.addf %72, %73 : vector<8x128xf32>
    %75 = vector.extract_strided_slice %74 {offsets = [0, 0], sizes = [8, 32], strides = [1, 1]} : vector<8x128xf32> to vector<8x32xf32>
    %76 = arith.negf %75 : vector<8x32xf32>
    %77 = math.exp %76 : vector<8x32xf32>
    %cst_22 = arith.constant 1.000000e+00 : f32
    %78 = vector.broadcast %cst_22 : f32 to vector<8x32xf32>
    %79 = arith.addf %78, %77 : vector<8x32xf32>
    %80 = arith.divf %78, %79 : vector<8x32xf32>
    %81 = vector.extract_strided_slice %74 {offsets = [0, 32], sizes = [8, 32], strides = [1, 1]} : vector<8x128xf32> to vector<8x32xf32>
    %82 = arith.negf %81 : vector<8x32xf32>
    %83 = math.exp %82 : vector<8x32xf32>
    %cst_23 = arith.constant 1.000000e+00 : f32
    %84 = vector.broadcast %cst_23 : f32 to vector<8x32xf32>
    %85 = arith.addf %84, %83 : vector<8x32xf32>
    %86 = arith.divf %84, %85 : vector<8x32xf32>
    %87 = vector.extract_strided_slice %74 {offsets = [0, 64], sizes = [8, 32], strides = [1, 1]} : vector<8x128xf32> to vector<8x32xf32>
    %88 = math.tanh %87 : vector<8x32xf32>
    %89 = vector.extract_strided_slice %74 {offsets = [0, 96], sizes = [8, 32], strides = [1, 1]} : vector<8x128xf32> to vector<8x32xf32>
    %90 = arith.negf %89 : vector<8x32xf32>
    %91 = math.exp %90 : vector<8x32xf32>
    %cst_24 = arith.constant 1.000000e+00 : f32
    %92 = vector.broadcast %cst_24 : f32 to vector<8x32xf32>
    %93 = arith.addf %92, %91 : vector<8x32xf32>
    %94 = arith.divf %92, %93 : vector<8x32xf32>
    %95 = arith.mulf %86, %65 : vector<8x32xf32>
    %96 = arith.mulf %80, %88 : vector<8x32xf32>
    %97 = arith.addf %95, %96 : vector<8x32xf32>
    %98 = math.tanh %97 : vector<8x32xf32>
    %99 = arith.mulf %94, %98 : vector<8x32xf32>
    %c0_25 = arith.constant 0 : index
    %c2 = arith.constant 2 : index
    %c0_26 = arith.constant 0 : index
    %100 = vector.load %arg5[%c0_25, %c2, %c0_26] : memref<8x8x32xf32, #tpu.memory_space<vmem>>, vector<8x1x32xf32>
    %101 = vector.shape_cast %100 : vector<8x1x32xf32> to vector<8x32xf32>
    %102 = vector.shape_cast %99 : vector<8x32xf32> to vector<8x1x32xf32>
    tpu.vector_store %arg5[%c0_25, %c2, %c0_26], %102 {strides = array<i32>} : memref<8x8x32xf32, #tpu.memory_space<vmem>>, vector<8x1x32xf32>,
    %103 = vector.extract_strided_slice %4 {offsets = [0, 3, 0], sizes = [8, 1, 128], strides = [1, 1, 1]} : vector<8x8x128xf32> to vector<8x1x128xf32>
    %104 = vector.shape_cast %103 : vector<8x1x128xf32> to vector<8x128xf32>
    %cst_27 = arith.constant dense<0.000000e+00> : vector<8x128xf32>
    %105 = tpu.matmul %99, %3, %cst_27 {dimension_numbers = #tpu.dot_dimension_numbers<[1], [0], [0], [1], [0, 0, 1, 1], [], []>} : vector<8x32xf32>, vector<32x128xf32>, vector<8x128xf32> -> vector<8x128xf32>
    %106 = arith.addf %104, %105 : vector<8x128xf32>
    %107 = vector.extract_strided_slice %106 {offsets = [0, 0], sizes = [8, 32], strides = [1, 1]} : vector<8x128xf32> to vector<8x32xf32>
    %108 = arith.negf %107 : vector<8x32xf32>
    %109 = math.exp %108 : vector<8x32xf32>
    %cst_28 = arith.constant 1.000000e+00 : f32
    %110 = vector.broadcast %cst_28 : f32 to vector<8x32xf32>
    %111 = arith.addf %110, %109 : vector<8x32xf32>
    %112 = arith.divf %110, %111 : vector<8x32xf32>
    %113 = vector.extract_strided_slice %106 {offsets = [0, 32], sizes = [8, 32], strides = [1, 1]} : vector<8x128xf32> to vector<8x32xf32>
    %114 = arith.negf %113 : vector<8x32xf32>
    %115 = math.exp %114 : vector<8x32xf32>
    %cst_29 = arith.constant 1.000000e+00 : f32
    %116 = vector.broadcast %cst_29 : f32 to vector<8x32xf32>
    %117 = arith.addf %116, %115 : vector<8x32xf32>
    %118 = arith.divf %116, %117 : vector<8x32xf32>
    %119 = vector.extract_strided_slice %106 {offsets = [0, 64], sizes = [8, 32], strides = [1, 1]} : vector<8x128xf32> to vector<8x32xf32>
    %120 = math.tanh %119 : vector<8x32xf32>
    %121 = vector.extract_strided_slice %106 {offsets = [0, 96], sizes = [8, 32], strides = [1, 1]} : vector<8x128xf32> to vector<8x32xf32>
    %122 = arith.negf %121 : vector<8x32xf32>
    %123 = math.exp %122 : vector<8x32xf32>
    %cst_30 = arith.constant 1.000000e+00 : f32
    %124 = vector.broadcast %cst_30 : f32 to vector<8x32xf32>
    %125 = arith.addf %124, %123 : vector<8x32xf32>
    %126 = arith.divf %124, %125 : vector<8x32xf32>
    %127 = arith.mulf %118, %97 : vector<8x32xf32>
    %128 = arith.mulf %112, %120 : vector<8x32xf32>
    %129 = arith.addf %127, %128 : vector<8x32xf32>
    %130 = math.tanh %129 : vector<8x32xf32>
    %131 = arith.mulf %126, %130 : vector<8x32xf32>
    %c0_31 = arith.constant 0 : index
    %c3 = arith.constant 3 : index
    %c0_32 = arith.constant 0 : index
    %132 = vector.load %arg5[%c0_31, %c3, %c0_32] : memref<8x8x32xf32, #tpu.memory_space<vmem>>, vector<8x1x32xf32>
    %133 = vector.shape_cast %132 : vector<8x1x32xf32> to vector<8x32xf32>
    %134 = vector.shape_cast %131 : vector<8x32xf32> to vector<8x1x32xf32>
    tpu.vector_store %arg5[%c0_31, %c3, %c0_32], %134 {strides = array<i32>} : memref<8x8x32xf32, #tpu.memory_space<vmem>>, vector<8x1x32xf32>,
    %135 = vector.extract_strided_slice %4 {offsets = [0, 4, 0], sizes = [8, 1, 128], strides = [1, 1, 1]} : vector<8x8x128xf32> to vector<8x1x128xf32>
    %136 = vector.shape_cast %135 : vector<8x1x128xf32> to vector<8x128xf32>
    %cst_33 = arith.constant dense<0.000000e+00> : vector<8x128xf32>
    %137 = tpu.matmul %131, %3, %cst_33 {dimension_numbers = #tpu.dot_dimension_numbers<[1], [0], [0], [1], [0, 0, 1, 1], [], []>} : vector<8x32xf32>, vector<32x128xf32>, vector<8x128xf32> -> vector<8x128xf32>
    %138 = arith.addf %136, %137 : vector<8x128xf32>
    %139 = vector.extract_strided_slice %138 {offsets = [0, 0], sizes = [8, 32], strides = [1, 1]} : vector<8x128xf32> to vector<8x32xf32>
    %140 = arith.negf %139 : vector<8x32xf32>
    %141 = math.exp %140 : vector<8x32xf32>
    %cst_34 = arith.constant 1.000000e+00 : f32
    %142 = vector.broadcast %cst_34 : f32 to vector<8x32xf32>
    %143 = arith.addf %142, %141 : vector<8x32xf32>
    %144 = arith.divf %142, %143 : vector<8x32xf32>
    %145 = vector.extract_strided_slice %138 {offsets = [0, 32], sizes = [8, 32], strides = [1, 1]} : vector<8x128xf32> to vector<8x32xf32>
    %146 = arith.negf %145 : vector<8x32xf32>
    %147 = math.exp %146 : vector<8x32xf32>
    %cst_35 = arith.constant 1.000000e+00 : f32
    %148 = vector.broadcast %cst_35 : f32 to vector<8x32xf32>
    %149 = arith.addf %148, %147 : vector<8x32xf32>
    %150 = arith.divf %148, %149 : vector<8x32xf32>
    %151 = vector.extract_strided_slice %138 {offsets = [0, 64], sizes = [8, 32], strides = [1, 1]} : vector<8x128xf32> to vector<8x32xf32>
    %152 = math.tanh %151 : vector<8x32xf32>
    %153 = vector.extract_strided_slice %138 {offsets = [0, 96], sizes = [8, 32], strides = [1, 1]} : vector<8x128xf32> to vector<8x32xf32>
    %154 = arith.negf %153 : vector<8x32xf32>
    %155 = math.exp %154 : vector<8x32xf32>
    %cst_36 = arith.constant 1.000000e+00 : f32
    %156 = vector.broadcast %cst_36 : f32 to vector<8x32xf32>
    %157 = arith.addf %156, %155 : vector<8x32xf32>
    %158 = arith.divf %156, %157 : vector<8x32xf32>
    %159 = arith.mulf %150, %129 : vector<8x32xf32>
    %160 = arith.mulf %144, %152 : vector<8x32xf32>
    %161 = arith.addf %159, %160 : vector<8x32xf32>
    %162 = math.tanh %161 : vector<8x32xf32>
    %163 = arith.mulf %158, %162 : vector<8x32xf32>
    %c0_37 = arith.constant 0 : index
    %c4 = arith.constant 4 : index
    %c0_38 = arith.constant 0 : index
    %164 = vector.load %arg5[%c0_37, %c4, %c0_38] : memref<8x8x32xf32, #tpu.memory_space<vmem>>, vector<8x1x32xf32>
    %165 = vector.shape_cast %164 : vector<8x1x32xf32> to vector<8x32xf32>
    %166 = vector.shape_cast %163 : vector<8x32xf32> to vector<8x1x32xf32>
    tpu.vector_store %arg5[%c0_37, %c4, %c0_38], %166 {strides = array<i32>} : memref<8x8x32xf32, #tpu.memory_space<vmem>>, vector<8x1x32xf32>,
    %167 = vector.extract_strided_slice %4 {offsets = [0, 5, 0], sizes = [8, 1, 128], strides = [1, 1, 1]} : vector<8x8x128xf32> to vector<8x1x128xf32>
    %168 = vector.shape_cast %167 : vector<8x1x128xf32> to vector<8x128xf32>
    %cst_39 = arith.constant dense<0.000000e+00> : vector<8x128xf32>
    %169 = tpu.matmul %163, %3, %cst_39 {dimension_numbers = #tpu.dot_dimension_numbers<[1], [0], [0], [1], [0, 0, 1, 1], [], []>} : vector<8x32xf32>, vector<32x128xf32>, vector<8x128xf32> -> vector<8x128xf32>
    %170 = arith.addf %168, %169 : vector<8x128xf32>
    %171 = vector.extract_strided_slice %170 {offsets = [0, 0], sizes = [8, 32], strides = [1, 1]} : vector<8x128xf32> to vector<8x32xf32>
    %172 = arith.negf %171 : vector<8x32xf32>
    %173 = math.exp %172 : vector<8x32xf32>
    %cst_40 = arith.constant 1.000000e+00 : f32
    %174 = vector.broadcast %cst_40 : f32 to vector<8x32xf32>
    %175 = arith.addf %174, %173 : vector<8x32xf32>
    %176 = arith.divf %174, %175 : vector<8x32xf32>
    %177 = vector.extract_strided_slice %170 {offsets = [0, 32], sizes = [8, 32], strides = [1, 1]} : vector<8x128xf32> to vector<8x32xf32>
    %178 = arith.negf %177 : vector<8x32xf32>
    %179 = math.exp %178 : vector<8x32xf32>
    %cst_41 = arith.constant 1.000000e+00 : f32
    %180 = vector.broadcast %cst_41 : f32 to vector<8x32xf32>
    %181 = arith.addf %180, %179 : vector<8x32xf32>
    %182 = arith.divf %180, %181 : vector<8x32xf32>
    %183 = vector.extract_strided_slice %170 {offsets = [0, 64], sizes = [8, 32], strides = [1, 1]} : vector<8x128xf32> to vector<8x32xf32>
    %184 = math.tanh %183 : vector<8x32xf32>
    %185 = vector.extract_strided_slice %170 {offsets = [0, 96], sizes = [8, 32], strides = [1, 1]} : vector<8x128xf32> to vector<8x32xf32>
    %186 = arith.negf %185 : vector<8x32xf32>
    %187 = math.exp %186 : vector<8x32xf32>
    %cst_42 = arith.constant 1.000000e+00 : f32
    %188 = vector.broadcast %cst_42 : f32 to vector<8x32xf32>
    %189 = arith.addf %188, %187 : vector<8x32xf32>
    %190 = arith.divf %188, %189 : vector<8x32xf32>
    %191 = arith.mulf %182, %161 : vector<8x32xf32>
    %192 = arith.mulf %176, %184 : vector<8x32xf32>
    %193 = arith.addf %191, %192 : vector<8x32xf32>
    %194 = math.tanh %193 : vector<8x32xf32>
    %195 = arith.mulf %190, %194 : vector<8x32xf32>
    %c0_43 = arith.constant 0 : index
    %c5 = arith.constant 5 : index
    %c0_44 = arith.constant 0 : index
    %196 = vector.load %arg5[%c0_43, %c5, %c0_44] : memref<8x8x32xf32, #tpu.memory_space<vmem>>, vector<8x1x32xf32>
    %197 = vector.shape_cast %196 : vector<8x1x32xf32> to vector<8x32xf32>
    %198 = vector.shape_cast %195 : vector<8x32xf32> to vector<8x1x32xf32>
    tpu.vector_store %arg5[%c0_43, %c5, %c0_44], %198 {strides = array<i32>} : memref<8x8x32xf32, #tpu.memory_space<vmem>>, vector<8x1x32xf32>,
    %199 = vector.extract_strided_slice %4 {offsets = [0, 6, 0], sizes = [8, 1, 128], strides = [1, 1, 1]} : vector<8x8x128xf32> to vector<8x1x128xf32>
    %200 = vector.shape_cast %199 : vector<8x1x128xf32> to vector<8x128xf32>
    %cst_45 = arith.constant dense<0.000000e+00> : vector<8x128xf32>
    %201 = tpu.matmul %195, %3, %cst_45 {dimension_numbers = #tpu.dot_dimension_numbers<[1], [0], [0], [1], [0, 0, 1, 1], [], []>} : vector<8x32xf32>, vector<32x128xf32>, vector<8x128xf32> -> vector<8x128xf32>
    %202 = arith.addf %200, %201 : vector<8x128xf32>
    %203 = vector.extract_strided_slice %202 {offsets = [0, 0], sizes = [8, 32], strides = [1, 1]} : vector<8x128xf32> to vector<8x32xf32>
    %204 = arith.negf %203 : vector<8x32xf32>
    %205 = math.exp %204 : vector<8x32xf32>
    %cst_46 = arith.constant 1.000000e+00 : f32
    %206 = vector.broadcast %cst_46 : f32 to vector<8x32xf32>
    %207 = arith.addf %206, %205 : vector<8x32xf32>
    %208 = arith.divf %206, %207 : vector<8x32xf32>
    %209 = vector.extract_strided_slice %202 {offsets = [0, 32], sizes = [8, 32], strides = [1, 1]} : vector<8x128xf32> to vector<8x32xf32>
    %210 = arith.negf %209 : vector<8x32xf32>
    %211 = math.exp %210 : vector<8x32xf32>
    %cst_47 = arith.constant 1.000000e+00 : f32
    %212 = vector.broadcast %cst_47 : f32 to vector<8x32xf32>
    %213 = arith.addf %212, %211 : vector<8x32xf32>
    %214 = arith.divf %212, %213 : vector<8x32xf32>
    %215 = vector.extract_strided_slice %202 {offsets = [0, 64], sizes = [8, 32], strides = [1, 1]} : vector<8x128xf32> to vector<8x32xf32>
    %216 = math.tanh %215 : vector<8x32xf32>
    %217 = vector.extract_strided_slice %202 {offsets = [0, 96], sizes = [8, 32], strides = [1, 1]} : vector<8x128xf32> to vector<8x32xf32>
    %218 = arith.negf %217 : vector<8x32xf32>
    %219 = math.exp %218 : vector<8x32xf32>
    %cst_48 = arith.constant 1.000000e+00 : f32
    %220 = vector.broadcast %cst_48 : f32 to vector<8x32xf32>
    %221 = arith.addf %220, %219 : vector<8x32xf32>
    %222 = arith.divf %220, %221 : vector<8x32xf32>
    %223 = arith.mulf %214, %193 : vector<8x32xf32>
    %224 = arith.mulf %208, %216 : vector<8x32xf32>
    %225 = arith.addf %223, %224 : vector<8x32xf32>
    %226 = math.tanh %225 : vector<8x32xf32>
    %227 = arith.mulf %222, %226 : vector<8x32xf32>
    %c0_49 = arith.constant 0 : index
    %c6 = arith.constant 6 : index
    %c0_50 = arith.constant 0 : index
    %228 = vector.load %arg5[%c0_49, %c6, %c0_50] : memref<8x8x32xf32, #tpu.memory_space<vmem>>, vector<8x1x32xf32>
    %229 = vector.shape_cast %228 : vector<8x1x32xf32> to vector<8x32xf32>
    %230 = vector.shape_cast %227 : vector<8x32xf32> to vector<8x1x32xf32>
    tpu.vector_store %arg5[%c0_49, %c6, %c0_50], %230 {strides = array<i32>} : memref<8x8x32xf32, #tpu.memory_space<vmem>>, vector<8x1x32xf32>,
    %231 = vector.extract_strided_slice %4 {offsets = [0, 7, 0], sizes = [8, 1, 128], strides = [1, 1, 1]} : vector<8x8x128xf32> to vector<8x1x128xf32>
    %232 = vector.shape_cast %231 : vector<8x1x128xf32> to vector<8x128xf32>
    %cst_51 = arith.constant dense<0.000000e+00> : vector<8x128xf32>
    %233 = tpu.matmul %227, %3, %cst_51 {dimension_numbers = #tpu.dot_dimension_numbers<[1], [0], [0], [1], [0, 0, 1, 1], [], []>} : vector<8x32xf32>, vector<32x128xf32>, vector<8x128xf32> -> vector<8x128xf32>
    %234 = arith.addf %232, %233 : vector<8x128xf32>
    %235 = vector.extract_strided_slice %234 {offsets = [0, 0], sizes = [8, 32], strides = [1, 1]} : vector<8x128xf32> to vector<8x32xf32>
    %236 = arith.negf %235 : vector<8x32xf32>
    %237 = math.exp %236 : vector<8x32xf32>
    %cst_52 = arith.constant 1.000000e+00 : f32
    %238 = vector.broadcast %cst_52 : f32 to vector<8x32xf32>
    %239 = arith.addf %238, %237 : vector<8x32xf32>
    %240 = arith.divf %238, %239 : vector<8x32xf32>
    %241 = vector.extract_strided_slice %234 {offsets = [0, 32], sizes = [8, 32], strides = [1, 1]} : vector<8x128xf32> to vector<8x32xf32>
    %242 = arith.negf %241 : vector<8x32xf32>
    %243 = math.exp %242 : vector<8x32xf32>
    %cst_53 = arith.constant 1.000000e+00 : f32
    %244 = vector.broadcast %cst_53 : f32 to vector<8x32xf32>
    %245 = arith.addf %244, %243 : vector<8x32xf32>
    %246 = arith.divf %244, %245 : vector<8x32xf32>
    %247 = vector.extract_strided_slice %234 {offsets = [0, 64], sizes = [8, 32], strides = [1, 1]} : vector<8x128xf32> to vector<8x32xf32>
    %248 = math.tanh %247 : vector<8x32xf32>
    %249 = vector.extract_strided_slice %234 {offsets = [0, 96], sizes = [8, 32], strides = [1, 1]} : vector<8x128xf32> to vector<8x32xf32>
    %250 = arith.negf %249 : vector<8x32xf32>
    %251 = math.exp %250 : vector<8x32xf32>
    %cst_54 = arith.constant 1.000000e+00 : f32
    %252 = vector.broadcast %cst_54 : f32 to vector<8x32xf32>
    %253 = arith.addf %252, %251 : vector<8x32xf32>
    %254 = arith.divf %252, %253 : vector<8x32xf32>
    %255 = arith.mulf %246, %225 : vector<8x32xf32>
    %256 = arith.mulf %240, %248 : vector<8x32xf32>
    %257 = arith.addf %255, %256 : vector<8x32xf32>
    %258 = math.tanh %257 : vector<8x32xf32>
    %259 = arith.mulf %254, %258 : vector<8x32xf32>
    %c0_55 = arith.constant 0 : index
    %c7 = arith.constant 7 : index
    %c0_56 = arith.constant 0 : index
    %260 = vector.load %arg5[%c0_55, %c7, %c0_56] : memref<8x8x32xf32, #tpu.memory_space<vmem>>, vector<8x1x32xf32>
    %261 = vector.shape_cast %260 : vector<8x1x32xf32> to vector<8x32xf32>
    %262 = vector.shape_cast %259 : vector<8x32xf32> to vector<8x1x32xf32>
    tpu.vector_store %arg5[%c0_55, %c7, %c0_56], %262 {strides = array<i32>} : memref<8x8x32xf32, #tpu.memory_space<vmem>>, vector<8x1x32xf32>,
    %c0_57 = arith.constant 0 : index
    %c0_58 = arith.constant 0 : index
    %263 = vector.load %arg8[%c0_57, %c0_58] : memref<8x32xf32, #tpu.memory_space<vmem>>, vector<8x32xf32>
    tpu.vector_store %arg8[%c0_57, %c0_58], %259 {strides = array<i32>} : memref<8x32xf32, #tpu.memory_space<vmem>>, vector<8x32xf32>,
    %c0_59 = arith.constant 0 : index
    %c0_60 = arith.constant 0 : index
    %264 = vector.load %arg9[%c0_59, %c0_60] : memref<8x32xf32, #tpu.memory_space<vmem>>, vector<8x32xf32>
    tpu.vector_store %arg9[%c0_59, %c0_60], %257 {strides = array<i32>} : memref<8x32xf32, #tpu.memory_space<vmem>>, vector<8x32xf32>,
    %c0_i32_61 = arith.constant 0 : i32
    %265 = arith.cmpi eq, %arg0, %c0_i32_61 : i32
    %266 = arith.extui %265 : i1 to i32
    %c0_i32_62 = arith.constant 0 : i32
    %267 = arith.cmpi ne, %266, %c0_i32_62 : i32
    scf.if %267 {
      %c0_63 = arith.constant 0 : index
      %c0_64 = arith.constant 0 : index
      %268 = vector.load %arg6[%c0_63, %c0_64] : memref<8x32xf32, #tpu.memory_space<vmem>>, vector<8x32xf32>
      tpu.vector_store %arg6[%c0_63, %c0_64], %259 {strides = array<i32>} : memref<8x32xf32, #tpu.memory_space<vmem>>, vector<8x32xf32>,
      %c0_65 = arith.constant 0 : index
      %c0_66 = arith.constant 0 : index
      %269 = vector.load %arg7[%c0_65, %c0_66] : memref<8x32xf32, #tpu.memory_space<vmem>>, vector<8x32xf32>
      tpu.vector_store %arg7[%c0_65, %c0_66], %257 {strides = array<i32>} : memref<8x32xf32, #tpu.memory_space<vmem>>, vector<8x32xf32>,
    } else {
    }
    return
  }
  func.func @transform_0(%arg0: i32) -> (i32, i32, i32) {
    %c0_i32 = arith.constant 0 : i32
    %c0_i32_0 = arith.constant 0 : i32
    %c0_i32_1 = arith.constant 0 : i32
    return %c0_i32, %arg0, %c0_i32_0 : i32, i32, i32
  }
  func.func @transform_1(%arg0: i32) -> (i32, i32) {
    %c0_i32 = arith.constant 0 : i32
    %c0_i32_0 = arith.constant 0 : i32
    %c0_i32_1 = arith.constant 0 : i32
    return %c0_i32, %c0_i32_0 : i32, i32
  }
  func.func @transform_2(%arg0: i32) -> (i32, i32) {
    %c0_i32 = arith.constant 0 : i32
    %c0_i32_0 = arith.constant 0 : i32
    %c0_i32_1 = arith.constant 0 : i32
    return %c0_i32, %c0_i32_0 : i32, i32
  }
  func.func @transform_3(%arg0: i32) -> (i32, i32) {
    %c0_i32 = arith.constant 0 : i32
    %c0_i32_0 = arith.constant 0 : i32
    %c0_i32_1 = arith.constant 0 : i32
    return %c0_i32, %c0_i32_0 : i32, i32
  }
  func.func @transform_4(%arg0: i32) -> (i32, i32, i32) {
    %c0_i32 = arith.constant 0 : i32
    %c0_i32_0 = arith.constant 0 : i32
    %c0_i32_1 = arith.constant 0 : i32
    return %c0_i32, %arg0, %c0_i32_0 : i32, i32, i32
  }
  func.func @transform_5(%arg0: i32) -> (i32, i32) {
    %c0_i32 = arith.constant 0 : i32
    %c0_i32_0 = arith.constant 0 : i32
    %c0_i32_1 = arith.constant 0 : i32
    return %c0_i32, %c0_i32_0 : i32, i32
  }
  func.func @transform_6(%arg0: i32) -> (i32, i32) {
    %c0_i32 = arith.constant 0 : i32
    %c0_i32_0 = arith.constant 0 : i32
    %c0_i32_1 = arith.constant 0 : i32
    return %c0_i32, %c0_i32_0 : i32, i32
  }
}

module attributes {stable_mosaic.version = 11 : i64} {
  func.func @_matmul_bias_kernel(%arg0: i32, %arg1: i32, %arg2: i32, %arg3: memref<16x32xf32, #tpu.memory_space<vmem>>, %arg4: memref<32x32xf32, #tpu.memory_space<vmem>>, %arg5: memref<1x32xf32, #tpu.memory_space<vmem>>, %arg6: memref<16x32xf32, #tpu.memory_space<vmem>>, %arg7: memref<16x32xf32, #tpu.memory_space<vmem>>) attributes {dimension_semantics = [#tpu.dimension_semantics<parallel>, #tpu.dimension_semantics<parallel>, #tpu.dimension_semantics<arbitrary>], iteration_bounds = array<i64: 1, 1, 1>, scalar_prefetch = 0 : i64, scratch_operands = 1 : i64, tpu.core_type = #tpu.core_type<tc>, window_params = [{transform_indices = @transform_0, window_bounds = array<i64: 16, 32>}, {transform_indices = @transform_1, window_bounds = array<i64: 32, 32>}, {transform_indices = @transform_2, window_bounds = array<i64: 1, 32>}, {transform_indices = @transform_3, window_bounds = array<i64: 16, 32>}]} {
    %c0_i32 = arith.constant 0 : i32
    %0 = arith.cmpi eq, %arg2, %c0_i32 : i32
    %1 = arith.extui %0 : i1 to i32
    %c0_i32_0 = arith.constant 0 : i32
    %2 = arith.cmpi ne, %1, %c0_i32_0 : i32
    scf.if %2 {
      %cst_10 = arith.constant 0.000000e+00 : f32
      %12 = vector.broadcast %cst_10 : f32 to vector<16x32xf32>
      %c0_11 = arith.constant 0 : index
      %c0_12 = arith.constant 0 : index
      %13 = vector.load %arg7[%c0_11, %c0_12] : memref<16x32xf32, #tpu.memory_space<vmem>>, vector<16x32xf32>
      tpu.vector_store %arg7[%c0_11, %c0_12], %12 {strides = array<i32>} : memref<16x32xf32, #tpu.memory_space<vmem>>, vector<16x32xf32>,
    } else {
    }
    %c0 = arith.constant 0 : index
    %c0_1 = arith.constant 0 : index
    %3 = vector.load %arg7[%c0, %c0_1] : memref<16x32xf32, #tpu.memory_space<vmem>>, vector<16x32xf32>
    %c0_2 = arith.constant 0 : index
    %c0_3 = arith.constant 0 : index
    %4 = vector.load %arg3[%c0_2, %c0_3] : memref<16x32xf32, #tpu.memory_space<vmem>>, vector<16x32xf32>
    %c0_4 = arith.constant 0 : index
    %c0_5 = arith.constant 0 : index
    %5 = vector.load %arg4[%c0_4, %c0_5] : memref<32x32xf32, #tpu.memory_space<vmem>>, vector<32x32xf32>
    %cst = arith.constant dense<0.000000e+00> : vector<16x32xf32>
    %6 = tpu.matmul %4, %5, %cst {dimension_numbers = #tpu.dot_dimension_numbers<[1], [0], [0], [1], [0, 0, 1, 1], [], []>} : vector<16x32xf32>, vector<32x32xf32>, vector<16x32xf32> -> vector<16x32xf32>
    %7 = arith.addf %3, %6 : vector<16x32xf32>
    %c0_6 = arith.constant 0 : index
    %c0_7 = arith.constant 0 : index
    %8 = vector.load %arg7[%c0_6, %c0_7] : memref<16x32xf32, #tpu.memory_space<vmem>>, vector<16x32xf32>
    tpu.vector_store %arg7[%c0_6, %c0_7], %7 {strides = array<i32>} : memref<16x32xf32, #tpu.memory_space<vmem>>, vector<16x32xf32>,
    %c0_i32_8 = arith.constant 0 : i32
    %9 = arith.cmpi eq, %arg2, %c0_i32_8 : i32
    %10 = arith.extui %9 : i1 to i32
    %c0_i32_9 = arith.constant 0 : i32
    %11 = arith.cmpi ne, %10, %c0_i32_9 : i32
    scf.if %11 {
      %c0_10 = arith.constant 0 : index
      %c0_11 = arith.constant 0 : index
      %12 = vector.load %arg7[%c0_10, %c0_11] : memref<16x32xf32, #tpu.memory_space<vmem>>, vector<16x32xf32>
      %c0_12 = arith.constant 0 : index
      %c0_13 = arith.constant 0 : index
      %13 = vector.load %arg5[%c0_12, %c0_13] : memref<1x32xf32, #tpu.memory_space<vmem>>, vector<1x32xf32>
      %14 = vector.broadcast %13 : vector<1x32xf32> to vector<16x32xf32>
      %15 = arith.addf %12, %14 : vector<16x32xf32>
      %c0_14 = arith.constant 0 : index
      %c0_15 = arith.constant 0 : index
      %16 = vector.load %arg6[%c0_14, %c0_15] : memref<16x32xf32, #tpu.memory_space<vmem>>, vector<16x32xf32>
      tpu.vector_store %arg6[%c0_14, %c0_15], %15 {strides = array<i32>} : memref<16x32xf32, #tpu.memory_space<vmem>>, vector<16x32xf32>,
    } else {
    }
    return
  }
  func.func @transform_0(%arg0: i32, %arg1: i32, %arg2: i32) -> (i32, i32) {
    %c0_i32 = arith.constant 0 : i32
    return %arg0, %arg2 : i32, i32
  }
  func.func @transform_1(%arg0: i32, %arg1: i32, %arg2: i32) -> (i32, i32) {
    %c0_i32 = arith.constant 0 : i32
    return %arg2, %arg1 : i32, i32
  }
  func.func @transform_2(%arg0: i32, %arg1: i32, %arg2: i32) -> (i32, i32) {
    %c0_i32 = arith.constant 0 : i32
    %c0_i32_0 = arith.constant 0 : i32
    return %c0_i32, %arg1 : i32, i32
  }
  func.func @transform_3(%arg0: i32, %arg1: i32, %arg2: i32) -> (i32, i32) {
    %c0_i32 = arith.constant 0 : i32
    return %arg0, %arg1 : i32, i32
  }
}

</mosaic_0001>

<llo_original>
// kernel: rnn_forward.5
$region0: #{rnn_forward.5}
  #allocation0 [shape = 'u32[]', space=smem, size = 0x4, offset = 0x4, fixed_abs, tag = 'smem constant byte address 0x4 - core index']
  #allocation1 [shape = 'u32[144,128]{1,0:T(1,128)}', space=vmem, size = 0x12000, scoped, tag = 'internal scratch']
  #allocation2 [shape = 'f32[16,128]{1,0:T(8,128)}', space=vmem, size = 0x2000, scoped, tag = 'scratch operand']
  %s0 = inlined_call_operand.vmem [shape: f32[16,16], index: 0, kind: input, shape index: {}]
  %s1 = inlined_call_operand.vmem [shape: f32[16,128], index: 1, kind: input, shape index: {}]
  %s2 = inlined_call_operand.vmem [shape: f32[1,128], index: 2, kind: input, shape index: {}]
  %s3 = inlined_call_operand.vmem [shape: f32[16,128], index: 3, kind: output, shape index: {}]
  %s4 = sld [smem:[#allocation0]]
  $region30: #{rnn_forward.5} parent=0
    _
  %s6 = ssub.s32 1, %s4
  %s7 = scalar_select 0, %s6, %s4
  // Predicated region
  $region2: #{rnn_forward.5} parent=0 // pred_check
    _
  $region3: #{rnn_forward.5} parent=0 // pred_check_branch
    %9 = sbr.rel (0) target = $region5
  $region4: #{rnn_forward.5} parent=0 // pred_region
    _
  $region5: #{rnn_forward.5} parent=0 // pred_fallthru
    _
  // Predicated region
  $region6: #{rnn_forward.5} parent=0 // pred_check
    _
  $region7: #{rnn_forward.5} parent=0 // pred_check_branch
    %11 = sbr.rel (0) target = $region9
  $region8: #{rnn_forward.5} parent=0 // pred_region
    _
  $region9: #{rnn_forward.5} parent=0 // pred_fallthru
    _
  // Predicated region
  $region10: #{rnn_forward.5} parent=0 // pred_check
    _
  $region11: #{rnn_forward.5} parent=0 // pred_check_branch
    %13 = sbr.rel (0) target = $region13
  $region12: #{rnn_forward.5} parent=0 // pred_region
    _
  $region13: #{rnn_forward.5} parent=0 // pred_fallthru
    _
  %p14 = scmp.eq.s32.totalorder 0, 0
  // Predicated region
  $region14: #{rnn_forward.5} parent=0 // pred_check
    %p15 = pneg %p14
  $region15: #{rnn_forward.5} parent=0 // pred_check_branch
    %17 = sbr.rel (%p15) target = $region17
  $region16: #{rnn_forward.5} parent=0 // pred_region
    %18 = vst [vmem:[#allocation2] sm:$0xff] 0.0
    %19 = vst [vmem:[#allocation2 + $0x8] sm:$0xff] 0.0
  $region17: #{rnn_forward.5} parent=0 // pred_fallthru
    _
  %v20 = vld [vmem:[#allocation2] sm:$0xff]
  %v21 = vld [vmem:[#allocation2 + $0x8] sm:$0xff]
  %v22 = vld [vmem:[%s0] sm:$0xff]
  %v23 = vld [vmem:[%s0 + $0x8] sm:$0xff]
  %v24 = vld [vmem:[%s1] sm:$0xff]
  %v25 = vld [vmem:[%s1 + $0x8] sm:$0xff]
  %vm26 = vcmask 130048
  %v28 = vsel %vm26, %v22, 0
  %v31 = vsel %vm26, %v23, 0
  %33 = vmatprep.subr.mxu0 0.0
  %34 = vmatpush1.msra.mxu0 %v24
  %35 = vmatprep.subr.mxu0 0.0
  %36 = vmatpush1.msra.mxu0 %v25
  %37 = vmatprep.subr.mxu0 0.0
  %38 = vmatpush1.msra.mxu0 0.0
  %39 = vmatprep.subr.mxu0 0.0
  %40 = vmatpush1.msra.mxu0 0.0
  %41 = vmatprep.subr.mxu0 0.0
  %42 = vmatpush1.msra.mxu0 0.0
  %43 = vmatprep.subr.mxu0 0.0
  %44 = vmatpush1.msra.mxu0 0.0
  %45 = vmatprep.subr.mxu0 0.0
  %46 = vmatpush1.msra.mxu0 0.0
  %47 = vmatprep.subr.mxu0 0.0
  %48 = vmatpush1.msra.mxu0 0.0
  %49 = vmatprep.subr.mxu0 0.0
  %50 = vmatpush1.msra.mxu0 0.0
  %51 = vmatprep.subr.mxu0 0.0
  %52 = vmatpush1.msra.mxu0 0.0
  %53 = vmatprep.subr.mxu0 0.0
  %54 = vmatpush1.msra.mxu0 0.0
  %55 = vmatprep.subr.mxu0 0.0
  %56 = vmatpush1.msra.mxu0 0.0
  %57 = vmatprep.subr.mxu0 0.0
  %58 = vmatpush1.msra.mxu0 0.0
  %59 = vmatprep.subr.mxu0 0.0
  %60 = vmatpush1.msra.mxu0 0.0
  %61 = vmatprep.subr.mxu0 0.0
  %62 = vmatpush1.msra.mxu0 0.0
  %63 = vmatprep.subr.mxu0 0.0
  %64 = vmatpush1.msra.mxu0 0.0
  %65 = vmatprep.subr.mxu0 0.0
  %66 = vmatpush1.msra.mxu0 0.0
  %67 = vmatprep.subr.mxu0 0.0
  %68 = vmatpush1.msra.mxu0 0.0
  %69 = vmatprep.subr.mxu0 0.0
  %70 = vmatpush1.msra.mxu0 0.0
  %71 = vmatprep.subr.mxu0 0.0
  %72 = vmatpush1.msra.mxu0 0.0
  %73 = vmatprep.subr.mxu0 0.0
  %74 = vmatpush1.msra.mxu0 0.0
  %75 = vmatprep.subr.mxu0 0.0
  %76 = vmatpush1.msra.mxu0 0.0
  %77 = vmatprep.subr.mxu0 0.0
  %78 = vmatpush1.msra.mxu0 0.0
  %79 = vmatprep.subr.mxu0 0.0
  %80 = vmatpush1.msra.mxu0 0.0
  %81 = vmatprep.subr.mxu0 0.0
  %82 = vmatpush1.msra.mxu0 0.0
  %83 = vmatprep.subr.mxu0 0.0
  %84 = vmatpush1.msra.mxu0 0.0
  %85 = vmatprep.subr.mxu0 0.0
  %86 = vmatpush1.msra.mxu0 0.0
  %87 = vmatprep.subr.mxu0 0.0
  %88 = vmatpush1.msra.mxu0 0.0
  %89 = vmatprep.subr.mxu0 0.0
  %90 = vmatpush1.msra.mxu0 0.0
  %91 = vmatprep.subr.mxu0 0.0
  %92 = vmatpush1.msra.mxu0 0.0
  %93 = vmatprep.subr.mxu0 0.0
  %94 = vmatpush1.msra.mxu0 0.0
  %95 = vmatprep.subr.mxu0 0.0
  %96 = vmatpush1.msra.mxu0 0.0
  %97 = vmatprep.mubr.f32.mxu0 0.0
  %98 = vmatmul.mubr.f32.gmra.mrb[0].mxu0 %v28
  %v99 = vpop.f32.mrb[0].mxu0
  %v100 = vadd.f32 0.0, %v99
  %v101 = vpop.f32.mrb[0].mxu0
  %102 = vmatprep.mubr.f32.mxu0 0.0
  %103 = vmatmul.mubr.f32.gmra.mrb[0].mxu0 %v31
  %v104 = vpop.f32.mrb[0].mxu0
  %v105 = vadd.f32 0.0, %v104
  %v106 = vpop.f32.mrb[0].mxu0
  %107 = vdwg.mxu0
  %v108 = vadd.f32 %v20, %v100
  %v109 = vadd.f32 %v21, %v105
  %110 = vst [vmem:[#allocation2] sm:$0xff] %v108
  %111 = vst [vmem:[#allocation2 + $0x8] sm:$0xff] %v109
  // Predicated region
  $region18: #{rnn_forward.5} parent=0 // pred_check
    %p112 = pneg %p14
  $region19: #{rnn_forward.5} parent=0 // pred_check_branch
    %114 = sbr.rel (%p112) target = $region21
  $region20: #{rnn_forward.5} parent=0 // pred_region
    %v115 = vld [vmem:[#allocation2] sm:$0xff]
    %v116 = vld [vmem:[#allocation2 + $0x8] sm:$0xff]
    %v117 = vld [vmem:[%s2] sm:$0x1]
    %v119 = vlaneseq
    %v120 = vshrl.u32 %v119, 7
    %v121 = vsub.s32 0, %v120
    %v122 = vrot.slane %v117, %v121
    %v124 = vadd.f32 %v115, %v122
    %v125 = vadd.f32 %v116, %v122
    %126 = vst [vmem:[%s3] sm:$0xff] %v124
    %127 = vst [vmem:[%s3 + $0x8] sm:$0xff] %v125
  $region21: #{rnn_forward.5} parent=0 // pred_fallthru
    _
  // Predicated region
  $region22: #{rnn_forward.5} parent=0 // pred_check
    _
  $region23: #{rnn_forward.5} parent=0 // pred_check_branch
    %129 = sbr.rel (0) target = $region25
  $region24: #{rnn_forward.5} parent=0 // pred_region
    _
  $region25: #{rnn_forward.5} parent=0 // pred_fallthru
    _
  // Predicated region
  $region26: #{rnn_forward.5} parent=0 // pred_check
    _
  $region27: #{rnn_forward.5} parent=0 // pred_check_branch
    %131 = sbr.rel (0) target = $region29
  $region28: #{rnn_forward.5} parent=0 // pred_region
    _
  $region29: #{rnn_forward.5} parent=0 // pred_fallthru
    _

// kernel: rnn_forward.7
$region0: #{rnn_forward.7}
  #allocation0 [shape = 'u32[]', space=smem, size = 0x4, offset = 0x4, fixed_abs, tag = 'smem constant byte address 0x4 - core index']
  #allocation1 [shape = 'u32[144,128]{1,0:T(1,128)}', space=vmem, size = 0x12000, scoped, tag = 'internal scratch']
  #allocation2 [shape = 'f32[16,128]{1,0:T(8,128)}', space=vmem, size = 0x2000, scoped, tag = 'scratch operand']
  %s0 = inlined_call_operand.vmem [shape: f32[16,32], index: 0, kind: input, shape index: {}]
  %s1 = inlined_call_operand.vmem [shape: f32[32,128], index: 1, kind: input, shape index: {}]
  %s2 = inlined_call_operand.vmem [shape: f32[1,128], index: 2, kind: input, shape index: {}]
  %s3 = inlined_call_operand.vmem [shape: f32[16,128], index: 3, kind: output, shape index: {}]
  %s4 = sld [smem:[#allocation0]]
  $region30: #{rnn_forward.7} parent=0
    _
  %s6 = ssub.s32 1, %s4
  %s7 = scalar_select 0, %s6, %s4
  // Predicated region
  $region2: #{rnn_forward.7} parent=0 // pred_check
    _
  $region3: #{rnn_forward.7} parent=0 // pred_check_branch
    %9 = sbr.rel (0) target = $region5
  $region4: #{rnn_forward.7} parent=0 // pred_region
    _
  $region5: #{rnn_forward.7} parent=0 // pred_fallthru
    _
  // Predicated region
  $region6: #{rnn_forward.7} parent=0 // pred_check
    _
  $region7: #{rnn_forward.7} parent=0 // pred_check_branch
    %11 = sbr.rel (0) target = $region9
  $region8: #{rnn_forward.7} parent=0 // pred_region
    _
  $region9: #{rnn_forward.7} parent=0 // pred_fallthru
    _
  // Predicated region
  $region10: #{rnn_forward.7} parent=0 // pred_check
    _
  $region11: #{rnn_forward.7} parent=0 // pred_check_branch
    %13 = sbr.rel (0) target = $region13
  $region12: #{rnn_forward.7} parent=0 // pred_region
    _
  $region13: #{rnn_forward.7} parent=0 // pred_fallthru
    _
  %p14 = scmp.eq.s32.totalorder 0, 0
  // Predicated region
  $region14: #{rnn_forward.7} parent=0 // pred_check
    %p15 = pneg %p14
  $region15: #{rnn_forward.7} parent=0 // pred_check_branch
    %17 = sbr.rel (%p15) target = $region17
  $region16: #{rnn_forward.7} parent=0 // pred_region
    %18 = vst [vmem:[#allocation2] sm:$0xff] 0.0
    %19 = vst [vmem:[#allocation2 + $0x8] sm:$0xff] 0.0
  $region17: #{rnn_forward.7} parent=0 // pred_fallthru
    _
  %v20 = vld [vmem:[#allocation2] sm:$0xff]
  %v21 = vld [vmem:[#allocation2 + $0x8] sm:$0xff]
  %v22 = vld [vmem:[%s0] sm:$0xff]
  %v23 = vld [vmem:[%s0 + $0x8] sm:$0xff]
  %v24 = vld [vmem:[%s1] sm:$0xff]
  %v25 = vld [vmem:[%s1 + $0x8] sm:$0xff]
  %v26 = vld [vmem:[%s1 + $0x10] sm:$0xff]
  %v27 = vld [vmem:[%s1 + $0x18] sm:$0xff]
  %vm28 = vcmask 261120
  %v30 = vsel %vm28, %v22, 0
  %v33 = vsel %vm28, %v23, 0
  %35 = vmatprep.subr.mxu0 0.0
  %36 = vmatpush1.msra.mxu0 %v24
  %37 = vmatprep.subr.mxu0 0.0
  %38 = vmatpush1.msra.mxu0 %v25
  %39 = vmatprep.subr.mxu0 0.0
  %40 = vmatpush1.msra.mxu0 %v26
  %41 = vmatprep.subr.mxu0 0.0
  %42 = vmatpush1.msra.mxu0 %v27
  %43 = vmatprep.subr.mxu0 0.0
  %44 = vmatpush1.msra.mxu0 0.0
  %45 = vmatprep.subr.mxu0 0.0
  %46 = vmatpush1.msra.mxu0 0.0
  %47 = vmatprep.subr.mxu0 0.0
  %48 = vmatpush1.msra.mxu0 0.0
  %49 = vmatprep.subr.mxu0 0.0
  %50 = vmatpush1.msra.mxu0 0.0
  %51 = vmatprep.subr.mxu0 0.0
  %52 = vmatpush1.msra.mxu0 0.0
  %53 = vmatprep.subr.mxu0 0.0
  %54 = vmatpush1.msra.mxu0 0.0
  %55 = vmatprep.subr.mxu0 0.0
  %56 = vmatpush1.msra.mxu0 0.0
  %57 = vmatprep.subr.mxu0 0.0
  %58 = vmatpush1.msra.mxu0 0.0
  %59 = vmatprep.subr.mxu0 0.0
  %60 = vmatpush1.msra.mxu0 0.0
  %61 = vmatprep.subr.mxu0 0.0
  %62 = vmatpush1.msra.mxu0 0.0
  %63 = vmatprep.subr.mxu0 0.0
  %64 = vmatpush1.msra.mxu0 0.0
  %65 = vmatprep.subr.mxu0 0.0
  %66 = vmatpush1.msra.mxu0 0.0
  %67 = vmatprep.subr.mxu0 0.0
  %68 = vmatpush1.msra.mxu0 0.0
  %69 = vmatprep.subr.mxu0 0.0
  %70 = vmatpush1.msra.mxu0 0.0
  %71 = vmatprep.subr.mxu0 0.0
  %72 = vmatpush1.msra.mxu0 0.0
  %73 = vmatprep.subr.mxu0 0.0
  %74 = vmatpush1.msra.mxu0 0.0
  %75 = vmatprep.subr.mxu0 0.0
  %76 = vmatpush1.msra.mxu0 0.0
  %77 = vmatprep.subr.mxu0 0.0
  %78 = vmatpush1.msra.mxu0 0.0
  %79 = vmatprep.subr.mxu0 0.0
  %80 = vmatpush1.msra.mxu0 0.0
  %81 = vmatprep.subr.mxu0 0.0
  %82 = vmatpush1.msra.mxu0 0.0
  %83 = vmatprep.subr.mxu0 0.0
  %84 = vmatpush1.msra.mxu0 0.0
  %85 = vmatprep.subr.mxu0 0.0
  %86 = vmatpush1.msra.mxu0 0.0
  %87 = vmatprep.subr.mxu0 0.0
  %88 = vmatpush1.msra.mxu0 0.0
  %89 = vmatprep.subr.mxu0 0.0
  %90 = vmatpush1.msra.mxu0 0.0
  %91 = vmatprep.subr.mxu0 0.0
  %92 = vmatpush1.msra.mxu0 0.0
  %93 = vmatprep.subr.mxu0 0.0
  %94 = vmatpush1.msra.mxu0 0.0
  %95 = vmatprep.subr.mxu0 0.0
  %96 = vmatpush1.msra.mxu0 0.0
  %97 = vmatprep.subr.mxu0 0.0
  %98 = vmatpush1.msra.mxu0 0.0
  %99 = vmatprep.mubr.f32.mxu0 0.0
  %100 = vmatmul.mubr.f32.gmra.mrb[0].mxu0 %v30
  %v101 = vpop.f32.mrb[0].mxu0
  %v102 = vadd.f32 0.0, %v101
  %v103 = vpop.f32.mrb[0].mxu0
  %104 = vmatprep.mubr.f32.mxu0 0.0
  %105 = vmatmul.mubr.f32.gmra.mrb[0].mxu0 %v33
  %v106 = vpop.f32.mrb[0].mxu0
  %v107 = vadd.f32 0.0, %v106
  %v108 = vpop.f32.mrb[0].mxu0
  %109 = vdwg.mxu0
  %v110 = vadd.f32 %v20, %v102
  %v111 = vadd.f32 %v21, %v107
  %112 = vst [vmem:[#allocation2] sm:$0xff] %v110
  %113 = vst [vmem:[#allocation2 + $0x8] sm:$0xff] %v111
  // Predicated region
  $region18: #{rnn_forward.7} parent=0 // pred_check
    %p114 = pneg %p14
  $region19: #{rnn_forward.7} parent=0 // pred_check_branch
    %116 = sbr.rel (%p114) target = $region21
  $region20: #{rnn_forward.7} parent=0 // pred_region
    %v117 = vld [vmem:[#allocation2] sm:$0xff]
    %v118 = vld [vmem:[#allocation2 + $0x8] sm:$0xff]
    %v119 = vld [vmem:[%s2] sm:$0x1]
    %v121 = vlaneseq
    %v122 = vshrl.u32 %v121, 7
    %v123 = vsub.s32 0, %v122
    %v124 = vrot.slane %v119, %v123
    %v126 = vadd.f32 %v117, %v124
    %v127 = vadd.f32 %v118, %v124
    %128 = vst [vmem:[%s3] sm:$0xff] %v126
    %129 = vst [vmem:[%s3 + $0x8] sm:$0xff] %v127
  $region21: #{rnn_forward.7} parent=0 // pred_fallthru
    _
  // Predicated region
  $region22: #{rnn_forward.7} parent=0 // pred_check
    _
  $region23: #{rnn_forward.7} parent=0 // pred_check_branch
    %131 = sbr.rel (0) target = $region25
  $region24: #{rnn_forward.7} parent=0 // pred_region
    _
  $region25: #{rnn_forward.7} parent=0 // pred_fallthru
    _
  // Predicated region
  $region26: #{rnn_forward.7} parent=0 // pred_check
    _
  $region27: #{rnn_forward.7} parent=0 // pred_check_branch
    %133 = sbr.rel (0) target = $region29
  $region28: #{rnn_forward.7} parent=0 // pred_region
    _
  $region29: #{rnn_forward.7} parent=0 // pred_fallthru
    _

// kernel: rnn_forward.9
$region0: #{rnn_forward.9}
  #allocation0 [shape = 'u32[]', space=smem, size = 0x4, offset = 0x4, fixed_abs, tag = 'smem constant byte address 0x4 - core index']
  #allocation1 [shape = 'u32[144,128]{1,0:T(1,128)}', space=vmem, size = 0x12000, scoped, tag = 'internal scratch']
  #allocation2 [shape = 'f32[16,32]{1,0:T(8,128)}', space=vmem, size = 0x2000, scoped, tag = 'scratch operand']
  %s0 = inlined_call_operand.vmem [shape: f32[16,32], index: 0, kind: input, shape index: {}]
  %s1 = inlined_call_operand.vmem [shape: f32[32,32], index: 1, kind: input, shape index: {}]
  %s2 = inlined_call_operand.vmem [shape: f32[1,32], index: 2, kind: input, shape index: {}]
  %s3 = inlined_call_operand.hbm [shape: f32[16,32], index: 3, kind: output, shape index: {}]
  %s4 = sld [smem:[#allocation0]]
  $region30: #{rnn_forward.9} parent=0
    _
  %s6 = ssub.s32 1, %s4
  %s7 = scalar_select 0, %s6, %s4
  $region1: #{rnn_forward.9} parent=0
    #allocation3 [shape = 'u8[8192]{0}', space=vmem, size = 0x2000, scoped, tag = 'output window, operand 0, single buffered']
    #allocation4 [shape = 's32[1]{0}', space=sflag, size = 0x4, scoped, tag = 'scoped memory for rnn_forward.9']
    %8 = vsyncpa [#allocation4], 0
    // Predicated region
    $region2: #{rnn_forward.9} parent=1 // pred_check
      _
    $region3: #{rnn_forward.9} parent=1 // pred_check_branch
      %10 = sbr.rel (0) target = $region5
    $region4: #{rnn_forward.9} parent=1 // pred_region
      _
    $region5: #{rnn_forward.9} parent=1 // pred_fallthru
      _
    // Predicated region
    $region6: #{rnn_forward.9} parent=1 // pred_check
      _
    $region7: #{rnn_forward.9} parent=1 // pred_check_branch
      %12 = sbr.rel (0) target = $region9
    $region8: #{rnn_forward.9} parent=1 // pred_region
      _
    $region9: #{rnn_forward.9} parent=1 // pred_fallthru
      _
    // Predicated region
    $region10: #{rnn_forward.9} parent=1 // pred_check
      _
    $region11: #{rnn_forward.9} parent=1 // pred_check_branch
      %14 = sbr.rel (0) target = $region13
    $region12: #{rnn_forward.9} parent=1 // pred_region
      _
    $region13: #{rnn_forward.9} parent=1 // pred_fallthru
      _
    %p15 = scmp.eq.s32.totalorder 0, 0
    // Predicated region
    $region14: #{rnn_forward.9} parent=1 // pred_check
      %p16 = pneg %p15
    $region15: #{rnn_forward.9} parent=1 // pred_check_branch
      %18 = sbr.rel (%p16) target = $region17
    $region16: #{rnn_forward.9} parent=1 // pred_region
      %vm19 = vcmask 261120
      %20 = vst.msk [vmem:[#allocation2] sm:$0xff] %vm19, 0.0
      %21 = vst.msk [vmem:[#allocation2 + $0x8] sm:$0xff] %vm19, 0.0
    $region17: #{rnn_forward.9} parent=1 // pred_fallthru
      _
    %v22 = vld [vmem:[#allocation2] sm:$0xff]
    %v23 = vld [vmem:[#allocation2 + $0x8] sm:$0xff]
    %v24 = vld [vmem:[%s0] sm:$0xff]
    %v25 = vld [vmem:[%s0 + $0x8] sm:$0xff]
    %v26 = vld [vmem:[%s1] sm:$0xff]
    %v27 = vld [vmem:[%s1 + $0x8] sm:$0xff]
    %v28 = vld [vmem:[%s1 + $0x10] sm:$0xff]
    %v29 = vld [vmem:[%s1 + $0x18] sm:$0xff]
    %vm30 = vcmask 261120
    %v32 = vsel %vm30, %v24, 0
    %v35 = vsel %vm30, %v25, 0
    %37 = vmatprep.subr.mxu0 0.0
    %38 = vmatpush1.msra.mxu0 %v26
    %39 = vmatprep.subr.mxu0 0.0
    %40 = vmatpush1.msra.mxu0 %v27
    %41 = vmatprep.subr.mxu0 0.0
    %42 = vmatpush1.msra.mxu0 %v28
    %43 = vmatprep.subr.mxu0 0.0
    %44 = vmatpush1.msra.mxu0 %v29
    %45 = vmatprep.subr.mxu0 0.0
    %46 = vmatpush1.msra.mxu0 0.0
    %47 = vmatprep.subr.mxu0 0.0
    %48 = vmatpush1.msra.mxu0 0.0
    %49 = vmatprep.subr.mxu0 0.0
    %50 = vmatpush1.msra.mxu0 0.0
    %51 = vmatprep.subr.mxu0 0.0
    %52 = vmatpush1.msra.mxu0 0.0
    %53 = vmatprep.subr.mxu0 0.0
    %54 = vmatpush1.msra.mxu0 0.0
    %55 = vmatprep.subr.mxu0 0.0
    %56 = vmatpush1.msra.mxu0 0.0
    %57 = vmatprep.subr.mxu0 0.0
    %58 = vmatpush1.msra.mxu0 0.0
    %59 = vmatprep.subr.mxu0 0.0
    %60 = vmatpush1.msra.mxu0 0.0
    %61 = vmatprep.subr.mxu0 0.0
    %62 = vmatpush1.msra.mxu0 0.0
    %63 = vmatprep.subr.mxu0 0.0
    %64 = vmatpush1.msra.mxu0 0.0
    %65 = vmatprep.subr.mxu0 0.0
    %66 = vmatpush1.msra.mxu0 0.0
    %67 = vmatprep.subr.mxu0 0.0
    %68 = vmatpush1.msra.mxu0 0.0
    %69 = vmatprep.subr.mxu0 0.0
    %70 = vmatpush1.msra.mxu0 0.0
    %71 = vmatprep.subr.mxu0 0.0
    %72 = vmatpush1.msra.mxu0 0.0
    %73 = vmatprep.subr.mxu0 0.0
    %74 = vmatpush1.msra.mxu0 0.0
    %75 = vmatprep.subr.mxu0 0.0
    %76 = vmatpush1.msra.mxu0 0.0
    %77 = vmatprep.subr.mxu0 0.0
    %78 = vmatpush1.msra.mxu0 0.0
    %79 = vmatprep.subr.mxu0 0.0
    %80 = vmatpush1.msra.mxu0 0.0
    %81 = vmatprep.subr.mxu0 0.0
    %82 = vmatpush1.msra.mxu0 0.0
    %83 = vmatprep.subr.mxu0 0.0
    %84 = vmatpush1.msra.mxu0 0.0
    %85 = vmatprep.subr.mxu0 0.0
    %86 = vmatpush1.msra.mxu0 0.0
    %87 = vmatprep.subr.mxu0 0.0
    %88 = vmatpush1.msra.mxu0 0.0
    %89 = vmatprep.subr.mxu0 0.0
    %90 = vmatpush1.msra.mxu0 0.0
    %91 = vmatprep.subr.mxu0 0.0
    %92 = vmatpush1.msra.mxu0 0.0
    %93 = vmatprep.subr.mxu0 0.0
    %94 = vmatpush1.msra.mxu0 0.0
    %95 = vmatprep.subr.mxu0 0.0
    %96 = vmatpush1.msra.mxu0 0.0
    %97 = vmatprep.subr.mxu0 0.0
    %98 = vmatpush1.msra.mxu0 0.0
    %99 = vmatprep.subr.mxu0 0.0
    %100 = vmatpush1.msra.mxu0 0.0
    %101 = vmatprep.mubr.f32.mxu0 0.0
    %102 = vmatmul.mubr.f32.gmra.mrb[0].mxu0 %v32
    %v103 = vpop.f32.mrb[0].mxu0
    %v104 = vadd.f32 0.0, %v103
    %v105 = vpop.f32.mrb[0].mxu0
    %106 = vmatprep.mubr.f32.mxu0 0.0
    %107 = vmatmul.mubr.f32.gmra.mrb[0].mxu0 %v35
    %v108 = vpop.f32.mrb[0].mxu0
    %v109 = vadd.f32 0.0, %v108
    %v110 = vpop.f32.mrb[0].mxu0
    %111 = vdwg.mxu0
    %v112 = vadd.f32 %v22, %v104
    %v113 = vadd.f32 %v23, %v109
    %114 = vst.msk [vmem:[#allocation2] sm:$0xff] %vm30, %v112
    %115 = vst.msk [vmem:[#allocation2 + $0x8] sm:$0xff] %vm30, %v113
    // Predicated region
    $region18: #{rnn_forward.9} parent=1 // pred_check
      %p116 = pneg %p15
    $region19: #{rnn_forward.9} parent=1 // pred_check_branch
      %118 = sbr.rel (%p116) target = $region21
    $region20: #{rnn_forward.9} parent=1 // pred_region
      %v119 = vld [vmem:[#allocation2] sm:$0xff]
      %v120 = vld [vmem:[#allocation2 + $0x8] sm:$0xff]
      %v121 = vld [vmem:[%s2] sm:$0x1]
      %v123 = vlaneseq
      %v124 = vshrl.u32 %v123, 7
      %v125 = vsub.s32 0, %v124
      %v126 = vrot.slane %v121, %v125
      %v128 = vadd.f32 %v119, %v126
      %v129 = vadd.f32 %v120, %v126
      %130 = vst.msk [vmem:[#allocation3] sm:$0xff] %vm30, %v128
      %131 = vst.msk [vmem:[#allocation3 + $0x8] sm:$0xff] %vm30, %v129
    $region21: #{rnn_forward.9} parent=1 // pred_fallthru
      _
    // Predicated region
    $region22: #{rnn_forward.9} parent=1 // pred_check
      _
    $region23: #{rnn_forward.9} parent=1 // pred_check_branch
      %133 = sbr.rel (0) target = $region25
    $region24: #{rnn_forward.9} parent=1 // pred_region
      %s135 = ssub.s32 256, 256
      %136 = vsyncadd [#allocation4], %s135
      %s137 = sshll.u32 [#allocation3], 4
      %s138 = int_to_ptr.vmem [resolvable:$true] %s137
      %143 = dma.vmem_to_hbm [thread:$0]  %s138, 256, %s3, [#allocation4], 128, 128, 8
    $region25: #{rnn_forward.9} parent=1 // pred_fallthru
      _
    // Predicated region
    $region26: #{rnn_forward.9} parent=1 // pred_check
      _
    $region27: #{rnn_forward.9} parent=1 // pred_check_branch
      %145 = sbr.rel (0) target = $region29
    $region28: #{rnn_forward.9} parent=1 // pred_region
      %146 = dma.done [#allocation4], 256
    $region29: #{rnn_forward.9} parent=1 // pred_fallthru
      _
    %147 = vsyncpa [#allocation4], 1

// kernel: rnn_forward.6
$region0: #{rnn_forward.6}
  #allocation0 [shape = 'u32[]', space=smem, size = 0x4, offset = 0x4, fixed_abs, tag = 'smem constant byte address 0x4 - core index']
  #allocation1 [shape = 'u32[144,128]{1,0:T(1,128)}', space=vmem, size = 0x12000, scoped, tag = 'internal scratch']
  #allocation2 [shape = 'f32[8,32]{1,0:T(8,128)}', space=vmem, size = 0x1000, scoped, tag = 'scratch operand']
  #allocation3 [shape = 'f32[8,32]{1,0:T(8,128)}', space=vmem, size = 0x1000, scoped, tag = 'scratch operand']
  %s0 = inlined_call_operand.vmem [shape: f32[8,8,128], index: 0, kind: input, shape index: {}]
  %s1 = inlined_call_operand.vmem [shape: f32[32,128], index: 1, kind: input, shape index: {}]
  %s2 = inlined_call_operand.vmem [shape: f32[8,32], index: 2, kind: input, shape index: {}, may-alias: {2,3}]
  %s3 = inlined_call_operand.vmem [shape: f32[8,32], index: 3, kind: input, shape index: {}, may-alias: {2,3}]
  %s4 = inlined_call_operand.vmem [shape: f32[8,8,32], index: 4, kind: output, shape index: {0}]
  %s5 = inlined_call_operand.vmem [shape: f32[8,32], index: 5, kind: output, shape index: {1}]
  %s6 = inlined_call_operand.vmem [shape: f32[8,32], index: 6, kind: output, shape index: {2}]
  %7 = xla_tuple %s4, %s5, %s6
  %s8 = sld [smem:[#allocation0]]
  $region50: #{rnn_forward.6} parent=0
    _
  %s10 = ssub.s32 1, %s8
  %s11 = scalar_select 0, %s10, %s8
  // Predicated region
  $region2: #{rnn_forward.6} parent=0 // pred_check
    _
  $region3: #{rnn_forward.6} parent=0 // pred_check_branch
    %13 = sbr.rel (0) target = $region5
  $region4: #{rnn_forward.6} parent=0 // pred_region
    _
  $region5: #{rnn_forward.6} parent=0 // pred_fallthru
    _
  // Predicated region
  $region6: #{rnn_forward.6} parent=0 // pred_check
    _
  $region7: #{rnn_forward.6} parent=0 // pred_check_branch
    %15 = sbr.rel (0) target = $region9
  $region8: #{rnn_forward.6} parent=0 // pred_region
    _
  $region9: #{rnn_forward.6} parent=0 // pred_fallthru
    _
  // Predicated region
  $region10: #{rnn_forward.6} parent=0 // pred_check
    _
  $region11: #{rnn_forward.6} parent=0 // pred_check_branch
    %17 = sbr.rel (0) target = $region13
  $region12: #{rnn_forward.6} parent=0 // pred_region
    _
  $region13: #{rnn_forward.6} parent=0 // pred_fallthru
    _
  // Predicated region
  $region14: #{rnn_forward.6} parent=0 // pred_check
    _
  $region15: #{rnn_forward.6} parent=0 // pred_check_branch
    %19 = sbr.rel (0) target = $region17
  $region16: #{rnn_forward.6} parent=0 // pred_region
    _
  $region17: #{rnn_forward.6} parent=0 // pred_fallthru
    _
  %p20 = scmp.eq.s32.totalorder 0, 0
  // Predicated region
  $region18: #{rnn_forward.6} parent=0 // pred_check
    %p21 = pneg %p20
  $region19: #{rnn_forward.6} parent=0 // pred_check_branch
    %23 = sbr.rel (%p21) target = $region21
  $region20: #{rnn_forward.6} parent=0 // pred_region
    %v24 = vld [vmem:[%s2] sm:$0xff]
    %vm25 = vcmask 261120
    %26 = vst.msk [vmem:[#allocation2] sm:$0xff] %vm25, %v24
    %v27 = vld [vmem:[%s3] sm:$0xff]
    %28 = vst.msk [vmem:[#allocation3] sm:$0xff] %vm25, %v27
  $region21: #{rnn_forward.6} parent=0 // pred_fallthru
    _
  %v29 = vld [vmem:[%s1] sm:$0xff]
  %v30 = vld [vmem:[%s1 + $0x8] sm:$0xff]
  %v31 = vld [vmem:[%s1 + $0x10] sm:$0xff]
  %v32 = vld [vmem:[%s1 + $0x18] sm:$0xff]
  %v33 = vld [vmem:[%s0] sm:$0xff]
  %v34 = vld [vmem:[%s0 + $0x8] sm:$0xff]
  %v35 = vld [vmem:[%s0 + $0x10] sm:$0xff]
  %v36 = vld [vmem:[%s0 + $0x18] sm:$0xff]
  %v37 = vld [vmem:[%s0 + $0x20] sm:$0xff]
  %v38 = vld [vmem:[%s0 + $0x28] sm:$0xff]
  %v39 = vld [vmem:[%s0 + $0x30] sm:$0xff]
  %v40 = vld [vmem:[%s0 + $0x38] sm:$0xff]
  %v41 = vld [vmem:[#allocation2] sm:$0xff]
  %v42 = vld [vmem:[#allocation3] sm:$0xff]
  %vm43 = vcmask 261120
  %v45 = vsel %vm43, %v41, 0
  %47 = vmatprep.subr.mxu0 0.0
  %48 = vmatpush1.msra.mxu0 %v29
  %49 = vmatprep.subr.mxu0 0.0
  %50 = vmatpush1.msra.mxu0 %v30
  %51 = vmatprep.subr.mxu0 0.0
  %52 = vmatpush1.msra.mxu0 %v31
  %53 = vmatprep.subr.mxu0 0.0
  %54 = vmatpush1.msra.mxu0 %v32
  %55 = vmatprep.subr.mxu0 0.0
  %56 = vmatpush1.msra.mxu0 0.0
  %57 = vmatprep.subr.mxu0 0.0
  %58 = vmatpush1.msra.mxu0 0.0
  %59 = vmatprep.subr.mxu0 0.0
  %60 = vmatpush1.msra.mxu0 0.0
  %61 = vmatprep.subr.mxu0 0.0
  %62 = vmatpush1.msra.mxu0 0.0
  %63 = vmatprep.subr.mxu0 0.0
  %64 = vmatpush1.msra.mxu0 0.0
  %65 = vmatprep.subr.mxu0 0.0
  %66 = vmatpush1.msra.mxu0 0.0
  %67 = vmatprep.subr.mxu0 0.0
  %68 = vmatpush1.msra.mxu0 0.0
  %69 = vmatprep.subr.mxu0 0.0
  %70 = vmatpush1.msra.mxu0 0.0
  %71 = vmatprep.subr.mxu0 0.0
  %72 = vmatpush1.msra.mxu0 0.0
  %73 = vmatprep.subr.mxu0 0.0
  %74 = vmatpush1.msra.mxu0 0.0
  %75 = vmatprep.subr.mxu0 0.0
  %76 = vmatpush1.msra.mxu0 0.0
  %77 = vmatprep.subr.mxu0 0.0
  %78 = vmatpush1.msra.mxu0 0.0
  %79 = vmatprep.subr.mxu0 0.0
  %80 = vmatpush1.msra.mxu0 0.0
  %81 = vmatprep.subr.mxu0 0.0
  %82 = vmatpush1.msra.mxu0 0.0
  %83 = vmatprep.subr.mxu0 0.0
  %84 = vmatpush1.msra.mxu0 0.0
  %85 = vmatprep.subr.mxu0 0.0
  %86 = vmatpush1.msra.mxu0 0.0
  %87 = vmatprep.subr.mxu0 0.0
  %88 = vmatpush1.msra.mxu0 0.0
  %89 = vmatprep.subr.mxu0 0.0
  %90 = vmatpush1.msra.mxu0 0.0
  %91 = vmatprep.subr.mxu0 0.0
  %92 = vmatpush1.msra.mxu0 0.0
  %93 = vmatprep.subr.mxu0 0.0
  %94 = vmatpush1.msra.mxu0 0.0
  %95 = vmatprep.subr.mxu0 0.0
  %96 = vmatpush1.msra.mxu0 0.0
  %97 = vmatprep.subr.mxu0 0.0
  %98 = vmatpush1.msra.mxu0 0.0
  %99 = vmatprep.subr.mxu0 0.0
  %100 = vmatpush1.msra.mxu0 0.0
  %101 = vmatprep.subr.mxu0 0.0
  %102 = vmatpush1.msra.mxu0 0.0
  %103 = vmatprep.subr.mxu0 0.0
  %104 = vmatpush1.msra.mxu0 0.0
  %105 = vmatprep.subr.mxu0 0.0
  %106 = vmatpush1.msra.mxu0 0.0
  %107 = vmatprep.subr.mxu0 0.0
  %108 = vmatpush1.msra.mxu0 0.0
  %109 = vmatprep.subr.mxu0 0.0
  %110 = vmatpush1.msra.mxu0 0.0
  %111 = vmatprep.mubr.f32.mxu0 0.0
  %112 = vmatmul.mubr.f32.gmra.mrb[0].mxu0 %v45
  %v113 = vpop.f32.mrb[0].mxu0
  %v114 = vadd.f32 0.0, %v113
  %v115 = vpop.f32.mrb[0].mxu0
  %116 = vdwg.mxu0
  %v118 = vrot.slane %v114, 1
  %v119 = vrot.slane %v114, 2
  %v120 = vrot.slane %v114, 3
  %v121 = vrot.slane %v114, 4
  %v122 = vrot.slane %v114, 5
  %v123 = vrot.slane %v114, 6
  %v124 = vrot.slane %v114, 7
  %v133 = vadd.f32 %v33, %v114
  %v134 = vadd.f32 %v34, %v118
  %v135 = vadd.f32 %v35, %v119
  %v136 = vadd.f32 %v36, %v120
  %v137 = vadd.f32 %v37, %v121
  %v138 = vadd.f32 %v38, %v122
  %v139 = vadd.f32 %v39, %v123
  %v140 = vadd.f32 %v40, %v124
  %v141 = vxor.u32 %v133, 2147483648
  %v142 = vxor.u32 %v134, 2147483648
  %v143 = vxor.u32 %v135, 2147483648
  %v144 = vxor.u32 %v136, 2147483648
  %v145 = vxor.u32 %v137, 2147483648
  %v146 = vxor.u32 %v138, 2147483648
  %v147 = vxor.u32 %v139, 2147483648
  %v148 = vxor.u32 %v140, 2147483648
  %v149 = vmul.f32 %v141, 1.442695
  %v150 = vpow.pop %v149
  %v151 = vmul.f32 %v142, 1.442695
  %v152 = vpow.pop %v151
  %v153 = vmul.f32 %v143, 1.442695
  %v154 = vpow.pop %v153
  %v155 = vmul.f32 %v144, 1.442695
  %v156 = vpow.pop %v155
  %v157 = vmul.f32 %v145, 1.442695
  %v158 = vpow.pop %v157
  %v159 = vmul.f32 %v146, 1.442695
  %v160 = vpow.pop %v159
  %v161 = vmul.f32 %v147, 1.442695
  %v162 = vpow.pop %v161
  %v163 = vmul.f32 %v148, 1.442695
  %v164 = vpow.pop %v163
  %v165 = vadd.f32 %v150, 1.0
  %v166 = vadd.f32 %v152, 1.0
  %v167 = vadd.f32 %v154, 1.0
  %v168 = vadd.f32 %v156, 1.0
  %v169 = vadd.f32 %v158, 1.0
  %v170 = vadd.f32 %v160, 1.0
  %v171 = vadd.f32 %v162, 1.0
  %v172 = vadd.f32 %v164, 1.0
  %v173 = vrcp.pop %v165
  %v174 = vmul.f32 1.0, %v173
  %v175 = vrcp.pop %v166
  %v176 = vmul.f32 1.0, %v175
  %v177 = vrcp.pop %v167
  %v178 = vmul.f32 1.0, %v177
  %v179 = vrcp.pop %v168
  %v180 = vmul.f32 1.0, %v179
  %v181 = vrcp.pop %v169
  %v182 = vmul.f32 1.0, %v181
  %v183 = vrcp.pop %v170
  %v184 = vmul.f32 1.0, %v183
  %v185 = vrcp.pop %v171
  %v186 = vmul.f32 1.0, %v185
  %v187 = vrcp.pop %v172
  %v188 = vmul.f32 1.0, %v187
  %v189 = vtanh.pop %v133
  %v190 = vtanh.pop %v134
  %v191 = vtanh.pop %v135
  %v192 = vtanh.pop %v136
  %v193 = vtanh.pop %v137
  %v194 = vtanh.pop %v138
  %v195 = vtanh.pop %v139
  %v196 = vtanh.pop %v140
  %v198 = vrot.slane %v42, 1
  %v199 = vrot.slane %v42, 2
  %v200 = vrot.slane %v42, 3
  %v201 = vrot.slane %v42, 4
  %v202 = vrot.slane %v42, 5
  %v203 = vrot.slane %v42, 6
  %v204 = vrot.slane %v42, 7
  %205 = vrot.lane.b32.xlu0 %v42, 32
  %v206 = vpop.permute.xlu0 %205
  %207 = vrot.lane.b32.xlu0 %v198, 32
  %v208 = vpop.permute.xlu0 %207
  %209 = vrot.lane.b32.xlu0 %v199, 32
  %v210 = vpop.permute.xlu0 %209
  %211 = vrot.lane.b32.xlu0 %v200, 32
  %v212 = vpop.permute.xlu0 %211
  %213 = vrot.lane.b32.xlu0 %v201, 32
  %v214 = vpop.permute.xlu0 %213
  %215 = vrot.lane.b32.xlu0 %v202, 32
  %v216 = vpop.permute.xlu0 %215
  %217 = vrot.lane.b32.xlu0 %v203, 32
  %v218 = vpop.permute.xlu0 %217
  %219 = vrot.lane.b32.xlu0 %v204, 32
  %v220 = vpop.permute.xlu0 %219
  %v229 = vmul.f32 %v174, %v206
  %v230 = vmul.f32 %v176, %v208
  %v231 = vmul.f32 %v178, %v210
  %v232 = vmul.f32 %v180, %v212
  %v233 = vmul.f32 %v182, %v214
  %v234 = vmul.f32 %v184, %v216
  %v235 = vmul.f32 %v186, %v218
  %v236 = vmul.f32 %v188, %v220
  %245 = vrot.lane.b32.xlu0 %v189, 64
  %v246 = vpop.permute.xlu0 %245
  %247 = vrot.lane.b32.xlu0 %v190, 64
  %v248 = vpop.permute.xlu0 %247
  %249 = vrot.lane.b32.xlu0 %v191, 64
  %v250 = vpop.permute.xlu0 %249
  %251 = vrot.lane.b32.xlu0 %v192, 64
  %v252 = vpop.permute.xlu0 %251
  %253 = vrot.lane.b32.xlu0 %v193, 64
  %v254 = vpop.permute.xlu0 %253
  %255 = vrot.lane.b32.xlu0 %v194, 64
  %v256 = vpop.permute.xlu0 %255
  %257 = vrot.lane.b32.xlu0 %v195, 64
  %v258 = vpop.permute.xlu0 %257
  %259 = vrot.lane.b32.xlu0 %v196, 64
  %v260 = vpop.permute.xlu0 %259
  %v269 = vmul.f32 %v174, %v246
  %v270 = vmul.f32 %v176, %v248
  %v271 = vmul.f32 %v178, %v250
  %v272 = vmul.f32 %v180, %v252
  %v273 = vmul.f32 %v182, %v254
  %v274 = vmul.f32 %v184, %v256
  %v275 = vmul.f32 %v186, %v258
  %v276 = vmul.f32 %v188, %v260
  %285 = vrot.lane.b32.xlu0 %v269, 32
  %v286 = vpop.permute.xlu0 %285
  %287 = vrot.lane.b32.xlu0 %v270, 32
  %v288 = vpop.permute.xlu0 %287
  %289 = vrot.lane.b32.xlu0 %v271, 32
  %v290 = vpop.permute.xlu0 %289
  %291 = vrot.lane.b32.xlu0 %v272, 32
  %v292 = vpop.permute.xlu0 %291
  %293 = vrot.lane.b32.xlu0 %v273, 32
  %v294 = vpop.permute.xlu0 %293
  %295 = vrot.lane.b32.xlu0 %v274, 32
  %v296 = vpop.permute.xlu0 %295
  %297 = vrot.lane.b32.xlu0 %v275, 32
  %v298 = vpop.permute.xlu0 %297
  %299 = vrot.lane.b32.xlu0 %v276, 32
  %v300 = vpop.permute.xlu0 %299
  %v309 = vadd.f32 %v229, %v286
  %v310 = vadd.f32 %v230, %v288
  %v311 = vadd.f32 %v231, %v290
  %v312 = vadd.f32 %v232, %v292
  %v313 = vadd.f32 %v233, %v294
  %v314 = vadd.f32 %v234, %v296
  %v315 = vadd.f32 %v235, %v298
  %v316 = vadd.f32 %v236, %v300
  %v317 = vtanh.pop %v309
  %v318 = vtanh.pop %v310
  %v319 = vtanh.pop %v311
  %v320 = vtanh.pop %v312
  %v321 = vtanh.pop %v313
  %v322 = vtanh.pop %v314
  %v323 = vtanh.pop %v315
  %v324 = vtanh.pop %v316
  %333 = vrot.lane.b32.xlu0 %v317, 64
  %v334 = vpop.permute.xlu0 %333
  %335 = vrot.lane.b32.xlu0 %v318, 64
  %v336 = vpop.permute.xlu0 %335
  %337 = vrot.lane.b32.xlu0 %v319, 64
  %v338 = vpop.permute.xlu0 %337
  %339 = vrot.lane.b32.xlu0 %v320, 64
  %v340 = vpop.permute.xlu0 %339
  %341 = vrot.lane.b32.xlu0 %v321, 64
  %v342 = vpop.permute.xlu0 %341
  %343 = vrot.lane.b32.xlu0 %v322, 64
  %v344 = vpop.permute.xlu0 %343
  %345 = vrot.lane.b32.xlu0 %v323, 64
  %v346 = vpop.permute.xlu0 %345
  %347 = vrot.lane.b32.xlu0 %v324, 64
  %v348 = vpop.permute.xlu0 %347
  %v357 = vmul.f32 %v174, %v334
  %v358 = vmul.f32 %v176, %v336
  %v359 = vmul.f32 %v178, %v338
  %v360 = vmul.f32 %v180, %v340
  %v361 = vmul.f32 %v182, %v342
  %v362 = vmul.f32 %v184, %v344
  %v363 = vmul.f32 %v186, %v346
  %v364 = vmul.f32 %v188, %v348
  %373 = vrot.lane.b32.xlu0 %v357, 32
  %v374 = vpop.permute.xlu0 %373
  %375 = vrot.lane.b32.xlu0 %v358, 32
  %v376 = vpop.permute.xlu0 %375
  %377 = vrot.lane.b32.xlu0 %v359, 32
  %v378 = vpop.permute.xlu0 %377
  %379 = vrot.lane.b32.xlu0 %v360, 32
  %v380 = vpop.permute.xlu0 %379
  %381 = vrot.lane.b32.xlu0 %v361, 32
  %v382 = vpop.permute.xlu0 %381
  %383 = vrot.lane.b32.xlu0 %v362, 32
  %v384 = vpop.permute.xlu0 %383
  %385 = vrot.lane.b32.xlu0 %v363, 32
  %v386 = vpop.permute.xlu0 %385
  %387 = vrot.lane.b32.xlu0 %v364, 32
  %v388 = vpop.permute.xlu0 %387
  %vm397 = vcmask 253952
  %398 = vst.msk [vmem:[%s4] sm:$0x1] %vm397, %v374
  %399 = vst.msk [vmem:[%s4 + $0x8] sm:$0x1] %vm397, %v376
  %400 = vst.msk [vmem:[%s4 + $0x10] sm:$0x1] %vm397, %v378
  %401 = vst.msk [vmem:[%s4 + $0x18] sm:$0x1] %vm397, %v380
  %402 = vst.msk [vmem:[%s4 + $0x20] sm:$0x1] %vm397, %v382
  %403 = vst.msk [vmem:[%s4 + $0x28] sm:$0x1] %vm397, %v384
  %404 = vst.msk [vmem:[%s4 + $0x30] sm:$0x1] %vm397, %v386
  %405 = vst.msk [vmem:[%s4 + $0x38] sm:$0x1] %vm397, %v388
  %v406 = vrot.slane %v358, 7
  %vm407 = vcmask 1041409
  %v408 = vsel %vm407, %v406, %v357
  %v409 = vrot.slane %v359, 6
  %vm410 = vcmask 1042434
  %v411 = vsel %vm410, %v409, %v408
  %v412 = vrot.slane %v360, 5
  %vm413 = vcmask 1043459
  %v414 = vsel %vm413, %v412, %v411
  %v415 = vrot.slane %v361, 4
  %vm416 = vcmask 1044484
  %v417 = vsel %vm416, %v415, %v414
  %v418 = vrot.slane %v362, 3
  %vm419 = vcmask 1045509
  %v420 = vsel %vm419, %v418, %v417
  %v421 = vrot.slane %v363, 2
  %vm422 = vcmask 1046534
  %v423 = vsel %vm422, %v421, %v420
  %v424 = vrot.slane %v364, 1
  %vm425 = vcmask 1047559
  %v426 = vsel %vm425, %v424, %v423
  %427 = vrot.lane.b32.xlu0 %v426, 32
  %v428 = vpop.permute.xlu0 %427
  %v429 = vsel %vm43, %v428, 0
  %431 = vmatprep.subr.mxu0 0.0
  %432 = vmatpush1.msra.mxu0 %v29
  %433 = vmatprep.subr.mxu0 0.0
  %434 = vmatpush1.msra.mxu0 %v30
  %435 = vmatprep.subr.mxu0 0.0
  %436 = vmatpush1.msra.mxu0 %v31
  %437 = vmatprep.subr.mxu0 0.0
  %438 = vmatpush1.msra.mxu0 %v32
  %439 = vmatprep.subr.mxu0 0.0
  %440 = vmatpush1.msra.mxu0 0.0
  %441 = vmatprep.subr.mxu0 0.0
  %442 = vmatpush1.msra.mxu0 0.0
  %443 = vmatprep.subr.mxu0 0.0
  %444 = vmatpush1.msra.mxu0 0.0
  %445 = vmatprep.subr.mxu0 0.0
  %446 = vmatpush1.msra.mxu0 0.0
  %447 = vmatprep.subr.mxu0 0.0
  %448 = vmatpush1.msra.mxu0 0.0
  %449 = vmatprep.subr.mxu0 0.0
  %450 = vmatpush1.msra.mxu0 0.0
  %451 = vmatprep.subr.mxu0 0.0
  %452 = vmatpush1.msra.mxu0 0.0
  %453 = vmatprep.subr.mxu0 0.0
  %454 = vmatpush1.msra.mxu0 0.0
  %455 = vmatprep.subr.mxu0 0.0
  %456 = vmatpush1.msra.mxu0 0.0
  %457 = vmatprep.subr.mxu0 0.0
  %458 = vmatpush1.msra.mxu0 0.0
  %459 = vmatprep.subr.mxu0 0.0
  %460 = vmatpush1.msra.mxu0 0.0
  %461 = vmatprep.subr.mxu0 0.0
  %462 = vmatpush1.msra.mxu0 0.0
  %463 = vmatprep.subr.mxu0 0.0
  %464 = vmatpush1.msra.mxu0 0.0
  %465 = vmatprep.subr.mxu0 0.0
  %466 = vmatpush1.msra.mxu0 0.0
  %467 = vmatprep.subr.mxu0 0.0
  %468 = vmatpush1.msra.mxu0 0.0
  %469 = vmatprep.subr.mxu0 0.0
  %470 = vmatpush1.msra.mxu0 0.0
  %471 = vmatprep.subr.mxu0 0.0
  %472 = vmatpush1.msra.mxu0 0.0
  %473 = vmatprep.subr.mxu0 0.0
  %474 = vmatpush1.msra.mxu0 0.0
  %475 = vmatprep.subr.mxu0 0.0
  %476 = vmatpush1.msra.mxu0 0.0
  %477 = vmatprep.subr.mxu0 0.0
  %478 = vmatpush1.msra.mxu0 0.0
  %479 = vmatprep.subr.mxu0 0.0
  %480 = vmatpush1.msra.mxu0 0.0
  %481 = vmatprep.subr.mxu0 0.0
  %482 = vmatpush1.msra.mxu0 0.0
  %483 = vmatprep.subr.mxu0 0.0
  %484 = vmatpush1.msra.mxu0 0.0
  %485 = vmatprep.subr.mxu0 0.0
  %486 = vmatpush1.msra.mxu0 0.0
  %487 = vmatprep.subr.mxu0 0.0
  %488 = vmatpush1.msra.mxu0 0.0
  %489 = vmatprep.subr.mxu0 0.0
  %490 = vmatpush1.msra.mxu0 0.0
  %491 = vmatprep.subr.mxu0 0.0
  %492 = vmatpush1.msra.mxu0 0.0
  %493 = vmatprep.subr.mxu0 0.0
  %494 = vmatpush1.msra.mxu0 0.0
  %495 = vmatprep.mubr.f32.mxu0 0.0
  %496 = vmatmul.mubr.f32.gmra.mrb[0].mxu0 %v429
  %v497 = vpop.f32.mrb[0].mxu0
  %v498 = vadd.f32 0.0, %v497
  %v499 = vpop.f32.mrb[0].mxu0
  %500 = vdwg.mxu0
  %v502 = vrot.slane %v498, 7
  %v503 = vrot.slane %v498, 1
  %v504 = vrot.slane %v498, 2
  %v505 = vrot.slane %v498, 3
  %v506 = vrot.slane %v498, 4
  %v507 = vrot.slane %v498, 5
  %v508 = vrot.slane %v498, 6
  %v517 = vadd.f32 %v33, %v502
  %v518 = vadd.f32 %v34, %v498
  %v519 = vadd.f32 %v35, %v503
  %v520 = vadd.f32 %v36, %v504
  %v521 = vadd.f32 %v37, %v505
  %v522 = vadd.f32 %v38, %v506
  %v523 = vadd.f32 %v39, %v507
  %v524 = vadd.f32 %v40, %v508
  %v525 = vxor.u32 %v517, 2147483648
  %v526 = vxor.u32 %v518, 2147483648
  %v527 = vxor.u32 %v519, 2147483648
  %v528 = vxor.u32 %v520, 2147483648
  %v529 = vxor.u32 %v521, 2147483648
  %v530 = vxor.u32 %v522, 2147483648
  %v531 = vxor.u32 %v523, 2147483648
  %v532 = vxor.u32 %v524, 2147483648
  %v533 = vmul.f32 %v525, 1.442695
  %v534 = vpow.pop %v533
  %v535 = vmul.f32 %v526, 1.442695
  %v536 = vpow.pop %v535
  %v537 = vmul.f32 %v527, 1.442695
  %v538 = vpow.pop %v537
  %v539 = vmul.f32 %v528, 1.442695
  %v540 = vpow.pop %v539
  %v541 = vmul.f32 %v529, 1.442695
  %v542 = vpow.pop %v541
  %v543 = vmul.f32 %v530, 1.442695
  %v544 = vpow.pop %v543
  %v545 = vmul.f32 %v531, 1.442695
  %v546 = vpow.pop %v545
  %v547 = vmul.f32 %v532, 1.442695
  %v548 = vpow.pop %v547
  %v549 = vadd.f32 %v534, 1.0
  %v550 = vadd.f32 %v536, 1.0
  %v551 = vadd.f32 %v538, 1.0
  %v552 = vadd.f32 %v540, 1.0
  %v553 = vadd.f32 %v542, 1.0
  %v554 = vadd.f32 %v544, 1.0
  %v555 = vadd.f32 %v546, 1.0
  %v556 = vadd.f32 %v548, 1.0
  %v557 = vrcp.pop %v549
  %v558 = vmul.f32 1.0, %v557
  %v559 = vrcp.pop %v550
  %v560 = vmul.f32 1.0, %v559
  %v561 = vrcp.pop %v551
  %v562 = vmul.f32 1.0, %v561
  %v563 = vrcp.pop %v552
  %v564 = vmul.f32 1.0, %v563
  %v565 = vrcp.pop %v553
  %v566 = vmul.f32 1.0, %v565
  %v567 = vrcp.pop %v554
  %v568 = vmul.f32 1.0, %v567
  %v569 = vrcp.pop %v555
  %v570 = vmul.f32 1.0, %v569
  %v571 = vrcp.pop %v556
  %v572 = vmul.f32 1.0, %v571
  %v573 = vtanh.pop %v517
  %v574 = vtanh.pop %v518
  %v575 = vtanh.pop %v519
  %v576 = vtanh.pop %v520
  %v577 = vtanh.pop %v521
  %v578 = vtanh.pop %v522
  %v579 = vtanh.pop %v523
  %v580 = vtanh.pop %v524
  %v589 = vrot.slane %v309, 7
  %v590 = vrot.slane %v310, 7
  %v591 = vrot.slane %v311, 7
  %v592 = vrot.slane %v312, 7
  %v593 = vrot.slane %v313, 7
  %v594 = vrot.slane %v314, 7
  %v595 = vrot.slane %v315, 7
  %v596 = vrot.slane %v316, 7
  %v605 = vmul.f32 %v558, %v589
  %v606 = vmul.f32 %v560, %v590
  %v607 = vmul.f32 %v562, %v591
  %v608 = vmul.f32 %v564, %v592
  %v609 = vmul.f32 %v566, %v593
  %v610 = vmul.f32 %v568, %v594
  %v611 = vmul.f32 %v570, %v595
  %v612 = vmul.f32 %v572, %v596
  %621 = vrot.lane.b32.xlu0 %v573, 64
  %v622 = vpop.permute.xlu0 %621
  %623 = vrot.lane.b32.xlu0 %v574, 64
  %v624 = vpop.permute.xlu0 %623
  %625 = vrot.lane.b32.xlu0 %v575, 64
  %v626 = vpop.permute.xlu0 %625
  %627 = vrot.lane.b32.xlu0 %v576, 64
  %v628 = vpop.permute.xlu0 %627
  %629 = vrot.lane.b32.xlu0 %v577, 64
  %v630 = vpop.permute.xlu0 %629
  %631 = vrot.lane.b32.xlu0 %v578, 64
  %v632 = vpop.permute.xlu0 %631
  %633 = vrot.lane.b32.xlu0 %v579, 64
  %v634 = vpop.permute.xlu0 %633
  %635 = vrot.lane.b32.xlu0 %v580, 64
  %v636 = vpop.permute.xlu0 %635
  %v645 = vmul.f32 %v558, %v622
  %v646 = vmul.f32 %v560, %v624
  %v647 = vmul.f32 %v562, %v626
  %v648 = vmul.f32 %v564, %v628
  %v649 = vmul.f32 %v566, %v630
  %v650 = vmul.f32 %v568, %v632
  %v651 = vmul.f32 %v570, %v634
  %v652 = vmul.f32 %v572, %v636
  %661 = vrot.lane.b32.xlu0 %v645, 32
  %v662 = vpop.permute.xlu0 %661
  %663 = vrot.lane.b32.xlu0 %v646, 32
  %v664 = vpop.permute.xlu0 %663
  %665 = vrot.lane.b32.xlu0 %v647, 32
  %v666 = vpop.permute.xlu0 %665
  %667 = vrot.lane.b32.xlu0 %v648, 32
  %v668 = vpop.permute.xlu0 %667
  %669 = vrot.lane.b32.xlu0 %v649, 32
  %v670 = vpop.permute.xlu0 %669
  %671 = vrot.lane.b32.xlu0 %v650, 32
  %v672 = vpop.permute.xlu0 %671
  %673 = vrot.lane.b32.xlu0 %v651, 32
  %v674 = vpop.permute.xlu0 %673
  %675 = vrot.lane.b32.xlu0 %v652, 32
  %v676 = vpop.permute.xlu0 %675
  %v685 = vadd.f32 %v605, %v662
  %v686 = vadd.f32 %v606, %v664
  %v687 = vadd.f32 %v607, %v666
  %v688 = vadd.f32 %v608, %v668
  %v689 = vadd.f32 %v609, %v670
  %v690 = vadd.f32 %v610, %v672
  %v691 = vadd.f32 %v611, %v674
  %v692 = vadd.f32 %v612, %v676
  %v693 = vtanh.pop %v685
  %v694 = vtanh.pop %v686
  %v695 = vtanh.pop %v687
  %v696 = vtanh.pop %v688
  %v697 = vtanh.pop %v689
  %v698 = vtanh.pop %v690
  %v699 = vtanh.pop %v691
  %v700 = vtanh.pop %v692
  %709 = vrot.lane.b32.xlu0 %v693, 64
  %v710 = vpop.permute.xlu0 %709
  %711 = vrot.lane.b32.xlu0 %v694, 64
  %v712 = vpop.permute.xlu0 %711
  %713 = vrot.lane.b32.xlu0 %v695, 64
  %v714 = vpop.permute.xlu0 %713
  %715 = vrot.lane.b32.xlu0 %v696, 64
  %v716 = vpop.permute.xlu0 %715
  %717 = vrot.lane.b32.xlu0 %v697, 64
  %v718 = vpop.permute.xlu0 %717
  %719 = vrot.lane.b32.xlu0 %v698, 64
  %v720 = vpop.permute.xlu0 %719
  %721 = vrot.lane.b32.xlu0 %v699, 64
  %v722 = vpop.permute.xlu0 %721
  %723 = vrot.lane.b32.xlu0 %v700, 64
  %v724 = vpop.permute.xlu0 %723
  %v733 = vmul.f32 %v558, %v710
  %v734 = vmul.f32 %v560, %v712
  %v735 = vmul.f32 %v562, %v714
  %v736 = vmul.f32 %v564, %v716
  %v737 = vmul.f32 %v566, %v718
  %v738 = vmul.f32 %v568, %v720
  %v739 = vmul.f32 %v570, %v722
  %v740 = vmul.f32 %v572, %v724
  %749 = vrot.lane.b32.xlu0 %v733, 32
  %v750 = vpop.permute.xlu0 %749
  %751 = vrot.lane.b32.xlu0 %v734, 32
  %v752 = vpop.permute.xlu0 %751
  %753 = vrot.lane.b32.xlu0 %v735, 32
  %v754 = vpop.permute.xlu0 %753
  %755 = vrot.lane.b32.xlu0 %v736, 32
  %v756 = vpop.permute.xlu0 %755
  %757 = vrot.lane.b32.xlu0 %v737, 32
  %v758 = vpop.permute.xlu0 %757
  %759 = vrot.lane.b32.xlu0 %v738, 32
  %v760 = vpop.permute.xlu0 %759
  %761 = vrot.lane.b32.xlu0 %v739, 32
  %v762 = vpop.permute.xlu0 %761
  %763 = vrot.lane.b32.xlu0 %v740, 32
  %v764 = vpop.permute.xlu0 %763
  %vm773 = vcmask 254977
  %774 = vst.msk [vmem:[%s4] sm:$0x2] %vm773, %v750
  %775 = vst.msk [vmem:[%s4 + $0x8] sm:$0x2] %vm773, %v752
  %776 = vst.msk [vmem:[%s4 + $0x10] sm:$0x2] %vm773, %v754
  %777 = vst.msk [vmem:[%s4 + $0x18] sm:$0x2] %vm773, %v756
  %778 = vst.msk [vmem:[%s4 + $0x20] sm:$0x2] %vm773, %v758
  %779 = vst.msk [vmem:[%s4 + $0x28] sm:$0x2] %vm773, %v760
  %780 = vst.msk [vmem:[%s4 + $0x30] sm:$0x2] %vm773, %v762
  %781 = vst.msk [vmem:[%s4 + $0x38] sm:$0x2] %vm773, %v764
  %v782 = vrot.slane %v733, 1
  %v783 = vsel %vm407, %v734, %v782
  %v784 = vrot.slane %v735, 7
  %v785 = vsel %vm410, %v784, %v783
  %v786 = vrot.slane %v736, 6
  %v787 = vsel %vm413, %v786, %v785
  %v788 = vrot.slane %v737, 5
  %v789 = vsel %vm416, %v788, %v787
  %v790 = vrot.slane %v738, 4
  %v791 = vsel %vm419, %v790, %v789
  %v792 = vrot.slane %v739, 3
  %v793 = vsel %vm422, %v792, %v791
  %v794 = vrot.slane %v740, 2
  %v795 = vsel %vm425, %v794, %v793
  %796 = vrot.lane.b32.xlu0 %v795, 32
  %v797 = vpop.permute.xlu0 %796
  %v798 = vsel %vm43, %v797, 0
  %800 = vmatprep.subr.mxu0 0.0
  %801 = vmatpush1.msra.mxu0 %v29
  %802 = vmatprep.subr.mxu0 0.0
  %803 = vmatpush1.msra.mxu0 %v30
  %804 = vmatprep.subr.mxu0 0.0
  %805 = vmatpush1.msra.mxu0 %v31
  %806 = vmatprep.subr.mxu0 0.0
  %807 = vmatpush1.msra.mxu0 %v32
  %808 = vmatprep.subr.mxu0 0.0
  %809 = vmatpush1.msra.mxu0 0.0
  %810 = vmatprep.subr.mxu0 0.0
  %811 = vmatpush1.msra.mxu0 0.0
  %812 = vmatprep.subr.mxu0 0.0
  %813 = vmatpush1.msra.mxu0 0.0
  %814 = vmatprep.subr.mxu0 0.0
  %815 = vmatpush1.msra.mxu0 0.0
  %816 = vmatprep.subr.mxu0 0.0
  %817 = vmatpush1.msra.mxu0 0.0
  %818 = vmatprep.subr.mxu0 0.0
  %819 = vmatpush1.msra.mxu0 0.0
  %820 = vmatprep.subr.mxu0 0.0
  %821 = vmatpush1.msra.mxu0 0.0
  %822 = vmatprep.subr.mxu0 0.0
  %823 = vmatpush1.msra.mxu0 0.0
  %824 = vmatprep.subr.mxu0 0.0
  %825 = vmatpush1.msra.mxu0 0.0
  %826 = vmatprep.subr.mxu0 0.0
  %827 = vmatpush1.msra.mxu0 0.0
  %828 = vmatprep.subr.mxu0 0.0
  %829 = vmatpush1.msra.mxu0 0.0
  %830 = vmatprep.subr.mxu0 0.0
  %831 = vmatpush1.msra.mxu0 0.0
  %832 = vmatprep.subr.mxu0 0.0
  %833 = vmatpush1.msra.mxu0 0.0
  %834 = vmatprep.subr.mxu0 0.0
  %835 = vmatpush1.msra.mxu0 0.0
  %836 = vmatprep.subr.mxu0 0.0
  %837 = vmatpush1.msra.mxu0 0.0
  %838 = vmatprep.subr.mxu0 0.0
  %839 = vmatpush1.msra.mxu0 0.0
  %840 = vmatprep.subr.mxu0 0.0
  %841 = vmatpush1.msra.mxu0 0.0
  %842 = vmatprep.subr.mxu0 0.0
  %843 = vmatpush1.msra.mxu0 0.0
  %844 = vmatprep.subr.mxu0 0.0
  %845 = vmatpush1.msra.mxu0 0.0
  %846 = vmatprep.subr.mxu0 0.0
  %847 = vmatpush1.msra.mxu0 0.0
  %848 = vmatprep.subr.mxu0 0.0
  %849 = vmatpush1.msra.mxu0 0.0
  %850 = vmatprep.subr.mxu0 0.0
  %851 = vmatpush1.msra.mxu0 0.0
  %852 = vmatprep.subr.mxu0 0.0
  %853 = vmatpush1.msra.mxu0 0.0
  %854 = vmatprep.subr.mxu0 0.0
  %855 = vmatpush1.msra.mxu0 0.0
  %856 = vmatprep.subr.mxu0 0.0
  %857 = vmatpush1.msra.mxu0 0.0
  %858 = vmatprep.subr.mxu0 0.0
  %859 = vmatpush1.msra.mxu0 0.0
  %860 = vmatprep.subr.mxu0 0.0
  %861 = vmatpush1.msra.mxu0 0.0
  %862 = vmatprep.subr.mxu0 0.0
  %863 = vmatpush1.msra.mxu0 0.0
  %864 = vmatprep.mubr.f32.mxu0 0.0
  %865 = vmatmul.mubr.f32.gmra.mrb[0].mxu0 %v798
  %v866 = vpop.f32.mrb[0].mxu0
  %v867 = vadd.f32 0.0, %v866
  %v868 = vpop.f32.mrb[0].mxu0
  %869 = vdwg.mxu0
  %v871 = vrot.slane %v867, 6
  %v872 = vrot.slane %v867, 7
  %v873 = vrot.slane %v867, 1
  %v874 = vrot.slane %v867, 2
  %v875 = vrot.slane %v867, 3
  %v876 = vrot.slane %v867, 4
  %v877 = vrot.slane %v867, 5
  %v886 = vadd.f32 %v33, %v871
  %v887 = vadd.f32 %v34, %v872
  %v888 = vadd.f32 %v35, %v867
  %v889 = vadd.f32 %v36, %v873
  %v890 = vadd.f32 %v37, %v874
  %v891 = vadd.f32 %v38, %v875
  %v892 = vadd.f32 %v39, %v876
  %v893 = vadd.f32 %v40, %v877
  %v894 = vxor.u32 %v886, 2147483648
  %v895 = vxor.u32 %v887, 2147483648
  %v896 = vxor.u32 %v888, 2147483648
  %v897 = vxor.u32 %v889, 2147483648
  %v898 = vxor.u32 %v890, 2147483648
  %v899 = vxor.u32 %v891, 2147483648
  %v900 = vxor.u32 %v892, 2147483648
  %v901 = vxor.u32 %v893, 2147483648
  %v902 = vmul.f32 %v894, 1.442695
  %v903 = vpow.pop %v902
  %v904 = vmul.f32 %v895, 1.442695
  %v905 = vpow.pop %v904
  %v906 = vmul.f32 %v896, 1.442695
  %v907 = vpow.pop %v906
  %v908 = vmul.f32 %v897, 1.442695
  %v909 = vpow.pop %v908
  %v910 = vmul.f32 %v898, 1.442695
  %v911 = vpow.pop %v910
  %v912 = vmul.f32 %v899, 1.442695
  %v913 = vpow.pop %v912
  %v914 = vmul.f32 %v900, 1.442695
  %v915 = vpow.pop %v914
  %v916 = vmul.f32 %v901, 1.442695
  %v917 = vpow.pop %v916
  %v918 = vadd.f32 %v903, 1.0
  %v919 = vadd.f32 %v905, 1.0
  %v920 = vadd.f32 %v907, 1.0
  %v921 = vadd.f32 %v909, 1.0
  %v922 = vadd.f32 %v911, 1.0
  %v923 = vadd.f32 %v913, 1.0
  %v924 = vadd.f32 %v915, 1.0
  %v925 = vadd.f32 %v917, 1.0
  %v926 = vrcp.pop %v918
  %v927 = vmul.f32 1.0, %v926
  %v928 = vrcp.pop %v919
  %v929 = vmul.f32 1.0, %v928
  %v930 = vrcp.pop %v920
  %v931 = vmul.f32 1.0, %v930
  %v932 = vrcp.pop %v921
  %v933 = vmul.f32 1.0, %v932
  %v934 = vrcp.pop %v922
  %v935 = vmul.f32 1.0, %v934
  %v936 = vrcp.pop %v923
  %v937 = vmul.f32 1.0, %v936
  %v938 = vrcp.pop %v924
  %v939 = vmul.f32 1.0, %v938
  %v940 = vrcp.pop %v925
  %v941 = vmul.f32 1.0, %v940
  %v942 = vtanh.pop %v886
  %v943 = vtanh.pop %v887
  %v944 = vtanh.pop %v888
  %v945 = vtanh.pop %v889
  %v946 = vtanh.pop %v890
  %v947 = vtanh.pop %v891
  %v948 = vtanh.pop %v892
  %v949 = vtanh.pop %v893
  %v958 = vrot.slane %v685, 7
  %v959 = vrot.slane %v686, 7
  %v960 = vrot.slane %v687, 7
  %v961 = vrot.slane %v688, 7
  %v962 = vrot.slane %v689, 7
  %v963 = vrot.slane %v690, 7
  %v964 = vrot.slane %v691, 7
  %v965 = vrot.slane %v692, 7
  %v974 = vmul.f32 %v927, %v958
  %v975 = vmul.f32 %v929, %v959
  %v976 = vmul.f32 %v931, %v960
  %v977 = vmul.f32 %v933, %v961
  %v978 = vmul.f32 %v935, %v962
  %v979 = vmul.f32 %v937, %v963
  %v980 = vmul.f32 %v939, %v964
  %v981 = vmul.f32 %v941, %v965
  %990 = vrot.lane.b32.xlu0 %v942, 64
  %v991 = vpop.permute.xlu0 %990
  %992 = vrot.lane.b32.xlu0 %v943, 64
  %v993 = vpop.permute.xlu0 %992
  %994 = vrot.lane.b32.xlu0 %v944, 64
  %v995 = vpop.permute.xlu0 %994
  %996 = vrot.lane.b32.xlu0 %v945, 64
  %v997 = vpop.permute.xlu0 %996
  %998 = vrot.lane.b32.xlu0 %v946, 64
  %v999 = vpop.permute.xlu0 %998
  %1000 = vrot.lane.b32.xlu0 %v947, 64
  %v1001 = vpop.permute.xlu0 %1000
  %1002 = vrot.lane.b32.xlu0 %v948, 64
  %v1003 = vpop.permute.xlu0 %1002
  %1004 = vrot.lane.b32.xlu0 %v949, 64
  %v1005 = vpop.permute.xlu0 %1004
  %v1014 = vmul.f32 %v927, %v991
  %v1015 = vmul.f32 %v929, %v993
  %v1016 = vmul.f32 %v931, %v995
  %v1017 = vmul.f32 %v933, %v997
  %v1018 = vmul.f32 %v935, %v999
  %v1019 = vmul.f32 %v937, %v1001
  %v1020 = vmul.f32 %v939, %v1003
  %v1021 = vmul.f32 %v941, %v1005
  %1030 = vrot.lane.b32.xlu0 %v1014, 32
  %v1031 = vpop.permute.xlu0 %1030
  %1032 = vrot.lane.b32.xlu0 %v1015, 32
  %v1033 = vpop.permute.xlu0 %1032
  %1034 = vrot.lane.b32.xlu0 %v1016, 32
  %v1035 = vpop.permute.xlu0 %1034
  %1036 = vrot.lane.b32.xlu0 %v1017, 32
  %v1037 = vpop.permute.xlu0 %1036
  %1038 = vrot.lane.b32.xlu0 %v1018, 32
  %v1039 = vpop.permute.xlu0 %1038
  %1040 = vrot.lane.b32.xlu0 %v1019, 32
  %v1041 = vpop.permute.xlu0 %1040
  %1042 = vrot.lane.b32.xlu0 %v1020, 32
  %v1043 = vpop.permute.xlu0 %1042
  %1044 = vrot.lane.b32.xlu0 %v1021, 32
  %v1045 = vpop.permute.xlu0 %1044
  %v1054 = vadd.f32 %v974, %v1031
  %v1055 = vadd.f32 %v975, %v1033
  %v1056 = vadd.f32 %v976, %v1035
  %v1057 = vadd.f32 %v977, %v1037
  %v1058 = vadd.f32 %v978, %v1039
  %v1059 = vadd.f32 %v979, %v1041
  %v1060 = vadd.f32 %v980, %v1043
  %v1061 = vadd.f32 %v981, %v1045
  %v1062 = vtanh.pop %v1054
  %v1063 = vtanh.pop %v1055
  %v1064 = vtanh.pop %v1056
  %v1065 = vtanh.pop %v1057
  %v1066 = vtanh.pop %v1058
  %v1067 = vtanh.pop %v1059
  %v1068 = vtanh.pop %v1060
  %v1069 = vtanh.pop %v1061
  %1078 = vrot.lane.b32.xlu0 %v1062, 64
  %v1079 = vpop.permute.xlu0 %1078
  %1080 = vrot.lane.b32.xlu0 %v1063, 64
  %v1081 = vpop.permute.xlu0 %1080
  %1082 = vrot.lane.b32.xlu0 %v1064, 64
  %v1083 = vpop.permute.xlu0 %1082
  %1084 = vrot.lane.b32.xlu0 %v1065, 64
  %v1085 = vpop.permute.xlu0 %1084
  %1086 = vrot.lane.b32.xlu0 %v1066, 64
  %v1087 = vpop.permute.xlu0 %1086
  %1088 = vrot.lane.b32.xlu0 %v1067, 64
  %v1089 = vpop.permute.xlu0 %1088
  %1090 = vrot.lane.b32.xlu0 %v1068, 64
  %v1091 = vpop.permute.xlu0 %1090
  %1092 = vrot.lane.b32.xlu0 %v1069, 64
  %v1093 = vpop.permute.xlu0 %1092
  %v1102 = vmul.f32 %v927, %v1079
  %v1103 = vmul.f32 %v929, %v1081
  %v1104 = vmul.f32 %v931, %v1083
  %v1105 = vmul.f32 %v933, %v1085
  %v1106 = vmul.f32 %v935, %v1087
  %v1107 = vmul.f32 %v937, %v1089
  %v1108 = vmul.f32 %v939, %v1091
  %v1109 = vmul.f32 %v941, %v1093
  %1118 = vrot.lane.b32.xlu0 %v1102, 32
  %v1119 = vpop.permute.xlu0 %1118
  %1120 = vrot.lane.b32.xlu0 %v1103, 32
  %v1121 = vpop.permute.xlu0 %1120
  %1122 = vrot.lane.b32.xlu0 %v1104, 32
  %v1123 = vpop.permute.xlu0 %1122
  %1124 = vrot.lane.b32.xlu0 %v1105, 32
  %v1125 = vpop.permute.xlu0 %1124
  %1126 = vrot.lane.b32.xlu0 %v1106, 32
  %v1127 = vpop.permute.xlu0 %1126
  %1128 = vrot.lane.b32.xlu0 %v1107, 32
  %v1129 = vpop.permute.xlu0 %1128
  %1130 = vrot.lane.b32.xlu0 %v1108, 32
  %v1131 = vpop.permute.xlu0 %1130
  %1132 = vrot.lane.b32.xlu0 %v1109, 32
  %v1133 = vpop.permute.xlu0 %1132
  %vm1142 = vcmask 256002
  %1143 = vst.msk [vmem:[%s4] sm:$0x4] %vm1142, %v1119
  %1144 = vst.msk [vmem:[%s4 + $0x8] sm:$0x4] %vm1142, %v1121
  %1145 = vst.msk [vmem:[%s4 + $0x10] sm:$0x4] %vm1142, %v1123
  %1146 = vst.msk [vmem:[%s4 + $0x18] sm:$0x4] %vm1142, %v1125
  %1147 = vst.msk [vmem:[%s4 + $0x20] sm:$0x4] %vm1142, %v1127
  %1148 = vst.msk [vmem:[%s4 + $0x28] sm:$0x4] %vm1142, %v1129
  %1149 = vst.msk [vmem:[%s4 + $0x30] sm:$0x4] %vm1142, %v1131
  %1150 = vst.msk [vmem:[%s4 + $0x38] sm:$0x4] %vm1142, %v1133
  %v1151 = vrot.slane %v1102, 2
  %v1152 = vrot.slane %v1103, 1
  %v1153 = vsel %vm407, %v1152, %v1151
  %v1154 = vsel %vm410, %v1104, %v1153
  %v1155 = vrot.slane %v1105, 7
  %v1156 = vsel %vm413, %v1155, %v1154
  %v1157 = vrot.slane %v1106, 6
  %v1158 = vsel %vm416, %v1157, %v1156
  %v1159 = vrot.slane %v1107, 5
  %v1160 = vsel %vm419, %v1159, %v1158
  %v1161 = vrot.slane %v1108, 4
  %v1162 = vsel %vm422, %v1161, %v1160
  %v1163 = vrot.slane %v1109, 3
  %v1164 = vsel %vm425, %v1163, %v1162
  %1165 = vrot.lane.b32.xlu0 %v1164, 32
  %v1166 = vpop.permute.xlu0 %1165
  %v1167 = vsel %vm43, %v1166, 0
  %1169 = vmatprep.subr.mxu0 0.0
  %1170 = vmatpush1.msra.mxu0 %v29
  %1171 = vmatprep.subr.mxu0 0.0
  %1172 = vmatpush1.msra.mxu0 %v30
  %1173 = vmatprep.subr.mxu0 0.0
  %1174 = vmatpush1.msra.mxu0 %v31
  %1175 = vmatprep.subr.mxu0 0.0
  %1176 = vmatpush1.msra.mxu0 %v32
  %1177 = vmatprep.subr.mxu0 0.0
  %1178 = vmatpush1.msra.mxu0 0.0
  %1179 = vmatprep.subr.mxu0 0.0
  %1180 = vmatpush1.msra.mxu0 0.0
  %1181 = vmatprep.subr.mxu0 0.0
  %1182 = vmatpush1.msra.mxu0 0.0
  %1183 = vmatprep.subr.mxu0 0.0
  %1184 = vmatpush1.msra.mxu0 0.0
  %1185 = vmatprep.subr.mxu0 0.0
  %1186 = vmatpush1.msra.mxu0 0.0
  %1187 = vmatprep.subr.mxu0 0.0
  %1188 = vmatpush1.msra.mxu0 0.0
  %1189 = vmatprep.subr.mxu0 0.0
  %1190 = vmatpush1.msra.mxu0 0.0
  %1191 = vmatprep.subr.mxu0 0.0
  %1192 = vmatpush1.msra.mxu0 0.0
  %1193 = vmatprep.subr.mxu0 0.0
  %1194 = vmatpush1.msra.mxu0 0.0
  %1195 = vmatprep.subr.mxu0 0.0
  %1196 = vmatpush1.msra.mxu0 0.0
  %1197 = vmatprep.subr.mxu0 0.0
  %1198 = vmatpush1.msra.mxu0 0.0
  %1199 = vmatprep.subr.mxu0 0.0
  %1200 = vmatpush1.msra.mxu0 0.0
  %1201 = vmatprep.subr.mxu0 0.0
  %1202 = vmatpush1.msra.mxu0 0.0
  %1203 = vmatprep.subr.mxu0 0.0
  %1204 = vmatpush1.msra.mxu0 0.0
  %1205 = vmatprep.subr.mxu0 0.0
  %1206 = vmatpush1.msra.mxu0 0.0
  %1207 = vmatprep.subr.mxu0 0.0
  %1208 = vmatpush1.msra.mxu0 0.0
  %1209 = vmatprep.subr.mxu0 0.0
  %1210 = vmatpush1.msra.mxu0 0.0
  %1211 = vmatprep.subr.mxu0 0.0
  %1212 = vmatpush1.msra.mxu0 0.0
  %1213 = vmatprep.subr.mxu0 0.0
  %1214 = vmatpush1.msra.mxu0 0.0
  %1215 = vmatprep.subr.mxu0 0.0
  %1216 = vmatpush1.msra.mxu0 0.0
  %1217 = vmatprep.subr.mxu0 0.0
  %1218 = vmatpush1.msra.mxu0 0.0
  %1219 = vmatprep.subr.mxu0 0.0
  %1220 = vmatpush1.msra.mxu0 0.0
  %1221 = vmatprep.subr.mxu0 0.0
  %1222 = vmatpush1.msra.mxu0 0.0
  %1223 = vmatprep.subr.mxu0 0.0
  %1224 = vmatpush1.msra.mxu0 0.0
  %1225 = vmatprep.subr.mxu0 0.0
  %1226 = vmatpush1.msra.mxu0 0.0
  %1227 = vmatprep.subr.mxu0 0.0
  %1228 = vmatpush1.msra.mxu0 0.0
  %1229 = vmatprep.subr.mxu0 0.0
  %1230 = vmatpush1.msra.mxu0 0.0
  %1231 = vmatprep.subr.mxu0 0.0
  %1232 = vmatpush1.msra.mxu0 0.0
  %1233 = vmatprep.mubr.f32.mxu0 0.0
  %1234 = vmatmul.mubr.f32.gmra.mrb[0].mxu0 %v1167
  %v1235 = vpop.f32.mrb[0].mxu0
  %v1236 = vadd.f32 0.0, %v1235
  %v1237 = vpop.f32.mrb[0].mxu0
  %1238 = vdwg.mxu0
  %v1240 = vrot.slane %v1236, 5
  %v1241 = vrot.slane %v1236, 6
  %v1242 = vrot.slane %v1236, 7
  %v1243 = vrot.slane %v1236, 1
  %v1244 = vrot.slane %v1236, 2
  %v1245 = vrot.slane %v1236, 3
  %v1246 = vrot.slane %v1236, 4
  %v1255 = vadd.f32 %v33, %v1240
  %v1256 = vadd.f32 %v34, %v1241
  %v1257 = vadd.f32 %v35, %v1242
  %v1258 = vadd.f32 %v36, %v1236
  %v1259 = vadd.f32 %v37, %v1243
  %v1260 = vadd.f32 %v38, %v1244
  %v1261 = vadd.f32 %v39, %v1245
  %v1262 = vadd.f32 %v40, %v1246
  %v1263 = vxor.u32 %v1255, 2147483648
  %v1264 = vxor.u32 %v1256, 2147483648
  %v1265 = vxor.u32 %v1257, 2147483648
  %v1266 = vxor.u32 %v1258, 2147483648
  %v1267 = vxor.u32 %v1259, 2147483648
  %v1268 = vxor.u32 %v1260, 2147483648
  %v1269 = vxor.u32 %v1261, 2147483648
  %v1270 = vxor.u32 %v1262, 2147483648
  %v1271 = vmul.f32 %v1263, 1.442695
  %v1272 = vpow.pop %v1271
  %v1273 = vmul.f32 %v1264, 1.442695
  %v1274 = vpow.pop %v1273
  %v1275 = vmul.f32 %v1265, 1.442695
  %v1276 = vpow.pop %v1275
  %v1277 = vmul.f32 %v1266, 1.442695
  %v1278 = vpow.pop %v1277
  %v1279 = vmul.f32 %v1267, 1.442695
  %v1280 = vpow.pop %v1279
  %v1281 = vmul.f32 %v1268, 1.442695
  %v1282 = vpow.pop %v1281
  %v1283 = vmul.f32 %v1269, 1.442695
  %v1284 = vpow.pop %v1283
  %v1285 = vmul.f32 %v1270, 1.442695
  %v1286 = vpow.pop %v1285
  %v1287 = vadd.f32 %v1272, 1.0
  %v1288 = vadd.f32 %v1274, 1.0
  %v1289 = vadd.f32 %v1276, 1.0
  %v1290 = vadd.f32 %v1278, 1.0
  %v1291 = vadd.f32 %v1280, 1.0
  %v1292 = vadd.f32 %v1282, 1.0
  %v1293 = vadd.f32 %v1284, 1.0
  %v1294 = vadd.f32 %v1286, 1.0
  %v1295 = vrcp.pop %v1287
  %v1296 = vmul.f32 1.0, %v1295
  %v1297 = vrcp.pop %v1288
  %v1298 = vmul.f32 1.0, %v1297
  %v1299 = vrcp.pop %v1289
  %v1300 = vmul.f32 1.0, %v1299
  %v1301 = vrcp.pop %v1290
  %v1302 = vmul.f32 1.0, %v1301
  %v1303 = vrcp.pop %v1291
  %v1304 = vmul.f32 1.0, %v1303
  %v1305 = vrcp.pop %v1292
  %v1306 = vmul.f32 1.0, %v1305
  %v1307 = vrcp.pop %v1293
  %v1308 = vmul.f32 1.0, %v1307
  %v1309 = vrcp.pop %v1294
  %v1310 = vmul.f32 1.0, %v1309
  %v1311 = vtanh.pop %v1255
  %v1312 = vtanh.pop %v1256
  %v1313 = vtanh.pop %v1257
  %v1314 = vtanh.pop %v1258
  %v1315 = vtanh.pop %v1259
  %v1316 = vtanh.pop %v1260
  %v1317 = vtanh.pop %v1261
  %v1318 = vtanh.pop %v1262
  %v1327 = vrot.slane %v1054, 7
  %v1328 = vrot.slane %v1055, 7
  %v1329 = vrot.slane %v1056, 7
  %v1330 = vrot.slane %v1057, 7
  %v1331 = vrot.slane %v1058, 7
  %v1332 = vrot.slane %v1059, 7
  %v1333 = vrot.slane %v1060, 7
  %v1334 = vrot.slane %v1061, 7
  %v1343 = vmul.f32 %v1296, %v1327
  %v1344 = vmul.f32 %v1298, %v1328
  %v1345 = vmul.f32 %v1300, %v1329
  %v1346 = vmul.f32 %v1302, %v1330
  %v1347 = vmul.f32 %v1304, %v1331
  %v1348 = vmul.f32 %v1306, %v1332
  %v1349 = vmul.f32 %v1308, %v1333
  %v1350 = vmul.f32 %v1310, %v1334
  %1359 = vrot.lane.b32.xlu0 %v1311, 64
  %v1360 = vpop.permute.xlu0 %1359
  %1361 = vrot.lane.b32.xlu0 %v1312, 64
  %v1362 = vpop.permute.xlu0 %1361
  %1363 = vrot.lane.b32.xlu0 %v1313, 64
  %v1364 = vpop.permute.xlu0 %1363
  %1365 = vrot.lane.b32.xlu0 %v1314, 64
  %v1366 = vpop.permute.xlu0 %1365
  %1367 = vrot.lane.b32.xlu0 %v1315, 64
  %v1368 = vpop.permute.xlu0 %1367
  %1369 = vrot.lane.b32.xlu0 %v1316, 64
  %v1370 = vpop.permute.xlu0 %1369
  %1371 = vrot.lane.b32.xlu0 %v1317, 64
  %v1372 = vpop.permute.xlu0 %1371
  %1373 = vrot.lane.b32.xlu0 %v1318, 64
  %v1374 = vpop.permute.xlu0 %1373
  %v1383 = vmul.f32 %v1296, %v1360
  %v1384 = vmul.f32 %v1298, %v1362
  %v1385 = vmul.f32 %v1300, %v1364
  %v1386 = vmul.f32 %v1302, %v1366
  %v1387 = vmul.f32 %v1304, %v1368
  %v1388 = vmul.f32 %v1306, %v1370
  %v1389 = vmul.f32 %v1308, %v1372
  %v1390 = vmul.f32 %v1310, %v1374
  %1399 = vrot.lane.b32.xlu0 %v1383, 32
  %v1400 = vpop.permute.xlu0 %1399
  %1401 = vrot.lane.b32.xlu0 %v1384, 32
  %v1402 = vpop.permute.xlu0 %1401
  %1403 = vrot.lane.b32.xlu0 %v1385, 32
  %v1404 = vpop.permute.xlu0 %1403
  %1405 = vrot.lane.b32.xlu0 %v1386, 32
  %v1406 = vpop.permute.xlu0 %1405
  %1407 = vrot.lane.b32.xlu0 %v1387, 32
  %v1408 = vpop.permute.xlu0 %1407
  %1409 = vrot.lane.b32.xlu0 %v1388, 32
  %v1410 = vpop.permute.xlu0 %1409
  %1411 = vrot.lane.b32.xlu0 %v1389, 32
  %v1412 = vpop.permute.xlu0 %1411
  %1413 = vrot.lane.b32.xlu0 %v1390, 32
  %v1414 = vpop.permute.xlu0 %1413
  %v1423 = vadd.f32 %v1343, %v1400
  %v1424 = vadd.f32 %v1344, %v1402
  %v1425 = vadd.f32 %v1345, %v1404
  %v1426 = vadd.f32 %v1346, %v1406
  %v1427 = vadd.f32 %v1347, %v1408
  %v1428 = vadd.f32 %v1348, %v1410
  %v1429 = vadd.f32 %v1349, %v1412
  %v1430 = vadd.f32 %v1350, %v1414
  %v1431 = vtanh.pop %v1423
  %v1432 = vtanh.pop %v1424
  %v1433 = vtanh.pop %v1425
  %v1434 = vtanh.pop %v1426
  %v1435 = vtanh.pop %v1427
  %v1436 = vtanh.pop %v1428
  %v1437 = vtanh.pop %v1429
  %v1438 = vtanh.pop %v1430
  %1447 = vrot.lane.b32.xlu0 %v1431, 64
  %v1448 = vpop.permute.xlu0 %1447
  %1449 = vrot.lane.b32.xlu0 %v1432, 64
  %v1450 = vpop.permute.xlu0 %1449
  %1451 = vrot.lane.b32.xlu0 %v1433, 64
  %v1452 = vpop.permute.xlu0 %1451
  %1453 = vrot.lane.b32.xlu0 %v1434, 64
  %v1454 = vpop.permute.xlu0 %1453
  %1455 = vrot.lane.b32.xlu0 %v1435, 64
  %v1456 = vpop.permute.xlu0 %1455
  %1457 = vrot.lane.b32.xlu0 %v1436, 64
  %v1458 = vpop.permute.xlu0 %1457
  %1459 = vrot.lane.b32.xlu0 %v1437, 64
  %v1460 = vpop.permute.xlu0 %1459
  %1461 = vrot.lane.b32.xlu0 %v1438, 64
  %v1462 = vpop.permute.xlu0 %1461
  %v1471 = vmul.f32 %v1296, %v1448
  %v1472 = vmul.f32 %v1298, %v1450
  %v1473 = vmul.f32 %v1300, %v1452
  %v1474 = vmul.f32 %v1302, %v1454
  %v1475 = vmul.f32 %v1304, %v1456
  %v1476 = vmul.f32 %v1306, %v1458
  %v1477 = vmul.f32 %v1308, %v1460
  %v1478 = vmul.f32 %v1310, %v1462
  %1487 = vrot.lane.b32.xlu0 %v1471, 32
  %v1488 = vpop.permute.xlu0 %1487
  %1489 = vrot.lane.b32.xlu0 %v1472, 32
  %v1490 = vpop.permute.xlu0 %1489
  %1491 = vrot.lane.b32.xlu0 %v1473, 32
  %v1492 = vpop.permute.xlu0 %1491
  %1493 = vrot.lane.b32.xlu0 %v1474, 32
  %v1494 = vpop.permute.xlu0 %1493
  %1495 = vrot.lane.b32.xlu0 %v1475, 32
  %v1496 = vpop.permute.xlu0 %1495
  %1497 = vrot.lane.b32.xlu0 %v1476, 32
  %v1498 = vpop.permute.xlu0 %1497
  %1499 = vrot.lane.b32.xlu0 %v1477, 32
  %v1500 = vpop.permute.xlu0 %1499
  %1501 = vrot.lane.b32.xlu0 %v1478, 32
  %v1502 = vpop.permute.xlu0 %1501
  %vm1511 = vcmask 257027
  %1512 = vst.msk [vmem:[%s4] sm:$0x8] %vm1511, %v1488
  %1513 = vst.msk [vmem:[%s4 + $0x8] sm:$0x8] %vm1511, %v1490
  %1514 = vst.msk [vmem:[%s4 + $0x10] sm:$0x8] %vm1511, %v1492
  %1515 = vst.msk [vmem:[%s4 + $0x18] sm:$0x8] %vm1511, %v1494
  %1516 = vst.msk [vmem:[%s4 + $0x20] sm:$0x8] %vm1511, %v1496
  %1517 = vst.msk [vmem:[%s4 + $0x28] sm:$0x8] %vm1511, %v1498
  %1518 = vst.msk [vmem:[%s4 + $0x30] sm:$0x8] %vm1511, %v1500
  %1519 = vst.msk [vmem:[%s4 + $0x38] sm:$0x8] %vm1511, %v1502
  %v1520 = vrot.slane %v1471, 3
  %v1521 = vrot.slane %v1472, 2
  %v1522 = vsel %vm407, %v1521, %v1520
  %v1523 = vrot.slane %v1473, 1
  %v1524 = vsel %vm410, %v1523, %v1522
  %v1525 = vsel %vm413, %v1474, %v1524
  %v1526 = vrot.slane %v1475, 7
  %v1527 = vsel %vm416, %v1526, %v1525
  %v1528 = vrot.slane %v1476, 6
  %v1529 = vsel %vm419, %v1528, %v1527
  %v1530 = vrot.slane %v1477, 5
  %v1531 = vsel %vm422, %v1530, %v1529
  %v1532 = vrot.slane %v1478, 4
  %v1533 = vsel %vm425, %v1532, %v1531
  %1534 = vrot.lane.b32.xlu0 %v1533, 32
  %v1535 = vpop.permute.xlu0 %1534
  %v1536 = vsel %vm43, %v1535, 0
  %1538 = vmatprep.subr.mxu0 0.0
  %1539 = vmatpush1.msra.mxu0 %v29
  %1540 = vmatprep.subr.mxu0 0.0
  %1541 = vmatpush1.msra.mxu0 %v30
  %1542 = vmatprep.subr.mxu0 0.0
  %1543 = vmatpush1.msra.mxu0 %v31
  %1544 = vmatprep.subr.mxu0 0.0
  %1545 = vmatpush1.msra.mxu0 %v32
  %1546 = vmatprep.subr.mxu0 0.0
  %1547 = vmatpush1.msra.mxu0 0.0
  %1548 = vmatprep.subr.mxu0 0.0
  %1549 = vmatpush1.msra.mxu0 0.0
  %1550 = vmatprep.subr.mxu0 0.0
  %1551 = vmatpush1.msra.mxu0 0.0
  %1552 = vmatprep.subr.mxu0 0.0
  %1553 = vmatpush1.msra.mxu0 0.0
  %1554 = vmatprep.subr.mxu0 0.0
  %1555 = vmatpush1.msra.mxu0 0.0
  %1556 = vmatprep.subr.mxu0 0.0
  %1557 = vmatpush1.msra.mxu0 0.0
  %1558 = vmatprep.subr.mxu0 0.0
  %1559 = vmatpush1.msra.mxu0 0.0
  %1560 = vmatprep.subr.mxu0 0.0
  %1561 = vmatpush1.msra.mxu0 0.0
  %1562 = vmatprep.subr.mxu0 0.0
  %1563 = vmatpush1.msra.mxu0 0.0
  %1564 = vmatprep.subr.mxu0 0.0
  %1565 = vmatpush1.msra.mxu0 0.0
  %1566 = vmatprep.subr.mxu0 0.0
  %1567 = vmatpush1.msra.mxu0 0.0
  %1568 = vmatprep.subr.mxu0 0.0
  %1569 = vmatpush1.msra.mxu0 0.0
  %1570 = vmatprep.subr.mxu0 0.0
  %1571 = vmatpush1.msra.mxu0 0.0
  %1572 = vmatprep.subr.mxu0 0.0
  %1573 = vmatpush1.msra.mxu0 0.0
  %1574 = vmatprep.subr.mxu0 0.0
  %1575 = vmatpush1.msra.mxu0 0.0
  %1576 = vmatprep.subr.mxu0 0.0
  %1577 = vmatpush1.msra.mxu0 0.0
  %1578 = vmatprep.subr.mxu0 0.0
  %1579 = vmatpush1.msra.mxu0 0.0
  %1580 = vmatprep.subr.mxu0 0.0
  %1581 = vmatpush1.msra.mxu0 0.0
  %1582 = vmatprep.subr.mxu0 0.0
  %1583 = vmatpush1.msra.mxu0 0.0
  %1584 = vmatprep.subr.mxu0 0.0
  %1585 = vmatpush1.msra.mxu0 0.0
  %1586 = vmatprep.subr.mxu0 0.0
  %1587 = vmatpush1.msra.mxu0 0.0
  %1588 = vmatprep.subr.mxu0 0.0
  %1589 = vmatpush1.msra.mxu0 0.0
  %1590 = vmatprep.subr.mxu0 0.0
  %1591 = vmatpush1.msra.mxu0 0.0
  %1592 = vmatprep.subr.mxu0 0.0
  %1593 = vmatpush1.msra.mxu0 0.0
  %1594 = vmatprep.subr.mxu0 0.0
  %1595 = vmatpush1.msra.mxu0 0.0
  %1596 = vmatprep.subr.mxu0 0.0
  %1597 = vmatpush1.msra.mxu0 0.0
  %1598 = vmatprep.subr.mxu0 0.0
  %1599 = vmatpush1.msra.mxu0 0.0
  %1600 = vmatprep.subr.mxu0 0.0
  %1601 = vmatpush1.msra.mxu0 0.0
  %1602 = vmatprep.mubr.f32.mxu0 0.0
  %1603 = vmatmul.mubr.f32.gmra.mrb[0].mxu0 %v1536
  %v1604 = vpop.f32.mrb[0].mxu0
  %v1605 = vadd.f32 0.0, %v1604
  %v1606 = vpop.f32.mrb[0].mxu0
  %1607 = vdwg.mxu0
  %v1609 = vrot.slane %v1605, 4
  %v1610 = vrot.slane %v1605, 5
  %v1611 = vrot.slane %v1605, 6
  %v1612 = vrot.slane %v1605, 7
  %v1613 = vrot.slane %v1605, 1
  %v1614 = vrot.slane %v1605, 2
  %v1615 = vrot.slane %v1605, 3
  %v1624 = vadd.f32 %v33, %v1609
  %v1625 = vadd.f32 %v34, %v1610
  %v1626 = vadd.f32 %v35, %v1611
  %v1627 = vadd.f32 %v36, %v1612
  %v1628 = vadd.f32 %v37, %v1605
  %v1629 = vadd.f32 %v38, %v1613
  %v1630 = vadd.f32 %v39, %v1614
  %v1631 = vadd.f32 %v40, %v1615
  %v1632 = vxor.u32 %v1624, 2147483648
  %v1633 = vxor.u32 %v1625, 2147483648
  %v1634 = vxor.u32 %v1626, 2147483648
  %v1635 = vxor.u32 %v1627, 2147483648
  %v1636 = vxor.u32 %v1628, 2147483648
  %v1637 = vxor.u32 %v1629, 2147483648
  %v1638 = vxor.u32 %v1630, 2147483648
  %v1639 = vxor.u32 %v1631, 2147483648
  %v1640 = vmul.f32 %v1632, 1.442695
  %v1641 = vpow.pop %v1640
  %v1642 = vmul.f32 %v1633, 1.442695
  %v1643 = vpow.pop %v1642
  %v1644 = vmul.f32 %v1634, 1.442695
  %v1645 = vpow.pop %v1644
  %v1646 = vmul.f32 %v1635, 1.442695
  %v1647 = vpow.pop %v1646
  %v1648 = vmul.f32 %v1636, 1.442695
  %v1649 = vpow.pop %v1648
  %v1650 = vmul.f32 %v1637, 1.442695
  %v1651 = vpow.pop %v1650
  %v1652 = vmul.f32 %v1638, 1.442695
  %v1653 = vpow.pop %v1652
  %v1654 = vmul.f32 %v1639, 1.442695
  %v1655 = vpow.pop %v1654
  %v1656 = vadd.f32 %v1641, 1.0
  %v1657 = vadd.f32 %v1643, 1.0
  %v1658 = vadd.f32 %v1645, 1.0
  %v1659 = vadd.f32 %v1647, 1.0
  %v1660 = vadd.f32 %v1649, 1.0
  %v1661 = vadd.f32 %v1651, 1.0
  %v1662 = vadd.f32 %v1653, 1.0
  %v1663 = vadd.f32 %v1655, 1.0
  %v1664 = vrcp.pop %v1656
  %v1665 = vmul.f32 1.0, %v1664
  %v1666 = vrcp.pop %v1657
  %v1667 = vmul.f32 1.0, %v1666
  %v1668 = vrcp.pop %v1658
  %v1669 = vmul.f32 1.0, %v1668
  %v1670 = vrcp.pop %v1659
  %v1671 = vmul.f32 1.0, %v1670
  %v1672 = vrcp.pop %v1660
  %v1673 = vmul.f32 1.0, %v1672
  %v1674 = vrcp.pop %v1661
  %v1675 = vmul.f32 1.0, %v1674
  %v1676 = vrcp.pop %v1662
  %v1677 = vmul.f32 1.0, %v1676
  %v1678 = vrcp.pop %v1663
  %v1679 = vmul.f32 1.0, %v1678
  %v1680 = vtanh.pop %v1624
  %v1681 = vtanh.pop %v1625
  %v1682 = vtanh.pop %v1626
  %v1683 = vtanh.pop %v1627
  %v1684 = vtanh.pop %v1628
  %v1685 = vtanh.pop %v1629
  %v1686 = vtanh.pop %v1630
  %v1687 = vtanh.pop %v1631
  %v1696 = vrot.slane %v1423, 7
  %v1697 = vrot.slane %v1424, 7
  %v1698 = vrot.slane %v1425, 7
  %v1699 = vrot.slane %v1426, 7
  %v1700 = vrot.slane %v1427, 7
  %v1701 = vrot.slane %v1428, 7
  %v1702 = vrot.slane %v1429, 7
  %v1703 = vrot.slane %v1430, 7
  %v1712 = vmul.f32 %v1665, %v1696
  %v1713 = vmul.f32 %v1667, %v1697
  %v1714 = vmul.f32 %v1669, %v1698
  %v1715 = vmul.f32 %v1671, %v1699
  %v1716 = vmul.f32 %v1673, %v1700
  %v1717 = vmul.f32 %v1675, %v1701
  %v1718 = vmul.f32 %v1677, %v1702
  %v1719 = vmul.f32 %v1679, %v1703
  %1728 = vrot.lane.b32.xlu0 %v1680, 64
  %v1729 = vpop.permute.xlu0 %1728
  %1730 = vrot.lane.b32.xlu0 %v1681, 64
  %v1731 = vpop.permute.xlu0 %1730
  %1732 = vrot.lane.b32.xlu0 %v1682, 64
  %v1733 = vpop.permute.xlu0 %1732
  %1734 = vrot.lane.b32.xlu0 %v1683, 64
  %v1735 = vpop.permute.xlu0 %1734
  %1736 = vrot.lane.b32.xlu0 %v1684, 64
  %v1737 = vpop.permute.xlu0 %1736
  %1738 = vrot.lane.b32.xlu0 %v1685, 64
  %v1739 = vpop.permute.xlu0 %1738
  %1740 = vrot.lane.b32.xlu0 %v1686, 64
  %v1741 = vpop.permute.xlu0 %1740
  %1742 = vrot.lane.b32.xlu0 %v1687, 64
  %v1743 = vpop.permute.xlu0 %1742
  %v1752 = vmul.f32 %v1665, %v1729
  %v1753 = vmul.f32 %v1667, %v1731
  %v1754 = vmul.f32 %v1669, %v1733
  %v1755 = vmul.f32 %v1671, %v1735
  %v1756 = vmul.f32 %v1673, %v1737
  %v1757 = vmul.f32 %v1675, %v1739
  %v1758 = vmul.f32 %v1677, %v1741
  %v1759 = vmul.f32 %v1679, %v1743
  %1768 = vrot.lane.b32.xlu0 %v1752, 32
  %v1769 = vpop.permute.xlu0 %1768
  %1770 = vrot.lane.b32.xlu0 %v1753, 32
  %v1771 = vpop.permute.xlu0 %1770
  %1772 = vrot.lane.b32.xlu0 %v1754, 32
  %v1773 = vpop.permute.xlu0 %1772
  %1774 = vrot.lane.b32.xlu0 %v1755, 32
  %v1775 = vpop.permute.xlu0 %1774
  %1776 = vrot.lane.b32.xlu0 %v1756, 32
  %v1777 = vpop.permute.xlu0 %1776
  %1778 = vrot.lane.b32.xlu0 %v1757, 32
  %v1779 = vpop.permute.xlu0 %1778
  %1780 = vrot.lane.b32.xlu0 %v1758, 32
  %v1781 = vpop.permute.xlu0 %1780
  %1782 = vrot.lane.b32.xlu0 %v1759, 32
  %v1783 = vpop.permute.xlu0 %1782
  %v1792 = vadd.f32 %v1712, %v1769
  %v1793 = vadd.f32 %v1713, %v1771
  %v1794 = vadd.f32 %v1714, %v1773
  %v1795 = vadd.f32 %v1715, %v1775
  %v1796 = vadd.f32 %v1716, %v1777
  %v1797 = vadd.f32 %v1717, %v1779
  %v1798 = vadd.f32 %v1718, %v1781
  %v1799 = vadd.f32 %v1719, %v1783
  %v1800 = vtanh.pop %v1792
  %v1801 = vtanh.pop %v1793
  %v1802 = vtanh.pop %v1794
  %v1803 = vtanh.pop %v1795
  %v1804 = vtanh.pop %v1796
  %v1805 = vtanh.pop %v1797
  %v1806 = vtanh.pop %v1798
  %v1807 = vtanh.pop %v1799
  %1816 = vrot.lane.b32.xlu0 %v1800, 64
  %v1817 = vpop.permute.xlu0 %1816
  %1818 = vrot.lane.b32.xlu0 %v1801, 64
  %v1819 = vpop.permute.xlu0 %1818
  %1820 = vrot.lane.b32.xlu0 %v1802, 64
  %v1821 = vpop.permute.xlu0 %1820
  %1822 = vrot.lane.b32.xlu0 %v1803, 64
  %v1823 = vpop.permute.xlu0 %1822
  %1824 = vrot.lane.b32.xlu0 %v1804, 64
  %v1825 = vpop.permute.xlu0 %1824
  %1826 = vrot.lane.b32.xlu0 %v1805, 64
  %v1827 = vpop.permute.xlu0 %1826
  %1828 = vrot.lane.b32.xlu0 %v1806, 64
  %v1829 = vpop.permute.xlu0 %1828
  %1830 = vrot.lane.b32.xlu0 %v1807, 64
  %v1831 = vpop.permute.xlu0 %1830
  %v1840 = vmul.f32 %v1665, %v1817
  %v1841 = vmul.f32 %v1667, %v1819
  %v1842 = vmul.f32 %v1669, %v1821
  %v1843 = vmul.f32 %v1671, %v1823
  %v1844 = vmul.f32 %v1673, %v1825
  %v1845 = vmul.f32 %v1675, %v1827
  %v1846 = vmul.f32 %v1677, %v1829
  %v1847 = vmul.f32 %v1679, %v1831
  %1856 = vrot.lane.b32.xlu0 %v1840, 32
  %v1857 = vpop.permute.xlu0 %1856
  %1858 = vrot.lane.b32.xlu0 %v1841, 32
  %v1859 = vpop.permute.xlu0 %1858
  %1860 = vrot.lane.b32.xlu0 %v1842, 32
  %v1861 = vpop.permute.xlu0 %1860
  %1862 = vrot.lane.b32.xlu0 %v1843, 32
  %v1863 = vpop.permute.xlu0 %1862
  %1864 = vrot.lane.b32.xlu0 %v1844, 32
  %v1865 = vpop.permute.xlu0 %1864
  %1866 = vrot.lane.b32.xlu0 %v1845, 32
  %v1867 = vpop.permute.xlu0 %1866
  %1868 = vrot.lane.b32.xlu0 %v1846, 32
  %v1869 = vpop.permute.xlu0 %1868
  %1870 = vrot.lane.b32.xlu0 %v1847, 32
  %v1871 = vpop.permute.xlu0 %1870
  %vm1880 = vcmask 258052
  %1881 = vst.msk [vmem:[%s4] sm:$0x10] %vm1880, %v1857
  %1882 = vst.msk [vmem:[%s4 + $0x8] sm:$0x10] %vm1880, %v1859
  %1883 = vst.msk [vmem:[%s4 + $0x10] sm:$0x10] %vm1880, %v1861
  %1884 = vst.msk [vmem:[%s4 + $0x18] sm:$0x10] %vm1880, %v1863
  %1885 = vst.msk [vmem:[%s4 + $0x20] sm:$0x10] %vm1880, %v1865
  %1886 = vst.msk [vmem:[%s4 + $0x28] sm:$0x10] %vm1880, %v1867
  %1887 = vst.msk [vmem:[%s4 + $0x30] sm:$0x10] %vm1880, %v1869
  %1888 = vst.msk [vmem:[%s4 + $0x38] sm:$0x10] %vm1880, %v1871
  %v1889 = vrot.slane %v1840, 4
  %v1890 = vrot.slane %v1841, 3
  %v1891 = vsel %vm407, %v1890, %v1889
  %v1892 = vrot.slane %v1842, 2
  %v1893 = vsel %vm410, %v1892, %v1891
  %v1894 = vrot.slane %v1843, 1
  %v1895 = vsel %vm413, %v1894, %v1893
  %v1896 = vsel %vm416, %v1844, %v1895
  %v1897 = vrot.slane %v1845, 7
  %v1898 = vsel %vm419, %v1897, %v1896
  %v1899 = vrot.slane %v1846, 6
  %v1900 = vsel %vm422, %v1899, %v1898
  %v1901 = vrot.slane %v1847, 5
  %v1902 = vsel %vm425, %v1901, %v1900
  %1903 = vrot.lane.b32.xlu0 %v1902, 32
  %v1904 = vpop.permute.xlu0 %1903
  %v1905 = vsel %vm43, %v1904, 0
  %1907 = vmatprep.subr.mxu0 0.0
  %1908 = vmatpush1.msra.mxu0 %v29
  %1909 = vmatprep.subr.mxu0 0.0
  %1910 = vmatpush1.msra.mxu0 %v30
  %1911 = vmatprep.subr.mxu0 0.0
  %1912 = vmatpush1.msra.mxu0 %v31
  %1913 = vmatprep.subr.mxu0 0.0
  %1914 = vmatpush1.msra.mxu0 %v32
  %1915 = vmatprep.subr.mxu0 0.0
  %1916 = vmatpush1.msra.mxu0 0.0
  %1917 = vmatprep.subr.mxu0 0.0
  %1918 = vmatpush1.msra.mxu0 0.0
  %1919 = vmatprep.subr.mxu0 0.0
  %1920 = vmatpush1.msra.mxu0 0.0
  %1921 = vmatprep.subr.mxu0 0.0
  %1922 = vmatpush1.msra.mxu0 0.0
  %1923 = vmatprep.subr.mxu0 0.0
  %1924 = vmatpush1.msra.mxu0 0.0
  %1925 = vmatprep.subr.mxu0 0.0
  %1926 = vmatpush1.msra.mxu0 0.0
  %1927 = vmatprep.subr.mxu0 0.0
  %1928 = vmatpush1.msra.mxu0 0.0
  %1929 = vmatprep.subr.mxu0 0.0
  %1930 = vmatpush1.msra.mxu0 0.0
  %1931 = vmatprep.subr.mxu0 0.0
  %1932 = vmatpush1.msra.mxu0 0.0
  %1933 = vmatprep.subr.mxu0 0.0
  %1934 = vmatpush1.msra.mxu0 0.0
  %1935 = vmatprep.subr.mxu0 0.0
  %1936 = vmatpush1.msra.mxu0 0.0
  %1937 = vmatprep.subr.mxu0 0.0
  %1938 = vmatpush1.msra.mxu0 0.0
  %1939 = vmatprep.subr.mxu0 0.0
  %1940 = vmatpush1.msra.mxu0 0.0
  %1941 = vmatprep.subr.mxu0 0.0
  %1942 = vmatpush1.msra.mxu0 0.0
  %1943 = vmatprep.subr.mxu0 0.0
  %1944 = vmatpush1.msra.mxu0 0.0
  %1945 = vmatprep.subr.mxu0 0.0
  %1946 = vmatpush1.msra.mxu0 0.0
  %1947 = vmatprep.subr.mxu0 0.0
  %1948 = vmatpush1.msra.mxu0 0.0
  %1949 = vmatprep.subr.mxu0 0.0
  %1950 = vmatpush1.msra.mxu0 0.0
  %1951 = vmatprep.subr.mxu0 0.0
  %1952 = vmatpush1.msra.mxu0 0.0
  %1953 = vmatprep.subr.mxu0 0.0
  %1954 = vmatpush1.msra.mxu0 0.0
  %1955 = vmatprep.subr.mxu0 0.0
  %1956 = vmatpush1.msra.mxu0 0.0
  %1957 = vmatprep.subr.mxu0 0.0
  %1958 = vmatpush1.msra.mxu0 0.0
  %1959 = vmatprep.subr.mxu0 0.0
  %1960 = vmatpush1.msra.mxu0 0.0
  %1961 = vmatprep.subr.mxu0 0.0
  %1962 = vmatpush1.msra.mxu0 0.0
  %1963 = vmatprep.subr.mxu0 0.0
  %1964 = vmatpush1.msra.mxu0 0.0
  %1965 = vmatprep.subr.mxu0 0.0
  %1966 = vmatpush1.msra.mxu0 0.0
  %1967 = vmatprep.subr.mxu0 0.0
  %1968 = vmatpush1.msra.mxu0 0.0
  %1969 = vmatprep.subr.mxu0 0.0
  %1970 = vmatpush1.msra.mxu0 0.0
  %1971 = vmatprep.mubr.f32.mxu0 0.0
  %1972 = vmatmul.mubr.f32.gmra.mrb[0].mxu0 %v1905
  %v1973 = vpop.f32.mrb[0].mxu0
  %v1974 = vadd.f32 0.0, %v1973
  %v1975 = vpop.f32.mrb[0].mxu0
  %1976 = vdwg.mxu0
  %v1978 = vrot.slane %v1974, 3
  %v1979 = vrot.slane %v1974, 4
  %v1980 = vrot.slane %v1974, 5
  %v1981 = vrot.slane %v1974, 6
  %v1982 = vrot.slane %v1974, 7
  %v1983 = vrot.slane %v1974, 1
  %v1984 = vrot.slane %v1974, 2
  %v1993 = vadd.f32 %v33, %v1978
  %v1994 = vadd.f32 %v34, %v1979
  %v1995 = vadd.f32 %v35, %v1980
  %v1996 = vadd.f32 %v36, %v1981
  %v1997 = vadd.f32 %v37, %v1982
  %v1998 = vadd.f32 %v38, %v1974
  %v1999 = vadd.f32 %v39, %v1983
  %v2000 = vadd.f32 %v40, %v1984
  %v2001 = vxor.u32 %v1993, 2147483648
  %v2002 = vxor.u32 %v1994, 2147483648
  %v2003 = vxor.u32 %v1995, 2147483648
  %v2004 = vxor.u32 %v1996, 2147483648
  %v2005 = vxor.u32 %v1997, 2147483648
  %v2006 = vxor.u32 %v1998, 2147483648
  %v2007 = vxor.u32 %v1999, 2147483648
  %v2008 = vxor.u32 %v2000, 2147483648
  %v2009 = vmul.f32 %v2001, 1.442695
  %v2010 = vpow.pop %v2009
  %v2011 = vmul.f32 %v2002, 1.442695
  %v2012 = vpow.pop %v2011
  %v2013 = vmul.f32 %v2003, 1.442695
  %v2014 = vpow.pop %v2013
  %v2015 = vmul.f32 %v2004, 1.442695
  %v2016 = vpow.pop %v2015
  %v2017 = vmul.f32 %v2005, 1.442695
  %v2018 = vpow.pop %v2017
  %v2019 = vmul.f32 %v2006, 1.442695
  %v2020 = vpow.pop %v2019
  %v2021 = vmul.f32 %v2007, 1.442695
  %v2022 = vpow.pop %v2021
  %v2023 = vmul.f32 %v2008, 1.442695
  %v2024 = vpow.pop %v2023
  %v2025 = vadd.f32 %v2010, 1.0
  %v2026 = vadd.f32 %v2012, 1.0
  %v2027 = vadd.f32 %v2014, 1.0
  %v2028 = vadd.f32 %v2016, 1.0
  %v2029 = vadd.f32 %v2018, 1.0
  %v2030 = vadd.f32 %v2020, 1.0
  %v2031 = vadd.f32 %v2022, 1.0
  %v2032 = vadd.f32 %v2024, 1.0
  %v2033 = vrcp.pop %v2025
  %v2034 = vmul.f32 1.0, %v2033
  %v2035 = vrcp.pop %v2026
  %v2036 = vmul.f32 1.0, %v2035
  %v2037 = vrcp.pop %v2027
  %v2038 = vmul.f32 1.0, %v2037
  %v2039 = vrcp.pop %v2028
  %v2040 = vmul.f32 1.0, %v2039
  %v2041 = vrcp.pop %v2029
  %v2042 = vmul.f32 1.0, %v2041
  %v2043 = vrcp.pop %v2030
  %v2044 = vmul.f32 1.0, %v2043
  %v2045 = vrcp.pop %v2031
  %v2046 = vmul.f32 1.0, %v2045
  %v2047 = vrcp.pop %v2032
  %v2048 = vmul.f32 1.0, %v2047
  %v2049 = vtanh.pop %v1993
  %v2050 = vtanh.pop %v1994
  %v2051 = vtanh.pop %v1995
  %v2052 = vtanh.pop %v1996
  %v2053 = vtanh.pop %v1997
  %v2054 = vtanh.pop %v1998
  %v2055 = vtanh.pop %v1999
  %v2056 = vtanh.pop %v2000
  %v2065 = vrot.slane %v1792, 7
  %v2066 = vrot.slane %v1793, 7
  %v2067 = vrot.slane %v1794, 7
  %v2068 = vrot.slane %v1795, 7
  %v2069 = vrot.slane %v1796, 7
  %v2070 = vrot.slane %v1797, 7
  %v2071 = vrot.slane %v1798, 7
  %v2072 = vrot.slane %v1799, 7
  %v2081 = vmul.f32 %v2034, %v2065
  %v2082 = vmul.f32 %v2036, %v2066
  %v2083 = vmul.f32 %v2038, %v2067
  %v2084 = vmul.f32 %v2040, %v2068
  %v2085 = vmul.f32 %v2042, %v2069
  %v2086 = vmul.f32 %v2044, %v2070
  %v2087 = vmul.f32 %v2046, %v2071
  %v2088 = vmul.f32 %v2048, %v2072
  %2097 = vrot.lane.b32.xlu0 %v2049, 64
  %v2098 = vpop.permute.xlu0 %2097
  %2099 = vrot.lane.b32.xlu0 %v2050, 64
  %v2100 = vpop.permute.xlu0 %2099
  %2101 = vrot.lane.b32.xlu0 %v2051, 64
  %v2102 = vpop.permute.xlu0 %2101
  %2103 = vrot.lane.b32.xlu0 %v2052, 64
  %v2104 = vpop.permute.xlu0 %2103
  %2105 = vrot.lane.b32.xlu0 %v2053, 64
  %v2106 = vpop.permute.xlu0 %2105
  %2107 = vrot.lane.b32.xlu0 %v2054, 64
  %v2108 = vpop.permute.xlu0 %2107
  %2109 = vrot.lane.b32.xlu0 %v2055, 64
  %v2110 = vpop.permute.xlu0 %2109
  %2111 = vrot.lane.b32.xlu0 %v2056, 64
  %v2112 = vpop.permute.xlu0 %2111
  %v2121 = vmul.f32 %v2034, %v2098
  %v2122 = vmul.f32 %v2036, %v2100
  %v2123 = vmul.f32 %v2038, %v2102
  %v2124 = vmul.f32 %v2040, %v2104
  %v2125 = vmul.f32 %v2042, %v2106
  %v2126 = vmul.f32 %v2044, %v2108
  %v2127 = vmul.f32 %v2046, %v2110
  %v2128 = vmul.f32 %v2048, %v2112
  %2137 = vrot.lane.b32.xlu0 %v2121, 32
  %v2138 = vpop.permute.xlu0 %2137
  %2139 = vrot.lane.b32.xlu0 %v2122, 32
  %v2140 = vpop.permute.xlu0 %2139
  %2141 = vrot.lane.b32.xlu0 %v2123, 32
  %v2142 = vpop.permute.xlu0 %2141
  %2143 = vrot.lane.b32.xlu0 %v2124, 32
  %v2144 = vpop.permute.xlu0 %2143
  %2145 = vrot.lane.b32.xlu0 %v2125, 32
  %v2146 = vpop.permute.xlu0 %2145
  %2147 = vrot.lane.b32.xlu0 %v2126, 32
  %v2148 = vpop.permute.xlu0 %2147
  %2149 = vrot.lane.b32.xlu0 %v2127, 32
  %v2150 = vpop.permute.xlu0 %2149
  %2151 = vrot.lane.b32.xlu0 %v2128, 32
  %v2152 = vpop.permute.xlu0 %2151
  %v2161 = vadd.f32 %v2081, %v2138
  %v2162 = vadd.f32 %v2082, %v2140
  %v2163 = vadd.f32 %v2083, %v2142
  %v2164 = vadd.f32 %v2084, %v2144
  %v2165 = vadd.f32 %v2085, %v2146
  %v2166 = vadd.f32 %v2086, %v2148
  %v2167 = vadd.f32 %v2087, %v2150
  %v2168 = vadd.f32 %v2088, %v2152
  %v2169 = vtanh.pop %v2161
  %v2170 = vtanh.pop %v2162
  %v2171 = vtanh.pop %v2163
  %v2172 = vtanh.pop %v2164
  %v2173 = vtanh.pop %v2165
  %v2174 = vtanh.pop %v2166
  %v2175 = vtanh.pop %v2167
  %v2176 = vtanh.pop %v2168
  %2185 = vrot.lane.b32.xlu0 %v2169, 64
  %v2186 = vpop.permute.xlu0 %2185
  %2187 = vrot.lane.b32.xlu0 %v2170, 64
  %v2188 = vpop.permute.xlu0 %2187
  %2189 = vrot.lane.b32.xlu0 %v2171, 64
  %v2190 = vpop.permute.xlu0 %2189
  %2191 = vrot.lane.b32.xlu0 %v2172, 64
  %v2192 = vpop.permute.xlu0 %2191
  %2193 = vrot.lane.b32.xlu0 %v2173, 64
  %v2194 = vpop.permute.xlu0 %2193
  %2195 = vrot.lane.b32.xlu0 %v2174, 64
  %v2196 = vpop.permute.xlu0 %2195
  %2197 = vrot.lane.b32.xlu0 %v2175, 64
  %v2198 = vpop.permute.xlu0 %2197
  %2199 = vrot.lane.b32.xlu0 %v2176, 64
  %v2200 = vpop.permute.xlu0 %2199
  %v2209 = vmul.f32 %v2034, %v2186
  %v2210 = vmul.f32 %v2036, %v2188
  %v2211 = vmul.f32 %v2038, %v2190
  %v2212 = vmul.f32 %v2040, %v2192
  %v2213 = vmul.f32 %v2042, %v2194
  %v2214 = vmul.f32 %v2044, %v2196
  %v2215 = vmul.f32 %v2046, %v2198
  %v2216 = vmul.f32 %v2048, %v2200
  %2225 = vrot.lane.b32.xlu0 %v2209, 32
  %v2226 = vpop.permute.xlu0 %2225
  %2227 = vrot.lane.b32.xlu0 %v2210, 32
  %v2228 = vpop.permute.xlu0 %2227
  %2229 = vrot.lane.b32.xlu0 %v2211, 32
  %v2230 = vpop.permute.xlu0 %2229
  %2231 = vrot.lane.b32.xlu0 %v2212, 32
  %v2232 = vpop.permute.xlu0 %2231
  %2233 = vrot.lane.b32.xlu0 %v2213, 32
  %v2234 = vpop.permute.xlu0 %2233
  %2235 = vrot.lane.b32.xlu0 %v2214, 32
  %v2236 = vpop.permute.xlu0 %2235
  %2237 = vrot.lane.b32.xlu0 %v2215, 32
  %v2238 = vpop.permute.xlu0 %2237
  %2239 = vrot.lane.b32.xlu0 %v2216, 32
  %v2240 = vpop.permute.xlu0 %2239
  %vm2249 = vcmask 259077
  %2250 = vst.msk [vmem:[%s4] sm:$0x20] %vm2249, %v2226
  %2251 = vst.msk [vmem:[%s4 + $0x8] sm:$0x20] %vm2249, %v2228
  %2252 = vst.msk [vmem:[%s4 + $0x10] sm:$0x20] %vm2249, %v2230
  %2253 = vst.msk [vmem:[%s4 + $0x18] sm:$0x20] %vm2249, %v2232
  %2254 = vst.msk [vmem:[%s4 + $0x20] sm:$0x20] %vm2249, %v2234
  %2255 = vst.msk [vmem:[%s4 + $0x28] sm:$0x20] %vm2249, %v2236
  %2256 = vst.msk [vmem:[%s4 + $0x30] sm:$0x20] %vm2249, %v2238
  %2257 = vst.msk [vmem:[%s4 + $0x38] sm:$0x20] %vm2249, %v2240
  %v2258 = vrot.slane %v2209, 5
  %v2259 = vrot.slane %v2210, 4
  %v2260 = vsel %vm407, %v2259, %v2258
  %v2261 = vrot.slane %v2211, 3
  %v2262 = vsel %vm410, %v2261, %v2260
  %v2263 = vrot.slane %v2212, 2
  %v2264 = vsel %vm413, %v2263, %v2262
  %v2265 = vrot.slane %v2213, 1
  %v2266 = vsel %vm416, %v2265, %v2264
  %v2267 = vsel %vm419, %v2214, %v2266
  %v2268 = vrot.slane %v2215, 7
  %v2269 = vsel %vm422, %v2268, %v2267
  %v2270 = vrot.slane %v2216, 6
  %v2271 = vsel %vm425, %v2270, %v2269
  %2272 = vrot.lane.b32.xlu0 %v2271, 32
  %v2273 = vpop.permute.xlu0 %2272
  %v2274 = vsel %vm43, %v2273, 0
  %2276 = vmatprep.subr.mxu0 0.0
  %2277 = vmatpush1.msra.mxu0 %v29
  %2278 = vmatprep.subr.mxu0 0.0
  %2279 = vmatpush1.msra.mxu0 %v30
  %2280 = vmatprep.subr.mxu0 0.0
  %2281 = vmatpush1.msra.mxu0 %v31
  %2282 = vmatprep.subr.mxu0 0.0
  %2283 = vmatpush1.msra.mxu0 %v32
  %2284 = vmatprep.subr.mxu0 0.0
  %2285 = vmatpush1.msra.mxu0 0.0
  %2286 = vmatprep.subr.mxu0 0.0
  %2287 = vmatpush1.msra.mxu0 0.0
  %2288 = vmatprep.subr.mxu0 0.0
  %2289 = vmatpush1.msra.mxu0 0.0
  %2290 = vmatprep.subr.mxu0 0.0
  %2291 = vmatpush1.msra.mxu0 0.0
  %2292 = vmatprep.subr.mxu0 0.0
  %2293 = vmatpush1.msra.mxu0 0.0
  %2294 = vmatprep.subr.mxu0 0.0
  %2295 = vmatpush1.msra.mxu0 0.0
  %2296 = vmatprep.subr.mxu0 0.0
  %2297 = vmatpush1.msra.mxu0 0.0
  %2298 = vmatprep.subr.mxu0 0.0
  %2299 = vmatpush1.msra.mxu0 0.0
  %2300 = vmatprep.subr.mxu0 0.0
  %2301 = vmatpush1.msra.mxu0 0.0
  %2302 = vmatprep.subr.mxu0 0.0
  %2303 = vmatpush1.msra.mxu0 0.0
  %2304 = vmatprep.subr.mxu0 0.0
  %2305 = vmatpush1.msra.mxu0 0.0
  %2306 = vmatprep.subr.mxu0 0.0
  %2307 = vmatpush1.msra.mxu0 0.0
  %2308 = vmatprep.subr.mxu0 0.0
  %2309 = vmatpush1.msra.mxu0 0.0
  %2310 = vmatprep.subr.mxu0 0.0
  %2311 = vmatpush1.msra.mxu0 0.0
  %2312 = vmatprep.subr.mxu0 0.0
  %2313 = vmatpush1.msra.mxu0 0.0
  %2314 = vmatprep.subr.mxu0 0.0
  %2315 = vmatpush1.msra.mxu0 0.0
  %2316 = vmatprep.subr.mxu0 0.0
  %2317 = vmatpush1.msra.mxu0 0.0
  %2318 = vmatprep.subr.mxu0 0.0
  %2319 = vmatpush1.msra.mxu0 0.0
  %2320 = vmatprep.subr.mxu0 0.0
  %2321 = vmatpush1.msra.mxu0 0.0
  %2322 = vmatprep.subr.mxu0 0.0
  %2323 = vmatpush1.msra.mxu0 0.0
  %2324 = vmatprep.subr.mxu0 0.0
  %2325 = vmatpush1.msra.mxu0 0.0
  %2326 = vmatprep.subr.mxu0 0.0
  %2327 = vmatpush1.msra.mxu0 0.0
  %2328 = vmatprep.subr.mxu0 0.0
  %2329 = vmatpush1.msra.mxu0 0.0
  %2330 = vmatprep.subr.mxu0 0.0
  %2331 = vmatpush1.msra.mxu0 0.0
  %2332 = vmatprep.subr.mxu0 0.0
  %2333 = vmatpush1.msra.mxu0 0.0
  %2334 = vmatprep.subr.mxu0 0.0
  %2335 = vmatpush1.msra.mxu0 0.0
  %2336 = vmatprep.subr.mxu0 0.0
  %2337 = vmatpush1.msra.mxu0 0.0
  %2338 = vmatprep.subr.mxu0 0.0
  %2339 = vmatpush1.msra.mxu0 0.0
  %2340 = vmatprep.mubr.f32.mxu0 0.0
  %2341 = vmatmul.mubr.f32.gmra.mrb[0].mxu0 %v2274
  %v2342 = vpop.f32.mrb[0].mxu0
  %v2343 = vadd.f32 0.0, %v2342
  %v2344 = vpop.f32.mrb[0].mxu0
  %2345 = vdwg.mxu0
  %v2347 = vrot.slane %v2343, 2
  %v2348 = vrot.slane %v2343, 3
  %v2349 = vrot.slane %v2343, 4
  %v2350 = vrot.slane %v2343, 5
  %v2351 = vrot.slane %v2343, 6
  %v2352 = vrot.slane %v2343, 7
  %v2353 = vrot.slane %v2343, 1
  %v2362 = vadd.f32 %v33, %v2347
  %v2363 = vadd.f32 %v34, %v2348
  %v2364 = vadd.f32 %v35, %v2349
  %v2365 = vadd.f32 %v36, %v2350
  %v2366 = vadd.f32 %v37, %v2351
  %v2367 = vadd.f32 %v38, %v2352
  %v2368 = vadd.f32 %v39, %v2343
  %v2369 = vadd.f32 %v40, %v2353
  %v2370 = vxor.u32 %v2362, 2147483648
  %v2371 = vxor.u32 %v2363, 2147483648
  %v2372 = vxor.u32 %v2364, 2147483648
  %v2373 = vxor.u32 %v2365, 2147483648
  %v2374 = vxor.u32 %v2366, 2147483648
  %v2375 = vxor.u32 %v2367, 2147483648
  %v2376 = vxor.u32 %v2368, 2147483648
  %v2377 = vxor.u32 %v2369, 2147483648
  %v2378 = vmul.f32 %v2370, 1.442695
  %v2379 = vpow.pop %v2378
  %v2380 = vmul.f32 %v2371, 1.442695
  %v2381 = vpow.pop %v2380
  %v2382 = vmul.f32 %v2372, 1.442695
  %v2383 = vpow.pop %v2382
  %v2384 = vmul.f32 %v2373, 1.442695
  %v2385 = vpow.pop %v2384
  %v2386 = vmul.f32 %v2374, 1.442695
  %v2387 = vpow.pop %v2386
  %v2388 = vmul.f32 %v2375, 1.442695
  %v2389 = vpow.pop %v2388
  %v2390 = vmul.f32 %v2376, 1.442695
  %v2391 = vpow.pop %v2390
  %v2392 = vmul.f32 %v2377, 1.442695
  %v2393 = vpow.pop %v2392
  %v2394 = vadd.f32 %v2379, 1.0
  %v2395 = vadd.f32 %v2381, 1.0
  %v2396 = vadd.f32 %v2383, 1.0
  %v2397 = vadd.f32 %v2385, 1.0
  %v2398 = vadd.f32 %v2387, 1.0
  %v2399 = vadd.f32 %v2389, 1.0
  %v2400 = vadd.f32 %v2391, 1.0
  %v2401 = vadd.f32 %v2393, 1.0
  %v2402 = vrcp.pop %v2394
  %v2403 = vmul.f32 1.0, %v2402
  %v2404 = vrcp.pop %v2395
  %v2405 = vmul.f32 1.0, %v2404
  %v2406 = vrcp.pop %v2396
  %v2407 = vmul.f32 1.0, %v2406
  %v2408 = vrcp.pop %v2397
  %v2409 = vmul.f32 1.0, %v2408
  %v2410 = vrcp.pop %v2398
  %v2411 = vmul.f32 1.0, %v2410
  %v2412 = vrcp.pop %v2399
  %v2413 = vmul.f32 1.0, %v2412
  %v2414 = vrcp.pop %v2400
  %v2415 = vmul.f32 1.0, %v2414
  %v2416 = vrcp.pop %v2401
  %v2417 = vmul.f32 1.0, %v2416
  %v2418 = vtanh.pop %v2362
  %v2419 = vtanh.pop %v2363
  %v2420 = vtanh.pop %v2364
  %v2421 = vtanh.pop %v2365
  %v2422 = vtanh.pop %v2366
  %v2423 = vtanh.pop %v2367
  %v2424 = vtanh.pop %v2368
  %v2425 = vtanh.pop %v2369
  %v2434 = vrot.slane %v2161, 7
  %v2435 = vrot.slane %v2162, 7
  %v2436 = vrot.slane %v2163, 7
  %v2437 = vrot.slane %v2164, 7
  %v2438 = vrot.slane %v2165, 7
  %v2439 = vrot.slane %v2166, 7
  %v2440 = vrot.slane %v2167, 7
  %v2441 = vrot.slane %v2168, 7
  %v2450 = vmul.f32 %v2403, %v2434
  %v2451 = vmul.f32 %v2405, %v2435
  %v2452 = vmul.f32 %v2407, %v2436
  %v2453 = vmul.f32 %v2409, %v2437
  %v2454 = vmul.f32 %v2411, %v2438
  %v2455 = vmul.f32 %v2413, %v2439
  %v2456 = vmul.f32 %v2415, %v2440
  %v2457 = vmul.f32 %v2417, %v2441
  %2466 = vrot.lane.b32.xlu0 %v2418, 64
  %v2467 = vpop.permute.xlu0 %2466
  %2468 = vrot.lane.b32.xlu0 %v2419, 64
  %v2469 = vpop.permute.xlu0 %2468
  %2470 = vrot.lane.b32.xlu0 %v2420, 64
  %v2471 = vpop.permute.xlu0 %2470
  %2472 = vrot.lane.b32.xlu0 %v2421, 64
  %v2473 = vpop.permute.xlu0 %2472
  %2474 = vrot.lane.b32.xlu0 %v2422, 64
  %v2475 = vpop.permute.xlu0 %2474
  %2476 = vrot.lane.b32.xlu0 %v2423, 64
  %v2477 = vpop.permute.xlu0 %2476
  %2478 = vrot.lane.b32.xlu0 %v2424, 64
  %v2479 = vpop.permute.xlu0 %2478
  %2480 = vrot.lane.b32.xlu0 %v2425, 64
  %v2481 = vpop.permute.xlu0 %2480
  %v2490 = vmul.f32 %v2403, %v2467
  %v2491 = vmul.f32 %v2405, %v2469
  %v2492 = vmul.f32 %v2407, %v2471
  %v2493 = vmul.f32 %v2409, %v2473
  %v2494 = vmul.f32 %v2411, %v2475
  %v2495 = vmul.f32 %v2413, %v2477
  %v2496 = vmul.f32 %v2415, %v2479
  %v2497 = vmul.f32 %v2417, %v2481
  %2506 = vrot.lane.b32.xlu0 %v2490, 32
  %v2507 = vpop.permute.xlu0 %2506
  %2508 = vrot.lane.b32.xlu0 %v2491, 32
  %v2509 = vpop.permute.xlu0 %2508
  %2510 = vrot.lane.b32.xlu0 %v2492, 32
  %v2511 = vpop.permute.xlu0 %2510
  %2512 = vrot.lane.b32.xlu0 %v2493, 32
  %v2513 = vpop.permute.xlu0 %2512
  %2514 = vrot.lane.b32.xlu0 %v2494, 32
  %v2515 = vpop.permute.xlu0 %2514
  %2516 = vrot.lane.b32.xlu0 %v2495, 32
  %v2517 = vpop.permute.xlu0 %2516
  %2518 = vrot.lane.b32.xlu0 %v2496, 32
  %v2519 = vpop.permute.xlu0 %2518
  %2520 = vrot.lane.b32.xlu0 %v2497, 32
  %v2521 = vpop.permute.xlu0 %2520
  %v2530 = vadd.f32 %v2450, %v2507
  %v2531 = vadd.f32 %v2451, %v2509
  %v2532 = vadd.f32 %v2452, %v2511
  %v2533 = vadd.f32 %v2453, %v2513
  %v2534 = vadd.f32 %v2454, %v2515
  %v2535 = vadd.f32 %v2455, %v2517
  %v2536 = vadd.f32 %v2456, %v2519
  %v2537 = vadd.f32 %v2457, %v2521
  %v2538 = vtanh.pop %v2530
  %v2539 = vtanh.pop %v2531
  %v2540 = vtanh.pop %v2532
  %v2541 = vtanh.pop %v2533
  %v2542 = vtanh.pop %v2534
  %v2543 = vtanh.pop %v2535
  %v2544 = vtanh.pop %v2536
  %v2545 = vtanh.pop %v2537
  %2554 = vrot.lane.b32.xlu0 %v2538, 64
  %v2555 = vpop.permute.xlu0 %2554
  %2556 = vrot.lane.b32.xlu0 %v2539, 64
  %v2557 = vpop.permute.xlu0 %2556
  %2558 = vrot.lane.b32.xlu0 %v2540, 64
  %v2559 = vpop.permute.xlu0 %2558
  %2560 = vrot.lane.b32.xlu0 %v2541, 64
  %v2561 = vpop.permute.xlu0 %2560
  %2562 = vrot.lane.b32.xlu0 %v2542, 64
  %v2563 = vpop.permute.xlu0 %2562
  %2564 = vrot.lane.b32.xlu0 %v2543, 64
  %v2565 = vpop.permute.xlu0 %2564
  %2566 = vrot.lane.b32.xlu0 %v2544, 64
  %v2567 = vpop.permute.xlu0 %2566
  %2568 = vrot.lane.b32.xlu0 %v2545, 64
  %v2569 = vpop.permute.xlu0 %2568
  %v2578 = vmul.f32 %v2403, %v2555
  %v2579 = vmul.f32 %v2405, %v2557
  %v2580 = vmul.f32 %v2407, %v2559
  %v2581 = vmul.f32 %v2409, %v2561
  %v2582 = vmul.f32 %v2411, %v2563
  %v2583 = vmul.f32 %v2413, %v2565
  %v2584 = vmul.f32 %v2415, %v2567
  %v2585 = vmul.f32 %v2417, %v2569
  %2594 = vrot.lane.b32.xlu0 %v2578, 32
  %v2595 = vpop.permute.xlu0 %2594
  %2596 = vrot.lane.b32.xlu0 %v2579, 32
  %v2597 = vpop.permute.xlu0 %2596
  %2598 = vrot.lane.b32.xlu0 %v2580, 32
  %v2599 = vpop.permute.xlu0 %2598
  %2600 = vrot.lane.b32.xlu0 %v2581, 32
  %v2601 = vpop.permute.xlu0 %2600
  %2602 = vrot.lane.b32.xlu0 %v2582, 32
  %v2603 = vpop.permute.xlu0 %2602
  %2604 = vrot.lane.b32.xlu0 %v2583, 32
  %v2605 = vpop.permute.xlu0 %2604
  %2606 = vrot.lane.b32.xlu0 %v2584, 32
  %v2607 = vpop.permute.xlu0 %2606
  %2608 = vrot.lane.b32.xlu0 %v2585, 32
  %v2609 = vpop.permute.xlu0 %2608
  %vm2618 = vcmask 260102
  %2619 = vst.msk [vmem:[%s4] sm:$0x40] %vm2618, %v2595
  %2620 = vst.msk [vmem:[%s4 + $0x8] sm:$0x40] %vm2618, %v2597
  %2621 = vst.msk [vmem:[%s4 + $0x10] sm:$0x40] %vm2618, %v2599
  %2622 = vst.msk [vmem:[%s4 + $0x18] sm:$0x40] %vm2618, %v2601
  %2623 = vst.msk [vmem:[%s4 + $0x20] sm:$0x40] %vm2618, %v2603
  %2624 = vst.msk [vmem:[%s4 + $0x28] sm:$0x40] %vm2618, %v2605
  %2625 = vst.msk [vmem:[%s4 + $0x30] sm:$0x40] %vm2618, %v2607
  %2626 = vst.msk [vmem:[%s4 + $0x38] sm:$0x40] %vm2618, %v2609
  %v2627 = vrot.slane %v2578, 6
  %v2628 = vrot.slane %v2579, 5
  %v2629 = vsel %vm407, %v2628, %v2627
  %v2630 = vrot.slane %v2580, 4
  %v2631 = vsel %vm410, %v2630, %v2629
  %v2632 = vrot.slane %v2581, 3
  %v2633 = vsel %vm413, %v2632, %v2631
  %v2634 = vrot.slane %v2582, 2
  %v2635 = vsel %vm416, %v2634, %v2633
  %v2636 = vrot.slane %v2583, 1
  %v2637 = vsel %vm419, %v2636, %v2635
  %v2638 = vsel %vm422, %v2584, %v2637
  %v2639 = vrot.slane %v2585, 7
  %v2640 = vsel %vm425, %v2639, %v2638
  %2641 = vrot.lane.b32.xlu0 %v2640, 32
  %v2642 = vpop.permute.xlu0 %2641
  %v2643 = vsel %vm43, %v2642, 0
  %2645 = vmatprep.subr.mxu0 0.0
  %2646 = vmatpush1.msra.mxu0 %v29
  %2647 = vmatprep.subr.mxu0 0.0
  %2648 = vmatpush1.msra.mxu0 %v30
  %2649 = vmatprep.subr.mxu0 0.0
  %2650 = vmatpush1.msra.mxu0 %v31
  %2651 = vmatprep.subr.mxu0 0.0
  %2652 = vmatpush1.msra.mxu0 %v32
  %2653 = vmatprep.subr.mxu0 0.0
  %2654 = vmatpush1.msra.mxu0 0.0
  %2655 = vmatprep.subr.mxu0 0.0
  %2656 = vmatpush1.msra.mxu0 0.0
  %2657 = vmatprep.subr.mxu0 0.0
  %2658 = vmatpush1.msra.mxu0 0.0
  %2659 = vmatprep.subr.mxu0 0.0
  %2660 = vmatpush1.msra.mxu0 0.0
  %2661 = vmatprep.subr.mxu0 0.0
  %2662 = vmatpush1.msra.mxu0 0.0
  %2663 = vmatprep.subr.mxu0 0.0
  %2664 = vmatpush1.msra.mxu0 0.0
  %2665 = vmatprep.subr.mxu0 0.0
  %2666 = vmatpush1.msra.mxu0 0.0
  %2667 = vmatprep.subr.mxu0 0.0
  %2668 = vmatpush1.msra.mxu0 0.0
  %2669 = vmatprep.subr.mxu0 0.0
  %2670 = vmatpush1.msra.mxu0 0.0
  %2671 = vmatprep.subr.mxu0 0.0
  %2672 = vmatpush1.msra.mxu0 0.0
  %2673 = vmatprep.subr.mxu0 0.0
  %2674 = vmatpush1.msra.mxu0 0.0
  %2675 = vmatprep.subr.mxu0 0.0
  %2676 = vmatpush1.msra.mxu0 0.0
  %2677 = vmatprep.subr.mxu0 0.0
  %2678 = vmatpush1.msra.mxu0 0.0
  %2679 = vmatprep.subr.mxu0 0.0
  %2680 = vmatpush1.msra.mxu0 0.0
  %2681 = vmatprep.subr.mxu0 0.0
  %2682 = vmatpush1.msra.mxu0 0.0
  %2683 = vmatprep.subr.mxu0 0.0
  %2684 = vmatpush1.msra.mxu0 0.0
  %2685 = vmatprep.subr.mxu0 0.0
  %2686 = vmatpush1.msra.mxu0 0.0
  %2687 = vmatprep.subr.mxu0 0.0
  %2688 = vmatpush1.msra.mxu0 0.0
  %2689 = vmatprep.subr.mxu0 0.0
  %2690 = vmatpush1.msra.mxu0 0.0
  %2691 = vmatprep.subr.mxu0 0.0
  %2692 = vmatpush1.msra.mxu0 0.0
  %2693 = vmatprep.subr.mxu0 0.0
  %2694 = vmatpush1.msra.mxu0 0.0
  %2695 = vmatprep.subr.mxu0 0.0
  %2696 = vmatpush1.msra.mxu0 0.0
  %2697 = vmatprep.subr.mxu0 0.0
  %2698 = vmatpush1.msra.mxu0 0.0
  %2699 = vmatprep.subr.mxu0 0.0
  %2700 = vmatpush1.msra.mxu0 0.0
  %2701 = vmatprep.subr.mxu0 0.0
  %2702 = vmatpush1.msra.mxu0 0.0
  %2703 = vmatprep.subr.mxu0 0.0
  %2704 = vmatpush1.msra.mxu0 0.0
  %2705 = vmatprep.subr.mxu0 0.0
  %2706 = vmatpush1.msra.mxu0 0.0
  %2707 = vmatprep.subr.mxu0 0.0
  %2708 = vmatpush1.msra.mxu0 0.0
  %2709 = vmatprep.mubr.f32.mxu0 0.0
  %2710 = vmatmul.mubr.f32.gmra.mrb[0].mxu0 %v2643
  %v2711 = vpop.f32.mrb[0].mxu0
  %v2712 = vadd.f32 0.0, %v2711
  %v2713 = vpop.f32.mrb[0].mxu0
  %2714 = vdwg.mxu0
  %v2716 = vrot.slane %v2712, 1
  %v2717 = vrot.slane %v2712, 2
  %v2718 = vrot.slane %v2712, 3
  %v2719 = vrot.slane %v2712, 4
  %v2720 = vrot.slane %v2712, 5
  %v2721 = vrot.slane %v2712, 6
  %v2722 = vrot.slane %v2712, 7
  %v2731 = vadd.f32 %v33, %v2716
  %v2732 = vadd.f32 %v34, %v2717
  %v2733 = vadd.f32 %v35, %v2718
  %v2734 = vadd.f32 %v36, %v2719
  %v2735 = vadd.f32 %v37, %v2720
  %v2736 = vadd.f32 %v38, %v2721
  %v2737 = vadd.f32 %v39, %v2722
  %v2738 = vadd.f32 %v40, %v2712
  %v2739 = vxor.u32 %v2731, 2147483648
  %v2740 = vxor.u32 %v2732, 2147483648
  %v2741 = vxor.u32 %v2733, 2147483648
  %v2742 = vxor.u32 %v2734, 2147483648
  %v2743 = vxor.u32 %v2735, 2147483648
  %v2744 = vxor.u32 %v2736, 2147483648
  %v2745 = vxor.u32 %v2737, 2147483648
  %v2746 = vxor.u32 %v2738, 2147483648
  %v2747 = vmul.f32 %v2739, 1.442695
  %v2748 = vpow.pop %v2747
  %v2749 = vmul.f32 %v2740, 1.442695
  %v2750 = vpow.pop %v2749
  %v2751 = vmul.f32 %v2741, 1.442695
  %v2752 = vpow.pop %v2751
  %v2753 = vmul.f32 %v2742, 1.442695
  %v2754 = vpow.pop %v2753
  %v2755 = vmul.f32 %v2743, 1.442695
  %v2756 = vpow.pop %v2755
  %v2757 = vmul.f32 %v2744, 1.442695
  %v2758 = vpow.pop %v2757
  %v2759 = vmul.f32 %v2745, 1.442695
  %v2760 = vpow.pop %v2759
  %v2761 = vmul.f32 %v2746, 1.442695
  %v2762 = vpow.pop %v2761
  %v2763 = vadd.f32 %v2748, 1.0
  %v2764 = vadd.f32 %v2750, 1.0
  %v2765 = vadd.f32 %v2752, 1.0
  %v2766 = vadd.f32 %v2754, 1.0
  %v2767 = vadd.f32 %v2756, 1.0
  %v2768 = vadd.f32 %v2758, 1.0
  %v2769 = vadd.f32 %v2760, 1.0
  %v2770 = vadd.f32 %v2762, 1.0
  %v2771 = vrcp.pop %v2763
  %v2772 = vmul.f32 1.0, %v2771
  %v2773 = vrcp.pop %v2764
  %v2774 = vmul.f32 1.0, %v2773
  %v2775 = vrcp.pop %v2765
  %v2776 = vmul.f32 1.0, %v2775
  %v2777 = vrcp.pop %v2766
  %v2778 = vmul.f32 1.0, %v2777
  %v2779 = vrcp.pop %v2767
  %v2780 = vmul.f32 1.0, %v2779
  %v2781 = vrcp.pop %v2768
  %v2782 = vmul.f32 1.0, %v2781
  %v2783 = vrcp.pop %v2769
  %v2784 = vmul.f32 1.0, %v2783
  %v2785 = vrcp.pop %v2770
  %v2786 = vmul.f32 1.0, %v2785
  %v2787 = vtanh.pop %v2731
  %v2788 = vtanh.pop %v2732
  %v2789 = vtanh.pop %v2733
  %v2790 = vtanh.pop %v2734
  %v2791 = vtanh.pop %v2735
  %v2792 = vtanh.pop %v2736
  %v2793 = vtanh.pop %v2737
  %v2794 = vtanh.pop %v2738
  %v2803 = vrot.slane %v2530, 7
  %v2804 = vrot.slane %v2531, 7
  %v2805 = vrot.slane %v2532, 7
  %v2806 = vrot.slane %v2533, 7
  %v2807 = vrot.slane %v2534, 7
  %v2808 = vrot.slane %v2535, 7
  %v2809 = vrot.slane %v2536, 7
  %v2810 = vrot.slane %v2537, 7
  %v2819 = vmul.f32 %v2772, %v2803
  %v2820 = vmul.f32 %v2774, %v2804
  %v2821 = vmul.f32 %v2776, %v2805
  %v2822 = vmul.f32 %v2778, %v2806
  %v2823 = vmul.f32 %v2780, %v2807
  %v2824 = vmul.f32 %v2782, %v2808
  %v2825 = vmul.f32 %v2784, %v2809
  %v2826 = vmul.f32 %v2786, %v2810
  %2835 = vrot.lane.b32.xlu0 %v2787, 64
  %v2836 = vpop.permute.xlu0 %2835
  %2837 = vrot.lane.b32.xlu0 %v2788, 64
  %v2838 = vpop.permute.xlu0 %2837
  %2839 = vrot.lane.b32.xlu0 %v2789, 64
  %v2840 = vpop.permute.xlu0 %2839
  %2841 = vrot.lane.b32.xlu0 %v2790, 64
  %v2842 = vpop.permute.xlu0 %2841
  %2843 = vrot.lane.b32.xlu0 %v2791, 64
  %v2844 = vpop.permute.xlu0 %2843
  %2845 = vrot.lane.b32.xlu0 %v2792, 64
  %v2846 = vpop.permute.xlu0 %2845
  %2847 = vrot.lane.b32.xlu0 %v2793, 64
  %v2848 = vpop.permute.xlu0 %2847
  %2849 = vrot.lane.b32.xlu0 %v2794, 64
  %v2850 = vpop.permute.xlu0 %2849
  %v2859 = vmul.f32 %v2772, %v2836
  %v2860 = vmul.f32 %v2774, %v2838
  %v2861 = vmul.f32 %v2776, %v2840
  %v2862 = vmul.f32 %v2778, %v2842
  %v2863 = vmul.f32 %v2780, %v2844
  %v2864 = vmul.f32 %v2782, %v2846
  %v2865 = vmul.f32 %v2784, %v2848
  %v2866 = vmul.f32 %v2786, %v2850
  %2875 = vrot.lane.b32.xlu0 %v2859, 32
  %v2876 = vpop.permute.xlu0 %2875
  %2877 = vrot.lane.b32.xlu0 %v2860, 32
  %v2878 = vpop.permute.xlu0 %2877
  %2879 = vrot.lane.b32.xlu0 %v2861, 32
  %v2880 = vpop.permute.xlu0 %2879
  %2881 = vrot.lane.b32.xlu0 %v2862, 32
  %v2882 = vpop.permute.xlu0 %2881
  %2883 = vrot.lane.b32.xlu0 %v2863, 32
  %v2884 = vpop.permute.xlu0 %2883
  %2885 = vrot.lane.b32.xlu0 %v2864, 32
  %v2886 = vpop.permute.xlu0 %2885
  %2887 = vrot.lane.b32.xlu0 %v2865, 32
  %v2888 = vpop.permute.xlu0 %2887
  %2889 = vrot.lane.b32.xlu0 %v2866, 32
  %v2890 = vpop.permute.xlu0 %2889
  %v2899 = vadd.f32 %v2819, %v2876
  %v2900 = vadd.f32 %v2820, %v2878
  %v2901 = vadd.f32 %v2821, %v2880
  %v2902 = vadd.f32 %v2822, %v2882
  %v2903 = vadd.f32 %v2823, %v2884
  %v2904 = vadd.f32 %v2824, %v2886
  %v2905 = vadd.f32 %v2825, %v2888
  %v2906 = vadd.f32 %v2826, %v2890
  %v2907 = vtanh.pop %v2899
  %v2908 = vtanh.pop %v2900
  %v2909 = vtanh.pop %v2901
  %v2910 = vtanh.pop %v2902
  %v2911 = vtanh.pop %v2903
  %v2912 = vtanh.pop %v2904
  %v2913 = vtanh.pop %v2905
  %v2914 = vtanh.pop %v2906
  %2923 = vrot.lane.b32.xlu0 %v2907, 64
  %v2924 = vpop.permute.xlu0 %2923
  %2925 = vrot.lane.b32.xlu0 %v2908, 64
  %v2926 = vpop.permute.xlu0 %2925
  %2927 = vrot.lane.b32.xlu0 %v2909, 64
  %v2928 = vpop.permute.xlu0 %2927
  %2929 = vrot.lane.b32.xlu0 %v2910, 64
  %v2930 = vpop.permute.xlu0 %2929
  %2931 = vrot.lane.b32.xlu0 %v2911, 64
  %v2932 = vpop.permute.xlu0 %2931
  %2933 = vrot.lane.b32.xlu0 %v2912, 64
  %v2934 = vpop.permute.xlu0 %2933
  %2935 = vrot.lane.b32.xlu0 %v2913, 64
  %v2936 = vpop.permute.xlu0 %2935
  %2937 = vrot.lane.b32.xlu0 %v2914, 64
  %v2938 = vpop.permute.xlu0 %2937
  %v2947 = vmul.f32 %v2772, %v2924
  %v2948 = vmul.f32 %v2774, %v2926
  %v2949 = vmul.f32 %v2776, %v2928
  %v2950 = vmul.f32 %v2778, %v2930
  %v2951 = vmul.f32 %v2780, %v2932
  %v2952 = vmul.f32 %v2782, %v2934
  %v2953 = vmul.f32 %v2784, %v2936
  %v2954 = vmul.f32 %v2786, %v2938
  %2963 = vrot.lane.b32.xlu0 %v2947, 32
  %v2964 = vpop.permute.xlu0 %2963
  %2965 = vrot.lane.b32.xlu0 %v2948, 32
  %v2966 = vpop.permute.xlu0 %2965
  %2967 = vrot.lane.b32.xlu0 %v2949, 32
  %v2968 = vpop.permute.xlu0 %2967
  %2969 = vrot.lane.b32.xlu0 %v2950, 32
  %v2970 = vpop.permute.xlu0 %2969
  %2971 = vrot.lane.b32.xlu0 %v2951, 32
  %v2972 = vpop.permute.xlu0 %2971
  %2973 = vrot.lane.b32.xlu0 %v2952, 32
  %v2974 = vpop.permute.xlu0 %2973
  %2975 = vrot.lane.b32.xlu0 %v2953, 32
  %v2976 = vpop.permute.xlu0 %2975
  %2977 = vrot.lane.b32.xlu0 %v2954, 32
  %v2978 = vpop.permute.xlu0 %2977
  %vm2987 = vcmask 261127
  %2988 = vst.msk [vmem:[%s4] sm:$0x80] %vm2987, %v2964
  %2989 = vst.msk [vmem:[%s4 + $0x8] sm:$0x80] %vm2987, %v2966
  %2990 = vst.msk [vmem:[%s4 + $0x10] sm:$0x80] %vm2987, %v2968
  %2991 = vst.msk [vmem:[%s4 + $0x18] sm:$0x80] %vm2987, %v2970
  %2992 = vst.msk [vmem:[%s4 + $0x20] sm:$0x80] %vm2987, %v2972
  %2993 = vst.msk [vmem:[%s4 + $0x28] sm:$0x80] %vm2987, %v2974
  %2994 = vst.msk [vmem:[%s4 + $0x30] sm:$0x80] %vm2987, %v2976
  %2995 = vst.msk [vmem:[%s4 + $0x38] sm:$0x80] %vm2987, %v2978
  %v2996 = vrot.slane %v2948, 7
  %v2997 = vrot.slane %v2949, 6
  %v2998 = vsel %vm407, %v2997, %v2996
  %v2999 = vrot.slane %v2950, 5
  %v3000 = vsel %vm410, %v2999, %v2998
  %v3001 = vrot.slane %v2951, 4
  %v3002 = vsel %vm413, %v3001, %v3000
  %v3003 = vrot.slane %v2952, 3
  %v3004 = vsel %vm416, %v3003, %v3002
  %v3005 = vrot.slane %v2953, 2
  %v3006 = vsel %vm419, %v3005, %v3004
  %v3007 = vrot.slane %v2954, 1
  %v3008 = vsel %vm422, %v3007, %v3006
  %3009 = vrot.lane.b32.xlu0 %v3008, 32
  %v3010 = vpop.permute.xlu0 %3009
  %3012 = vst.msk [vmem:[#allocation2 - $0x7] sm:$0x80] %vm2987, %v2964
  %vm3013 = vcmask 260096
  %3014 = vst.msk [vmem:[#allocation2 + $0x1] sm:$0x7f] %vm3013, %v3010
  %v3023 = vrot.slane %v2900, 7
  %v3024 = vrot.slane %v2901, 6
  %v3025 = vsel %vm407, %v3024, %v3023
  %v3026 = vrot.slane %v2902, 5
  %v3027 = vsel %vm410, %v3026, %v3025
  %v3028 = vrot.slane %v2903, 4
  %v3029 = vsel %vm413, %v3028, %v3027
  %v3030 = vrot.slane %v2904, 3
  %v3031 = vsel %vm416, %v3030, %v3029
  %v3032 = vrot.slane %v2905, 2
  %v3033 = vsel %vm419, %v3032, %v3031
  %v3034 = vrot.slane %v2906, 1
  %v3035 = vsel %vm422, %v3034, %v3033
  %3036 = vrot.lane.b32.xlu0 %v2899, 96
  %v3037 = vpop.permute.xlu0 %3036
  %3038 = vrot.lane.b32.xlu0 %v3035, 96
  %v3039 = vpop.permute.xlu0 %3038
  %3042 = vst.msk [vmem:[#allocation3 - $0x7] sm:$0x80] %vm2987, %v3037
  %3043 = vst.msk [vmem:[#allocation3 + $0x1] sm:$0x7f] %vm3013, %v3039
  // Predicated region
  $region22: #{rnn_forward.6} parent=0 // pred_check
    %p3044 = pneg %p20
  $region23: #{rnn_forward.6} parent=0 // pred_check_branch
    %3046 = sbr.rel (%p3044) target = $region25
  $region24: #{rnn_forward.6} parent=0 // pred_region
    %3047 = vst.msk [vmem:[%s5 - $0x7] sm:$0x80] %vm2987, %v2964
    %3048 = vst.msk [vmem:[%s5 + $0x1] sm:$0x7f] %vm3013, %v3010
    %3049 = vst.msk [vmem:[%s6 - $0x7] sm:$0x80] %vm2987, %v3037
    %3050 = vst.msk [vmem:[%s6 + $0x1] sm:$0x7f] %vm3013, %v3039
  $region25: #{rnn_forward.6} parent=0 // pred_fallthru
    _
  // Predicated region
  $region26: #{rnn_forward.6} parent=0 // pred_check
    _
  $region27: #{rnn_forward.6} parent=0 // pred_check_branch
    %3052 = sbr.rel (0) target = $region29
  $region28: #{rnn_forward.6} parent=0 // pred_region
    _
  $region29: #{rnn_forward.6} parent=0 // pred_fallthru
    _
  // Predicated region
  $region30: #{rnn_forward.6} parent=0 // pred_check
    _
  $region31: #{rnn_forward.6} parent=0 // pred_check_branch
    %3054 = sbr.rel (0) target = $region33
  $region32: #{rnn_forward.6} parent=0 // pred_region
    _
  $region33: #{rnn_forward.6} parent=0 // pred_fallthru
    _
  // Predicated region
  $region34: #{rnn_forward.6} parent=0 // pred_check
    _
  $region35: #{rnn_forward.6} parent=0 // pred_check_branch
    %3056 = sbr.rel (0) target = $region37
  $region36: #{rnn_forward.6} parent=0 // pred_region
    _
  $region37: #{rnn_forward.6} parent=0 // pred_fallthru
    _
  // Predicated region
  $region38: #{rnn_forward.6} parent=0 // pred_check
    _
  $region39: #{rnn_forward.6} parent=0 // pred_check_branch
    %3058 = sbr.rel (0) target = $region41
  $region40: #{rnn_forward.6} parent=0 // pred_region
    _
  $region41: #{rnn_forward.6} parent=0 // pred_fallthru
    _
  // Predicated region
  $region42: #{rnn_forward.6} parent=0 // pred_check
    _
  $region43: #{rnn_forward.6} parent=0 // pred_check_branch
    %3060 = sbr.rel (0) target = $region45
  $region44: #{rnn_forward.6} parent=0 // pred_region
    _
  $region45: #{rnn_forward.6} parent=0 // pred_fallthru
    _
  // Predicated region
  $region46: #{rnn_forward.6} parent=0 // pred_check
    _
  $region47: #{rnn_forward.6} parent=0 // pred_check_branch
    %3062 = sbr.rel (0) target = $region49
  $region48: #{rnn_forward.6} parent=0 // pred_region
    _
  $region49: #{rnn_forward.6} parent=0 // pred_fallthru
    _

</llo_original>
